<compile_context>
chip_gen: v7x
topology: tpu7x:2x2x1
jax: 0.10.0
libtpu: 0.0.40
codegen_flags: <defaults>
</compile_context>

<pallas_src>
import numpy as np
import jax
import jax.numpy as jnp
from jax.experimental import pallas as pl
from jax.experimental.pallas import tpu as pltpu


# ----------------------------- Pallas kernel --------------------------------

def _lenet_kernel(x_ref, w1_ref, b1_ref, w2_ref, b2_ref, w3_ref, b3_ref,
                  w4_ref, b4_ref, w5_ref, b5_ref, o_ref):
    """Fused LeNet forward for one batch tile.

    x_ref:  (1, 4, 8*tb, 32)  padded 32x32 input rows, phase-decomposed mod 4
                              (phase r holds rows {r, r+4, ...}); row = a*tb+m.
    w1_ref: (5, 32, 256)      conv1 banded weights, col = d2*128 + j*8 + oc.
    w2_ref: (5, 112, 256)     conv2 banded weights, col = d2*128 + j2*16 + oc2.
    w3/4/5, b*:               FC head (zero-padded to 128 lanes).
    o_ref:  (tb, 10)          logits.
    """
    tb = o_ref.shape[0]
    f32 = jnp.float32
    x = x_ref[0]                    # (4, 8*tb, 32)
    b1 = b1_ref[...]                # (1, 256)
    b2 = b2_ref[...]                # (1, 256)

    # ---- conv1 (5x5, pad=2, 1->6) + sigmoid + 2x2 avg pool -----------------
    # Output kept parity-separated over the pooled row index i = 2a + p so the
    # conv2 stage below also needs no strided access:  y1[p] rows = a*tb + m,
    # cols = j*8 + oc (j in 0..13, oc in 0..7; oc 6,7 are zero-weight padding).
    y1 = []
    for p in range(2):                       # parity of pooled output row
        tap_sum = None
        for d1 in range(2):                  # row tap inside the pool window
            acc = None
            for k1 in range(5):              # conv kernel row
                u = 2 * p + d1 + k1          # input row = 4*(a + u//4) + u%4
                s, r = u // 4, u % 4
                lhs = x[r, s * tb:(s + 7) * tb, :]                  # (7tb, 32)
                t = jnp.dot(lhs, w1_ref[k1], preferred_element_type=f32)
                acc = t if acc is None else acc + t
            sg = jax.nn.sigmoid(acc + b1)                           # (7tb, 256)
            both = sg[:, 0:112] + sg[:, 128:240]  # fused column taps d2=0,1
            tap_sum = both if tap_sum is None else tap_sum + both
        y1.append(0.25 * tap_sum)                                   # (7tb, 112)

    # ---- conv2 (5x5, valid, 6->16) + sigmoid + 2x2 avg pool ----------------
    tap_sum2 = None
    for d1 in range(2):                      # row tap inside the pool window
        acc = None
        for k1 in range(5):                  # conv kernel row
            u = d1 + k1                      # y1 spatial row = 2*(i2+u//2)+u%2
            pp, s = u % 2, u // 2
            lhs = y1[pp][s * tb:(s + 5) * tb, :]                    # (5tb, 112)
            t = jnp.dot(lhs, w2_ref[k1], preferred_element_type=f32)
            acc = t if acc is None else acc + t
        sg = jax.nn.sigmoid(acc + b2)                               # (5tb, 256)
        both = sg[:, 0:80] + sg[:, 128:208]       # fused column taps d2=0,1
        tap_sum2 = both if tap_sum2 is None else tap_sum2 + both
    z = 0.25 * tap_sum2                      # (5tb, 80); rows = i2*tb + m

    # ---- FC head: 400 -> 120 -> 84 -> 10 (hidden dims padded to 128) -------
    w3 = w3_ref[...]                         # (400, 128), rows = i2*80+j2*16+c
    h = None
    for i2 in range(5):
        t = jnp.dot(z[i2 * tb:(i2 + 1) * tb, :],
                    w3[i2 * 80:(i2 + 1) * 80, :], preferred_element_type=f32)
        h = t if h is None else h + t
    h = jax.nn.sigmoid(h + b3_ref[...])                             # (tb, 128)
    h = jax.nn.sigmoid(jnp.dot(h, w4_ref[...], preferred_element_type=f32)
                       + b4_ref[...])                               # (tb, 128)
    out = jnp.dot(h, w5_ref[...], preferred_element_type=f32) + b5_ref[...]
    o_ref[...] = out.astype(o_ref.dtype)                            # (tb, 10)


# ----------------------------- Pallas wrapper --------------------------------

def _batch_tile(n):
    """Batch tile: full batch when tiny, else a multiple of 8 giving >=2 steps."""
    if n <= 8:
        return n
    half = (n + 1) // 2
    return min(64, max(8, (half // 8) * 8))


def lenet_forward(x_nchw, kp):
    n = x_nchw.shape[0]
    assert x_nchw.shape[1:] == (1, 28, 28), x_nchw.shape
    tb = _batch_tile(n)
    g = -(-n // tb)                 # number of grid steps
    npad = g * tb

    x = x_nchw.reshape(n, 28, 28).astype(jnp.float32)
    x = jnp.pad(x, ((0, npad - n), (2, 2), (2, 2)))        # (npad, 32, 32)
    # mod-4 row-phase decomposition packed per batch tile:
    # (npad,32,32) -> (g, 4, 8*tb, 32); phase r holds input rows {r, r+4, ...},
    # and within a phase the row index is alpha*tb + m (spatial-major).
    x = x.reshape(g, tb, 8, 4, 32).transpose(0, 3, 2, 1, 4).reshape(g, 4, 8 * tb, 32)

    # Advisory cost estimate (lets XLA schedule around the custom call).
    flops = 2 * g * (20 * 7 * tb * 32 * 256 + 10 * 5 * tb * 112 * 256
                     + 5 * tb * 80 * 128 + tb * 128 * 128 + tb * 128 * 10)
    trans = g * (4 * 7 * tb * 256 + 2 * 5 * tb * 256 + 2 * tb * 128)
    w_bytes = sum(int(np.prod(kp[k].shape)) * 4 for k in
                  ("w1", "b1", "w2", "b2", "w3", "b3", "w4", "b4", "w5", "b5"))
    bytes_accessed = int(np.prod(x.shape)) * 4 + w_bytes + npad * 10 * 4

    out = pl.pallas_call(
        _lenet_kernel,
        out_shape=jax.ShapeDtypeStruct((npad, 10), jnp.float32),
        grid=(g,),
        in_specs=[
            pl.BlockSpec((1, 4, 8 * tb, 32), lambda i: (i, 0, 0, 0)),
            pl.BlockSpec(kp["w1"].shape, lambda i: (0, 0, 0)),
            pl.BlockSpec(kp["b1"].shape, lambda i: (0, 0)),
            pl.BlockSpec(kp["w2"].shape, lambda i: (0, 0, 0)),
            pl.BlockSpec(kp["b2"].shape, lambda i: (0, 0)),
            pl.BlockSpec(kp["w3"].shape, lambda i: (0, 0)),
            pl.BlockSpec(kp["b3"].shape, lambda i: (0, 0)),
            pl.BlockSpec(kp["w4"].shape, lambda i: (0, 0)),
            pl.BlockSpec(kp["b4"].shape, lambda i: (0, 0)),
            pl.BlockSpec(kp["w5"].shape, lambda i: (0, 0)),
            pl.BlockSpec(kp["b5"].shape, lambda i: (0, 0)),
        ],
        out_specs=pl.BlockSpec((tb, 10), lambda i: (i, 0)),
        compiler_params=pltpu.CompilerParams(dimension_semantics=("parallel",)),
        cost_estimate=pl.CostEstimate(flops=flops, transcendentals=trans,
                                      bytes_accessed=bytes_accessed),
    )(x, kp["w1"], kp["b1"], kp["w2"], kp["b2"], kp["w3"], kp["b3"],
      kp["w4"], kp["b4"], kp["w5"], kp["b5"])
    return out[:n]


# ------------------------------- parameters ----------------------------------

def init_params(key, dtype=jnp.float32):
    """PyTorch-shaped parameters (Conv2d OIHW, Linear (out, in))."""
    ks = jax.random.split(key, 10)
    scale = 0.1

    def rnd(k, shape):
        return (scale * jax.random.normal(k, shape)).astype(dtype)

    return {
        "w1": rnd(ks[0], (6, 1, 5, 5)),   "b1": rnd(ks[1], (6,)),
        "w2": rnd(ks[2], (16, 6, 5, 5)),  "b2": rnd(ks[3], (16,)),
        "w3": rnd(ks[4], (120, 400)),     "b3": rnd(ks[5], (120,)),
        "w4": rnd(ks[6], (84, 120)),      "b4": rnd(ks[7], (84,)),
        "w5": rnd(ks[8], (10, 84)),       "b5": rnd(ks[9], (10,)),
    }


def prepare_params(p):
    """One-time host-side weight preprocessing into kernel-ready layouts.

    Convolutions become banded matmul weights (column index = pool_tap*128 +
    out_col*C + out_channel); hidden FC dims are zero-padded to 128 so padded
    lanes (which carry sigmoid(0)=0.5) contribute exactly nothing downstream.
    """
    f32 = np.float32
    w1 = np.asarray(p["w1"], f32)
    b1 = np.asarray(p["b1"], f32)
    w2 = np.asarray(p["w2"], f32)
    b2 = np.asarray(p["b2"], f32)
    w3 = np.asarray(p["w3"], f32)
    b3 = np.asarray(p["b3"], f32)
    w4 = np.asarray(p["w4"], f32)
    b4 = np.asarray(p["b4"], f32)
    w5 = np.asarray(p["w5"], f32)
    b5 = np.asarray(p["b5"], f32)

    # conv1 banded weights: (k1, 32, 256); entry [k1, 2j+d2+k2, d2*128+j*8+oc].
    w1b = np.zeros((5, 32, 256), f32)
    b1v = np.zeros((1, 256), f32)
    for k1 in range(5):
        for d2 in range(2):
            for j in range(14):
                for k2 in range(5):
                    w1b[k1, 2 * j + d2 + k2,
                        d2 * 128 + j * 8:d2 * 128 + j * 8 + 6] = w1[:, 0, k1, k2]
    for d2 in range(2):
        for j in range(14):
            b1v[0, d2 * 128 + j * 8:d2 * 128 + j * 8 + 6] = b1

    # conv2 banded weights: (k1, 112, 256); rows j*8+ic, cols d2*128+j2*16+oc2.
    w2b = np.zeros((5, 112, 256), f32)
    b2v = np.zeros((1, 256), f32)
    for k1 in range(5):
        for d2 in range(2):
            for j2 in range(5):
                for k2 in range(5):
                    j = 2 * j2 + d2 + k2
                    w2b[k1, j * 8:j * 8 + 6,
                        d2 * 128 + j2 * 16:d2 * 128 + j2 * 16 + 16] = w2[:, :, k1, k2].T
    for d2 in range(2):
        for j2 in range(5):
            b2v[0, d2 * 128 + j2 * 16:d2 * 128 + j2 * 16 + 16] = b2

    # fc1: fold nn.Flatten's NCHW ordering into a (h,w,c)-ordered weight.
    w3k = np.transpose(w3.reshape(120, 16, 5, 5), (2, 3, 1, 0)).reshape(400, 120)
    w3k = np.pad(w3k, ((0, 0), (0, 8)))                    # (400, 128)
    b3v = np.pad(b3, (0, 8)).reshape(1, 128)
    w4k = np.pad(w4.T, ((0, 8), (0, 44)))                  # (128, 128)
    b4v = np.pad(b4, (0, 44)).reshape(1, 128)
    w5k = np.pad(w5.T, ((0, 44), (0, 0)))                  # (128, 10)
    b5v = b5.reshape(1, 10)

    return {"w1": jnp.asarray(w1b), "b1": jnp.asarray(b1v),
            "w2": jnp.asarray(w2b), "b2": jnp.asarray(b2v),
            "w3": jnp.asarray(w3k), "b3": jnp.asarray(b3v),
            "w4": jnp.asarray(w4k), "b4": jnp.asarray(b4v),
            "w5": jnp.asarray(w5k), "b5": jnp.asarray(b5v)}


# --------------------------- pure-JAX reference ------------------------------

def lenet_reference(x_nchw, p):
    hi = jax.lax.Precision.HIGHEST
    x = x_nchw.astype(jnp.float32)
    y = jax.lax.conv_general_dilated(x, p["w1"].astype(jnp.float32), (1, 1),
                                     ((2, 2), (2, 2)),
                                     dimension_numbers=("NCHW", "OIHW", "NCHW"),
                                     precision=hi)
    y = jax.nn.sigmoid(y + p["b1"].reshape(1, 6, 1, 1))
    y = y.reshape(y.shape[0], 6, 14, 2, 14, 2).mean(axis=(3, 5))
    y = jax.lax.conv_general_dilated(y, p["w2"].astype(jnp.float32), (1, 1),
                                     "VALID",
                                     dimension_numbers=("NCHW", "OIHW", "NCHW"),
                                     precision=hi)
    y = jax.nn.sigmoid(y + p["b2"].reshape(1, 16, 1, 1))
    y = y.reshape(y.shape[0], 16, 5, 2, 5, 2).mean(axis=(3, 5))
    y = y.reshape(y.shape[0], 400)
    y = jax.nn.sigmoid(jnp.dot(y, p["w3"].T, precision=hi) + p["b3"])
    y = jax.nn.sigmoid(jnp.dot(y, p["w4"].T, precision=hi) + p["b4"])
    return jnp.dot(y, p["w5"].T, precision=hi) + p["b5"]


if __name__ == "__main__":
    key = jax.random.PRNGKey(0)
    k_params, k_input = jax.random.split(key)
    params = init_params(k_params)
    kernel_params = prepare_params(params)          # one-time weight prep
    # LeNet's hard-coded 16*5*5 flatten implies 1x28x28 inputs; batch = 2.
    x = jax.random.normal(k_input, (2, 1, 28, 28), dtype=jnp.float32)

    out = jax.jit(lenet_forward)(x, kernel_params)
    out = jax.block_until_ready(out)
    assert out.shape == (2, 10), out.shape

    ref = jax.block_until_ready(jax.jit(lenet_reference)(x, params))
    err = float(jnp.max(jnp.abs(out - ref)))
    # Loose bound only because MXU matmul passes may round operands to bf16;
    # an indexing bug would produce O(0.3+) errors.
    assert err < 5e-2, f"max |kernel - reference| = {err}"
    print("KERNEL_OK")
</pallas_src>

<mosaic_0001>
module attributes {stable_mosaic.version = 11 : i64} {
  func.func @_lenet_kernel(%arg0: i32, %arg1: memref<1x4x16x32xf32, #tpu.memory_space<vmem>>, %arg2: memref<5x32x256xf32, #tpu.memory_space<vmem>>, %arg3: memref<1x256xf32, #tpu.memory_space<vmem>>, %arg4: memref<5x112x256xf32, #tpu.memory_space<vmem>>, %arg5: memref<1x256xf32, #tpu.memory_space<vmem>>, %arg6: memref<400x128xf32, #tpu.memory_space<vmem>>, %arg7: memref<1x128xf32, #tpu.memory_space<vmem>>, %arg8: memref<128x128xf32, #tpu.memory_space<vmem>>, %arg9: memref<1x128xf32, #tpu.memory_space<vmem>>, %arg10: memref<128x10xf32, #tpu.memory_space<vmem>>, %arg11: memref<1x10xf32, #tpu.memory_space<vmem>>, %arg12: memref<2x10xf32, #tpu.memory_space<vmem>>) attributes {dimension_semantics = [#tpu.dimension_semantics<parallel>], iteration_bounds = array<i64: 1>, scalar_prefetch = 0 : i64, scratch_operands = 0 : i64, tpu.core_type = #tpu.core_type<tc>, window_params = [{transform_indices = @transform_0, window_bounds = array<i64: 1, 4, 16, 32>}, {pipeline_mode = #tpu.pipeline_mode<synchronous>, transform_indices = @transform_1, window_bounds = array<i64: 5, 32, 256>}, {pipeline_mode = #tpu.pipeline_mode<synchronous>, transform_indices = @transform_2, window_bounds = array<i64: 1, 256>}, {pipeline_mode = #tpu.pipeline_mode<synchronous>, transform_indices = @transform_3, window_bounds = array<i64: 5, 112, 256>}, {pipeline_mode = #tpu.pipeline_mode<synchronous>, transform_indices = @transform_4, window_bounds = array<i64: 1, 256>}, {pipeline_mode = #tpu.pipeline_mode<synchronous>, transform_indices = @transform_5, window_bounds = array<i64: 400, 128>}, {pipeline_mode = #tpu.pipeline_mode<synchronous>, transform_indices = @transform_6, window_bounds = array<i64: 1, 128>}, {pipeline_mode = #tpu.pipeline_mode<synchronous>, transform_indices = @transform_7, window_bounds = array<i64: 128, 128>}, {pipeline_mode = #tpu.pipeline_mode<synchronous>, transform_indices = @transform_8, window_bounds = array<i64: 1, 128>}, {pipeline_mode = #tpu.pipeline_mode<synchronous>, transform_indices = @transform_9, window_bounds = array<i64: 128, 10>}, {pipeline_mode = #tpu.pipeline_mode<synchronous>, transform_indices = @transform_10, window_bounds = array<i64: 1, 10>}, {transform_indices = @transform_11, window_bounds = array<i64: 2, 10>}]} {
    %c0 = arith.constant 0 : index
    %c0_0 = arith.constant 0 : index
    %c0_1 = arith.constant 0 : index
    %c0_2 = arith.constant 0 : index
    %0 = vector.load %arg1[%c0, %c0_0, %c0_1, %c0_2] : memref<1x4x16x32xf32, #tpu.memory_space<vmem>>, vector<1x4x16x32xf32>
    %1 = vector.shape_cast %0 : vector<1x4x16x32xf32> to vector<4x16x32xf32>
    %c0_3 = arith.constant 0 : index
    %c0_4 = arith.constant 0 : index
    %2 = vector.load %arg3[%c0_3, %c0_4] : memref<1x256xf32, #tpu.memory_space<vmem>>, vector<1x256xf32>
    %c0_5 = arith.constant 0 : index
    %c0_6 = arith.constant 0 : index
    %3 = vector.load %arg5[%c0_5, %c0_6] : memref<1x256xf32, #tpu.memory_space<vmem>>, vector<1x256xf32>
    %4 = vector.extract_strided_slice %1 {offsets = [0, 0, 0], sizes = [1, 14, 32], strides = [1, 1, 1]} : vector<4x16x32xf32> to vector<1x14x32xf32>
    %5 = vector.shape_cast %4 : vector<1x14x32xf32> to vector<14x32xf32>
    %c0_7 = arith.constant 0 : index
    %c0_8 = arith.constant 0 : index
    %c0_9 = arith.constant 0 : index
    %6 = vector.load %arg2[%c0_7, %c0_8, %c0_9] : memref<5x32x256xf32, #tpu.memory_space<vmem>>, vector<1x32x256xf32>
    %7 = vector.shape_cast %6 : vector<1x32x256xf32> to vector<32x256xf32>
    %cst = arith.constant dense<0.000000e+00> : vector<14x256xf32>
    %8 = tpu.matmul %5, %7, %cst {dimension_numbers = #tpu.dot_dimension_numbers<[1], [0], [0], [1], [0, 0, 1, 1], [], []>} : vector<14x32xf32>, vector<32x256xf32>, vector<14x256xf32> -> vector<14x256xf32>
    %9 = vector.extract_strided_slice %1 {offsets = [1, 0, 0], sizes = [1, 14, 32], strides = [1, 1, 1]} : vector<4x16x32xf32> to vector<1x14x32xf32>
    %10 = vector.shape_cast %9 : vector<1x14x32xf32> to vector<14x32xf32>
    %c1 = arith.constant 1 : index
    %c0_10 = arith.constant 0 : index
    %c0_11 = arith.constant 0 : index
    %11 = vector.load %arg2[%c1, %c0_10, %c0_11] : memref<5x32x256xf32, #tpu.memory_space<vmem>>, vector<1x32x256xf32>
    %12 = vector.shape_cast %11 : vector<1x32x256xf32> to vector<32x256xf32>
    %cst_12 = arith.constant dense<0.000000e+00> : vector<14x256xf32>
    %13 = tpu.matmul %10, %12, %cst_12 {dimension_numbers = #tpu.dot_dimension_numbers<[1], [0], [0], [1], [0, 0, 1, 1], [], []>} : vector<14x32xf32>, vector<32x256xf32>, vector<14x256xf32> -> vector<14x256xf32>
    %14 = arith.addf %8, %13 : vector<14x256xf32>
    %15 = vector.extract_strided_slice %1 {offsets = [2, 0, 0], sizes = [1, 14, 32], strides = [1, 1, 1]} : vector<4x16x32xf32> to vector<1x14x32xf32>
    %16 = vector.shape_cast %15 : vector<1x14x32xf32> to vector<14x32xf32>
    %c2 = arith.constant 2 : index
    %c0_13 = arith.constant 0 : index
    %c0_14 = arith.constant 0 : index
    %17 = vector.load %arg2[%c2, %c0_13, %c0_14] : memref<5x32x256xf32, #tpu.memory_space<vmem>>, vector<1x32x256xf32>
    %18 = vector.shape_cast %17 : vector<1x32x256xf32> to vector<32x256xf32>
    %cst_15 = arith.constant dense<0.000000e+00> : vector<14x256xf32>
    %19 = tpu.matmul %16, %18, %cst_15 {dimension_numbers = #tpu.dot_dimension_numbers<[1], [0], [0], [1], [0, 0, 1, 1], [], []>} : vector<14x32xf32>, vector<32x256xf32>, vector<14x256xf32> -> vector<14x256xf32>
    %20 = arith.addf %14, %19 : vector<14x256xf32>
    %21 = vector.extract_strided_slice %1 {offsets = [3, 0, 0], sizes = [1, 14, 32], strides = [1, 1, 1]} : vector<4x16x32xf32> to vector<1x14x32xf32>
    %22 = vector.shape_cast %21 : vector<1x14x32xf32> to vector<14x32xf32>
    %c3 = arith.constant 3 : index
    %c0_16 = arith.constant 0 : index
    %c0_17 = arith.constant 0 : index
    %23 = vector.load %arg2[%c3, %c0_16, %c0_17] : memref<5x32x256xf32, #tpu.memory_space<vmem>>, vector<1x32x256xf32>
    %24 = vector.shape_cast %23 : vector<1x32x256xf32> to vector<32x256xf32>
    %cst_18 = arith.constant dense<0.000000e+00> : vector<14x256xf32>
    %25 = tpu.matmul %22, %24, %cst_18 {dimension_numbers = #tpu.dot_dimension_numbers<[1], [0], [0], [1], [0, 0, 1, 1], [], []>} : vector<14x32xf32>, vector<32x256xf32>, vector<14x256xf32> -> vector<14x256xf32>
    %26 = arith.addf %20, %25 : vector<14x256xf32>
    %27 = vector.extract_strided_slice %1 {offsets = [0, 2, 0], sizes = [1, 14, 32], strides = [1, 1, 1]} : vector<4x16x32xf32> to vector<1x14x32xf32>
    %28 = vector.shape_cast %27 : vector<1x14x32xf32> to vector<14x32xf32>
    %c4 = arith.constant 4 : index
    %c0_19 = arith.constant 0 : index
    %c0_20 = arith.constant 0 : index
    %29 = vector.load %arg2[%c4, %c0_19, %c0_20] : memref<5x32x256xf32, #tpu.memory_space<vmem>>, vector<1x32x256xf32>
    %30 = vector.shape_cast %29 : vector<1x32x256xf32> to vector<32x256xf32>
    %cst_21 = arith.constant dense<0.000000e+00> : vector<14x256xf32>
    %31 = tpu.matmul %28, %30, %cst_21 {dimension_numbers = #tpu.dot_dimension_numbers<[1], [0], [0], [1], [0, 0, 1, 1], [], []>} : vector<14x32xf32>, vector<32x256xf32>, vector<14x256xf32> -> vector<14x256xf32>
    %32 = arith.addf %26, %31 : vector<14x256xf32>
    %33 = vector.broadcast %2 : vector<1x256xf32> to vector<14x256xf32>
    %34 = arith.addf %32, %33 : vector<14x256xf32>
    %35 = arith.negf %34 : vector<14x256xf32>
    %36 = math.exp %35 : vector<14x256xf32>
    %cst_22 = arith.constant 1.000000e+00 : f32
    %37 = vector.broadcast %cst_22 : f32 to vector<14x256xf32>
    %38 = arith.addf %37, %36 : vector<14x256xf32>
    %39 = arith.divf %37, %38 : vector<14x256xf32>
    %40 = vector.extract_strided_slice %39 {offsets = [0, 0], sizes = [14, 112], strides = [1, 1]} : vector<14x256xf32> to vector<14x112xf32>
    %41 = vector.extract_strided_slice %39 {offsets = [0, 128], sizes = [14, 112], strides = [1, 1]} : vector<14x256xf32> to vector<14x112xf32>
    %42 = arith.addf %40, %41 : vector<14x112xf32>
    %43 = vector.extract_strided_slice %1 {offsets = [1, 0, 0], sizes = [1, 14, 32], strides = [1, 1, 1]} : vector<4x16x32xf32> to vector<1x14x32xf32>
    %44 = vector.shape_cast %43 : vector<1x14x32xf32> to vector<14x32xf32>
    %c0_23 = arith.constant 0 : index
    %c0_24 = arith.constant 0 : index
    %c0_25 = arith.constant 0 : index
    %45 = vector.load %arg2[%c0_23, %c0_24, %c0_25] : memref<5x32x256xf32, #tpu.memory_space<vmem>>, vector<1x32x256xf32>
    %46 = vector.shape_cast %45 : vector<1x32x256xf32> to vector<32x256xf32>
    %cst_26 = arith.constant dense<0.000000e+00> : vector<14x256xf32>
    %47 = tpu.matmul %44, %46, %cst_26 {dimension_numbers = #tpu.dot_dimension_numbers<[1], [0], [0], [1], [0, 0, 1, 1], [], []>} : vector<14x32xf32>, vector<32x256xf32>, vector<14x256xf32> -> vector<14x256xf32>
    %48 = vector.extract_strided_slice %1 {offsets = [2, 0, 0], sizes = [1, 14, 32], strides = [1, 1, 1]} : vector<4x16x32xf32> to vector<1x14x32xf32>
    %49 = vector.shape_cast %48 : vector<1x14x32xf32> to vector<14x32xf32>
    %c1_27 = arith.constant 1 : index
    %c0_28 = arith.constant 0 : index
    %c0_29 = arith.constant 0 : index
    %50 = vector.load %arg2[%c1_27, %c0_28, %c0_29] : memref<5x32x256xf32, #tpu.memory_space<vmem>>, vector<1x32x256xf32>
    %51 = vector.shape_cast %50 : vector<1x32x256xf32> to vector<32x256xf32>
    %cst_30 = arith.constant dense<0.000000e+00> : vector<14x256xf32>
    %52 = tpu.matmul %49, %51, %cst_30 {dimension_numbers = #tpu.dot_dimension_numbers<[1], [0], [0], [1], [0, 0, 1, 1], [], []>} : vector<14x32xf32>, vector<32x256xf32>, vector<14x256xf32> -> vector<14x256xf32>
    %53 = arith.addf %47, %52 : vector<14x256xf32>
    %54 = vector.extract_strided_slice %1 {offsets = [3, 0, 0], sizes = [1, 14, 32], strides = [1, 1, 1]} : vector<4x16x32xf32> to vector<1x14x32xf32>
    %55 = vector.shape_cast %54 : vector<1x14x32xf32> to vector<14x32xf32>
    %c2_31 = arith.constant 2 : index
    %c0_32 = arith.constant 0 : index
    %c0_33 = arith.constant 0 : index
    %56 = vector.load %arg2[%c2_31, %c0_32, %c0_33] : memref<5x32x256xf32, #tpu.memory_space<vmem>>, vector<1x32x256xf32>
    %57 = vector.shape_cast %56 : vector<1x32x256xf32> to vector<32x256xf32>
    %cst_34 = arith.constant dense<0.000000e+00> : vector<14x256xf32>
    %58 = tpu.matmul %55, %57, %cst_34 {dimension_numbers = #tpu.dot_dimension_numbers<[1], [0], [0], [1], [0, 0, 1, 1], [], []>} : vector<14x32xf32>, vector<32x256xf32>, vector<14x256xf32> -> vector<14x256xf32>
    %59 = arith.addf %53, %58 : vector<14x256xf32>
    %60 = vector.extract_strided_slice %1 {offsets = [0, 2, 0], sizes = [1, 14, 32], strides = [1, 1, 1]} : vector<4x16x32xf32> to vector<1x14x32xf32>
    %61 = vector.shape_cast %60 : vector<1x14x32xf32> to vector<14x32xf32>
    %c3_35 = arith.constant 3 : index
    %c0_36 = arith.constant 0 : index
    %c0_37 = arith.constant 0 : index
    %62 = vector.load %arg2[%c3_35, %c0_36, %c0_37] : memref<5x32x256xf32, #tpu.memory_space<vmem>>, vector<1x32x256xf32>
    %63 = vector.shape_cast %62 : vector<1x32x256xf32> to vector<32x256xf32>
    %cst_38 = arith.constant dense<0.000000e+00> : vector<14x256xf32>
    %64 = tpu.matmul %61, %63, %cst_38 {dimension_numbers = #tpu.dot_dimension_numbers<[1], [0], [0], [1], [0, 0, 1, 1], [], []>} : vector<14x32xf32>, vector<32x256xf32>, vector<14x256xf32> -> vector<14x256xf32>
    %65 = arith.addf %59, %64 : vector<14x256xf32>
    %66 = vector.extract_strided_slice %1 {offsets = [1, 2, 0], sizes = [1, 14, 32], strides = [1, 1, 1]} : vector<4x16x32xf32> to vector<1x14x32xf32>
    %67 = vector.shape_cast %66 : vector<1x14x32xf32> to vector<14x32xf32>
    %c4_39 = arith.constant 4 : index
    %c0_40 = arith.constant 0 : index
    %c0_41 = arith.constant 0 : index
    %68 = vector.load %arg2[%c4_39, %c0_40, %c0_41] : memref<5x32x256xf32, #tpu.memory_space<vmem>>, vector<1x32x256xf32>
    %69 = vector.shape_cast %68 : vector<1x32x256xf32> to vector<32x256xf32>
    %cst_42 = arith.constant dense<0.000000e+00> : vector<14x256xf32>
    %70 = tpu.matmul %67, %69, %cst_42 {dimension_numbers = #tpu.dot_dimension_numbers<[1], [0], [0], [1], [0, 0, 1, 1], [], []>} : vector<14x32xf32>, vector<32x256xf32>, vector<14x256xf32> -> vector<14x256xf32>
    %71 = arith.addf %65, %70 : vector<14x256xf32>
    %72 = vector.broadcast %2 : vector<1x256xf32> to vector<14x256xf32>
    %73 = arith.addf %71, %72 : vector<14x256xf32>
    %74 = arith.negf %73 : vector<14x256xf32>
    %75 = math.exp %74 : vector<14x256xf32>
    %cst_43 = arith.constant 1.000000e+00 : f32
    %76 = vector.broadcast %cst_43 : f32 to vector<14x256xf32>
    %77 = arith.addf %76, %75 : vector<14x256xf32>
    %78 = arith.divf %76, %77 : vector<14x256xf32>
    %79 = vector.extract_strided_slice %78 {offsets = [0, 0], sizes = [14, 112], strides = [1, 1]} : vector<14x256xf32> to vector<14x112xf32>
    %80 = vector.extract_strided_slice %78 {offsets = [0, 128], sizes = [14, 112], strides = [1, 1]} : vector<14x256xf32> to vector<14x112xf32>
    %81 = arith.addf %79, %80 : vector<14x112xf32>
    %82 = arith.addf %42, %81 : vector<14x112xf32>
    %cst_44 = arith.constant 2.500000e-01 : f32
    %83 = vector.broadcast %cst_44 : f32 to vector<14x112xf32>
    %84 = arith.mulf %83, %82 : vector<14x112xf32>
    %85 = vector.extract_strided_slice %1 {offsets = [2, 0, 0], sizes = [1, 14, 32], strides = [1, 1, 1]} : vector<4x16x32xf32> to vector<1x14x32xf32>
    %86 = vector.shape_cast %85 : vector<1x14x32xf32> to vector<14x32xf32>
    %c0_45 = arith.constant 0 : index
    %c0_46 = arith.constant 0 : index
    %c0_47 = arith.constant 0 : index
    %87 = vector.load %arg2[%c0_45, %c0_46, %c0_47] : memref<5x32x256xf32, #tpu.memory_space<vmem>>, vector<1x32x256xf32>
    %88 = vector.shape_cast %87 : vector<1x32x256xf32> to vector<32x256xf32>
    %cst_48 = arith.constant dense<0.000000e+00> : vector<14x256xf32>
    %89 = tpu.matmul %86, %88, %cst_48 {dimension_numbers = #tpu.dot_dimension_numbers<[1], [0], [0], [1], [0, 0, 1, 1], [], []>} : vector<14x32xf32>, vector<32x256xf32>, vector<14x256xf32> -> vector<14x256xf32>
    %90 = vector.extract_strided_slice %1 {offsets = [3, 0, 0], sizes = [1, 14, 32], strides = [1, 1, 1]} : vector<4x16x32xf32> to vector<1x14x32xf32>
    %91 = vector.shape_cast %90 : vector<1x14x32xf32> to vector<14x32xf32>
    %c1_49 = arith.constant 1 : index
    %c0_50 = arith.constant 0 : index
    %c0_51 = arith.constant 0 : index
    %92 = vector.load %arg2[%c1_49, %c0_50, %c0_51] : memref<5x32x256xf32, #tpu.memory_space<vmem>>, vector<1x32x256xf32>
    %93 = vector.shape_cast %92 : vector<1x32x256xf32> to vector<32x256xf32>
    %cst_52 = arith.constant dense<0.000000e+00> : vector<14x256xf32>
    %94 = tpu.matmul %91, %93, %cst_52 {dimension_numbers = #tpu.dot_dimension_numbers<[1], [0], [0], [1], [0, 0, 1, 1], [], []>} : vector<14x32xf32>, vector<32x256xf32>, vector<14x256xf32> -> vector<14x256xf32>
    %95 = arith.addf %89, %94 : vector<14x256xf32>
    %96 = vector.extract_strided_slice %1 {offsets = [0, 2, 0], sizes = [1, 14, 32], strides = [1, 1, 1]} : vector<4x16x32xf32> to vector<1x14x32xf32>
    %97 = vector.shape_cast %96 : vector<1x14x32xf32> to vector<14x32xf32>
    %c2_53 = arith.constant 2 : index
    %c0_54 = arith.constant 0 : index
    %c0_55 = arith.constant 0 : index
    %98 = vector.load %arg2[%c2_53, %c0_54, %c0_55] : memref<5x32x256xf32, #tpu.memory_space<vmem>>, vector<1x32x256xf32>
    %99 = vector.shape_cast %98 : vector<1x32x256xf32> to vector<32x256xf32>
    %cst_56 = arith.constant dense<0.000000e+00> : vector<14x256xf32>
    %100 = tpu.matmul %97, %99, %cst_56 {dimension_numbers = #tpu.dot_dimension_numbers<[1], [0], [0], [1], [0, 0, 1, 1], [], []>} : vector<14x32xf32>, vector<32x256xf32>, vector<14x256xf32> -> vector<14x256xf32>
    %101 = arith.addf %95, %100 : vector<14x256xf32>
    %102 = vector.extract_strided_slice %1 {offsets = [1, 2, 0], sizes = [1, 14, 32], strides = [1, 1, 1]} : vector<4x16x32xf32> to vector<1x14x32xf32>
    %103 = vector.shape_cast %102 : vector<1x14x32xf32> to vector<14x32xf32>
    %c3_57 = arith.constant 3 : index
    %c0_58 = arith.constant 0 : index
    %c0_59 = arith.constant 0 : index
    %104 = vector.load %arg2[%c3_57, %c0_58, %c0_59] : memref<5x32x256xf32, #tpu.memory_space<vmem>>, vector<1x32x256xf32>
    %105 = vector.shape_cast %104 : vector<1x32x256xf32> to vector<32x256xf32>
    %cst_60 = arith.constant dense<0.000000e+00> : vector<14x256xf32>
    %106 = tpu.matmul %103, %105, %cst_60 {dimension_numbers = #tpu.dot_dimension_numbers<[1], [0], [0], [1], [0, 0, 1, 1], [], []>} : vector<14x32xf32>, vector<32x256xf32>, vector<14x256xf32> -> vector<14x256xf32>
    %107 = arith.addf %101, %106 : vector<14x256xf32>
    %108 = vector.extract_strided_slice %1 {offsets = [2, 2, 0], sizes = [1, 14, 32], strides = [1, 1, 1]} : vector<4x16x32xf32> to vector<1x14x32xf32>
    %109 = vector.shape_cast %108 : vector<1x14x32xf32> to vector<14x32xf32>
    %c4_61 = arith.constant 4 : index
    %c0_62 = arith.constant 0 : index
    %c0_63 = arith.constant 0 : index
    %110 = vector.load %arg2[%c4_61, %c0_62, %c0_63] : memref<5x32x256xf32, #tpu.memory_space<vmem>>, vector<1x32x256xf32>
    %111 = vector.shape_cast %110 : vector<1x32x256xf32> to vector<32x256xf32>
    %cst_64 = arith.constant dense<0.000000e+00> : vector<14x256xf32>
    %112 = tpu.matmul %109, %111, %cst_64 {dimension_numbers = #tpu.dot_dimension_numbers<[1], [0], [0], [1], [0, 0, 1, 1], [], []>} : vector<14x32xf32>, vector<32x256xf32>, vector<14x256xf32> -> vector<14x256xf32>
    %113 = arith.addf %107, %112 : vector<14x256xf32>
    %114 = vector.broadcast %2 : vector<1x256xf32> to vector<14x256xf32>
    %115 = arith.addf %113, %114 : vector<14x256xf32>
    %116 = arith.negf %115 : vector<14x256xf32>
    %117 = math.exp %116 : vector<14x256xf32>
    %cst_65 = arith.constant 1.000000e+00 : f32
    %118 = vector.broadcast %cst_65 : f32 to vector<14x256xf32>
    %119 = arith.addf %118, %117 : vector<14x256xf32>
    %120 = arith.divf %118, %119 : vector<14x256xf32>
    %121 = vector.extract_strided_slice %120 {offsets = [0, 0], sizes = [14, 112], strides = [1, 1]} : vector<14x256xf32> to vector<14x112xf32>
    %122 = vector.extract_strided_slice %120 {offsets = [0, 128], sizes = [14, 112], strides = [1, 1]} : vector<14x256xf32> to vector<14x112xf32>
    %123 = arith.addf %121, %122 : vector<14x112xf32>
    %124 = vector.extract_strided_slice %1 {offsets = [3, 0, 0], sizes = [1, 14, 32], strides = [1, 1, 1]} : vector<4x16x32xf32> to vector<1x14x32xf32>
    %125 = vector.shape_cast %124 : vector<1x14x32xf32> to vector<14x32xf32>
    %c0_66 = arith.constant 0 : index
    %c0_67 = arith.constant 0 : index
    %c0_68 = arith.constant 0 : index
    %126 = vector.load %arg2[%c0_66, %c0_67, %c0_68] : memref<5x32x256xf32, #tpu.memory_space<vmem>>, vector<1x32x256xf32>
    %127 = vector.shape_cast %126 : vector<1x32x256xf32> to vector<32x256xf32>
    %cst_69 = arith.constant dense<0.000000e+00> : vector<14x256xf32>
    %128 = tpu.matmul %125, %127, %cst_69 {dimension_numbers = #tpu.dot_dimension_numbers<[1], [0], [0], [1], [0, 0, 1, 1], [], []>} : vector<14x32xf32>, vector<32x256xf32>, vector<14x256xf32> -> vector<14x256xf32>
    %129 = vector.extract_strided_slice %1 {offsets = [0, 2, 0], sizes = [1, 14, 32], strides = [1, 1, 1]} : vector<4x16x32xf32> to vector<1x14x32xf32>
    %130 = vector.shape_cast %129 : vector<1x14x32xf32> to vector<14x32xf32>
    %c1_70 = arith.constant 1 : index
    %c0_71 = arith.constant 0 : index
    %c0_72 = arith.constant 0 : index
    %131 = vector.load %arg2[%c1_70, %c0_71, %c0_72] : memref<5x32x256xf32, #tpu.memory_space<vmem>>, vector<1x32x256xf32>
    %132 = vector.shape_cast %131 : vector<1x32x256xf32> to vector<32x256xf32>
    %cst_73 = arith.constant dense<0.000000e+00> : vector<14x256xf32>
    %133 = tpu.matmul %130, %132, %cst_73 {dimension_numbers = #tpu.dot_dimension_numbers<[1], [0], [0], [1], [0, 0, 1, 1], [], []>} : vector<14x32xf32>, vector<32x256xf32>, vector<14x256xf32> -> vector<14x256xf32>
    %134 = arith.addf %128, %133 : vector<14x256xf32>
    %135 = vector.extract_strided_slice %1 {offsets = [1, 2, 0], sizes = [1, 14, 32], strides = [1, 1, 1]} : vector<4x16x32xf32> to vector<1x14x32xf32>
    %136 = vector.shape_cast %135 : vector<1x14x32xf32> to vector<14x32xf32>
    %c2_74 = arith.constant 2 : index
    %c0_75 = arith.constant 0 : index
    %c0_76 = arith.constant 0 : index
    %137 = vector.load %arg2[%c2_74, %c0_75, %c0_76] : memref<5x32x256xf32, #tpu.memory_space<vmem>>, vector<1x32x256xf32>
    %138 = vector.shape_cast %137 : vector<1x32x256xf32> to vector<32x256xf32>
    %cst_77 = arith.constant dense<0.000000e+00> : vector<14x256xf32>
    %139 = tpu.matmul %136, %138, %cst_77 {dimension_numbers = #tpu.dot_dimension_numbers<[1], [0], [0], [1], [0, 0, 1, 1], [], []>} : vector<14x32xf32>, vector<32x256xf32>, vector<14x256xf32> -> vector<14x256xf32>
    %140 = arith.addf %134, %139 : vector<14x256xf32>
    %141 = vector.extract_strided_slice %1 {offsets = [2, 2, 0], sizes = [1, 14, 32], strides = [1, 1, 1]} : vector<4x16x32xf32> to vector<1x14x32xf32>
    %142 = vector.shape_cast %141 : vector<1x14x32xf32> to vector<14x32xf32>
    %c3_78 = arith.constant 3 : index
    %c0_79 = arith.constant 0 : index
    %c0_80 = arith.constant 0 : index
    %143 = vector.load %arg2[%c3_78, %c0_79, %c0_80] : memref<5x32x256xf32, #tpu.memory_space<vmem>>, vector<1x32x256xf32>
    %144 = vector.shape_cast %143 : vector<1x32x256xf32> to vector<32x256xf32>
    %cst_81 = arith.constant dense<0.000000e+00> : vector<14x256xf32>
    %145 = tpu.matmul %142, %144, %cst_81 {dimension_numbers = #tpu.dot_dimension_numbers<[1], [0], [0], [1], [0, 0, 1, 1], [], []>} : vector<14x32xf32>, vector<32x256xf32>, vector<14x256xf32> -> vector<14x256xf32>
    %146 = arith.addf %140, %145 : vector<14x256xf32>
    %147 = vector.extract_strided_slice %1 {offsets = [3, 2, 0], sizes = [1, 14, 32], strides = [1, 1, 1]} : vector<4x16x32xf32> to vector<1x14x32xf32>
    %148 = vector.shape_cast %147 : vector<1x14x32xf32> to vector<14x32xf32>
    %c4_82 = arith.constant 4 : index
    %c0_83 = arith.constant 0 : index
    %c0_84 = arith.constant 0 : index
    %149 = vector.load %arg2[%c4_82, %c0_83, %c0_84] : memref<5x32x256xf32, #tpu.memory_space<vmem>>, vector<1x32x256xf32>
    %150 = vector.shape_cast %149 : vector<1x32x256xf32> to vector<32x256xf32>
    %cst_85 = arith.constant dense<0.000000e+00> : vector<14x256xf32>
    %151 = tpu.matmul %148, %150, %cst_85 {dimension_numbers = #tpu.dot_dimension_numbers<[1], [0], [0], [1], [0, 0, 1, 1], [], []>} : vector<14x32xf32>, vector<32x256xf32>, vector<14x256xf32> -> vector<14x256xf32>
    %152 = arith.addf %146, %151 : vector<14x256xf32>
    %153 = vector.broadcast %2 : vector<1x256xf32> to vector<14x256xf32>
    %154 = arith.addf %152, %153 : vector<14x256xf32>
    %155 = arith.negf %154 : vector<14x256xf32>
    %156 = math.exp %155 : vector<14x256xf32>
    %cst_86 = arith.constant 1.000000e+00 : f32
    %157 = vector.broadcast %cst_86 : f32 to vector<14x256xf32>
    %158 = arith.addf %157, %156 : vector<14x256xf32>
    %159 = arith.divf %157, %158 : vector<14x256xf32>
    %160 = vector.extract_strided_slice %159 {offsets = [0, 0], sizes = [14, 112], strides = [1, 1]} : vector<14x256xf32> to vector<14x112xf32>
    %161 = vector.extract_strided_slice %159 {offsets = [0, 128], sizes = [14, 112], strides = [1, 1]} : vector<14x256xf32> to vector<14x112xf32>
    %162 = arith.addf %160, %161 : vector<14x112xf32>
    %163 = arith.addf %123, %162 : vector<14x112xf32>
    %cst_87 = arith.constant 2.500000e-01 : f32
    %164 = vector.broadcast %cst_87 : f32 to vector<14x112xf32>
    %165 = arith.mulf %164, %163 : vector<14x112xf32>
    %166 = vector.extract_strided_slice %84 {offsets = [0, 0], sizes = [10, 112], strides = [1, 1]} : vector<14x112xf32> to vector<10x112xf32>
    %c0_88 = arith.constant 0 : index
    %c0_89 = arith.constant 0 : index
    %c0_90 = arith.constant 0 : index
    %167 = vector.load %arg4[%c0_88, %c0_89, %c0_90] : memref<5x112x256xf32, #tpu.memory_space<vmem>>, vector<1x112x256xf32>
    %168 = vector.shape_cast %167 : vector<1x112x256xf32> to vector<112x256xf32>
    %cst_91 = arith.constant dense<0.000000e+00> : vector<10x256xf32>
    %169 = tpu.matmul %166, %168, %cst_91 {dimension_numbers = #tpu.dot_dimension_numbers<[1], [0], [0], [1], [0, 0, 1, 1], [], []>} : vector<10x112xf32>, vector<112x256xf32>, vector<10x256xf32> -> vector<10x256xf32>
    %170 = vector.extract_strided_slice %165 {offsets = [0, 0], sizes = [10, 112], strides = [1, 1]} : vector<14x112xf32> to vector<10x112xf32>
    %c1_92 = arith.constant 1 : index
    %c0_93 = arith.constant 0 : index
    %c0_94 = arith.constant 0 : index
    %171 = vector.load %arg4[%c1_92, %c0_93, %c0_94] : memref<5x112x256xf32, #tpu.memory_space<vmem>>, vector<1x112x256xf32>
    %172 = vector.shape_cast %171 : vector<1x112x256xf32> to vector<112x256xf32>
    %cst_95 = arith.constant dense<0.000000e+00> : vector<10x256xf32>
    %173 = tpu.matmul %170, %172, %cst_95 {dimension_numbers = #tpu.dot_dimension_numbers<[1], [0], [0], [1], [0, 0, 1, 1], [], []>} : vector<10x112xf32>, vector<112x256xf32>, vector<10x256xf32> -> vector<10x256xf32>
    %174 = arith.addf %169, %173 : vector<10x256xf32>
    %175 = vector.extract_strided_slice %84 {offsets = [2, 0], sizes = [10, 112], strides = [1, 1]} : vector<14x112xf32> to vector<10x112xf32>
    %c2_96 = arith.constant 2 : index
    %c0_97 = arith.constant 0 : index
    %c0_98 = arith.constant 0 : index
    %176 = vector.load %arg4[%c2_96, %c0_97, %c0_98] : memref<5x112x256xf32, #tpu.memory_space<vmem>>, vector<1x112x256xf32>
    %177 = vector.shape_cast %176 : vector<1x112x256xf32> to vector<112x256xf32>
    %cst_99 = arith.constant dense<0.000000e+00> : vector<10x256xf32>
    %178 = tpu.matmul %175, %177, %cst_99 {dimension_numbers = #tpu.dot_dimension_numbers<[1], [0], [0], [1], [0, 0, 1, 1], [], []>} : vector<10x112xf32>, vector<112x256xf32>, vector<10x256xf32> -> vector<10x256xf32>
    %179 = arith.addf %174, %178 : vector<10x256xf32>
    %180 = vector.extract_strided_slice %165 {offsets = [2, 0], sizes = [10, 112], strides = [1, 1]} : vector<14x112xf32> to vector<10x112xf32>
    %c3_100 = arith.constant 3 : index
    %c0_101 = arith.constant 0 : index
    %c0_102 = arith.constant 0 : index
    %181 = vector.load %arg4[%c3_100, %c0_101, %c0_102] : memref<5x112x256xf32, #tpu.memory_space<vmem>>, vector<1x112x256xf32>
    %182 = vector.shape_cast %181 : vector<1x112x256xf32> to vector<112x256xf32>
    %cst_103 = arith.constant dense<0.000000e+00> : vector<10x256xf32>
    %183 = tpu.matmul %180, %182, %cst_103 {dimension_numbers = #tpu.dot_dimension_numbers<[1], [0], [0], [1], [0, 0, 1, 1], [], []>} : vector<10x112xf32>, vector<112x256xf32>, vector<10x256xf32> -> vector<10x256xf32>
    %184 = arith.addf %179, %183 : vector<10x256xf32>
    %185 = vector.extract_strided_slice %84 {offsets = [4, 0], sizes = [10, 112], strides = [1, 1]} : vector<14x112xf32> to vector<10x112xf32>
    %c4_104 = arith.constant 4 : index
    %c0_105 = arith.constant 0 : index
    %c0_106 = arith.constant 0 : index
    %186 = vector.load %arg4[%c4_104, %c0_105, %c0_106] : memref<5x112x256xf32, #tpu.memory_space<vmem>>, vector<1x112x256xf32>
    %187 = vector.shape_cast %186 : vector<1x112x256xf32> to vector<112x256xf32>
    %cst_107 = arith.constant dense<0.000000e+00> : vector<10x256xf32>
    %188 = tpu.matmul %185, %187, %cst_107 {dimension_numbers = #tpu.dot_dimension_numbers<[1], [0], [0], [1], [0, 0, 1, 1], [], []>} : vector<10x112xf32>, vector<112x256xf32>, vector<10x256xf32> -> vector<10x256xf32>
    %189 = arith.addf %184, %188 : vector<10x256xf32>
    %190 = vector.broadcast %3 : vector<1x256xf32> to vector<10x256xf32>
    %191 = arith.addf %189, %190 : vector<10x256xf32>
    %192 = arith.negf %191 : vector<10x256xf32>
    %193 = math.exp %192 : vector<10x256xf32>
    %cst_108 = arith.constant 1.000000e+00 : f32
    %194 = vector.broadcast %cst_108 : f32 to vector<10x256xf32>
    %195 = arith.addf %194, %193 : vector<10x256xf32>
    %196 = arith.divf %194, %195 : vector<10x256xf32>
    %197 = vector.extract_strided_slice %196 {offsets = [0, 0], sizes = [10, 80], strides = [1, 1]} : vector<10x256xf32> to vector<10x80xf32>
    %198 = vector.extract_strided_slice %196 {offsets = [0, 128], sizes = [10, 80], strides = [1, 1]} : vector<10x256xf32> to vector<10x80xf32>
    %199 = arith.addf %197, %198 : vector<10x80xf32>
    %200 = vector.extract_strided_slice %165 {offsets = [0, 0], sizes = [10, 112], strides = [1, 1]} : vector<14x112xf32> to vector<10x112xf32>
    %c0_109 = arith.constant 0 : index
    %c0_110 = arith.constant 0 : index
    %c0_111 = arith.constant 0 : index
    %201 = vector.load %arg4[%c0_109, %c0_110, %c0_111] : memref<5x112x256xf32, #tpu.memory_space<vmem>>, vector<1x112x256xf32>
    %202 = vector.shape_cast %201 : vector<1x112x256xf32> to vector<112x256xf32>
    %cst_112 = arith.constant dense<0.000000e+00> : vector<10x256xf32>
    %203 = tpu.matmul %200, %202, %cst_112 {dimension_numbers = #tpu.dot_dimension_numbers<[1], [0], [0], [1], [0, 0, 1, 1], [], []>} : vector<10x112xf32>, vector<112x256xf32>, vector<10x256xf32> -> vector<10x256xf32>
    %204 = vector.extract_strided_slice %84 {offsets = [2, 0], sizes = [10, 112], strides = [1, 1]} : vector<14x112xf32> to vector<10x112xf32>
    %c1_113 = arith.constant 1 : index
    %c0_114 = arith.constant 0 : index
    %c0_115 = arith.constant 0 : index
    %205 = vector.load %arg4[%c1_113, %c0_114, %c0_115] : memref<5x112x256xf32, #tpu.memory_space<vmem>>, vector<1x112x256xf32>
    %206 = vector.shape_cast %205 : vector<1x112x256xf32> to vector<112x256xf32>
    %cst_116 = arith.constant dense<0.000000e+00> : vector<10x256xf32>
    %207 = tpu.matmul %204, %206, %cst_116 {dimension_numbers = #tpu.dot_dimension_numbers<[1], [0], [0], [1], [0, 0, 1, 1], [], []>} : vector<10x112xf32>, vector<112x256xf32>, vector<10x256xf32> -> vector<10x256xf32>
    %208 = arith.addf %203, %207 : vector<10x256xf32>
    %209 = vector.extract_strided_slice %165 {offsets = [2, 0], sizes = [10, 112], strides = [1, 1]} : vector<14x112xf32> to vector<10x112xf32>
    %c2_117 = arith.constant 2 : index
    %c0_118 = arith.constant 0 : index
    %c0_119 = arith.constant 0 : index
    %210 = vector.load %arg4[%c2_117, %c0_118, %c0_119] : memref<5x112x256xf32, #tpu.memory_space<vmem>>, vector<1x112x256xf32>
    %211 = vector.shape_cast %210 : vector<1x112x256xf32> to vector<112x256xf32>
    %cst_120 = arith.constant dense<0.000000e+00> : vector<10x256xf32>
    %212 = tpu.matmul %209, %211, %cst_120 {dimension_numbers = #tpu.dot_dimension_numbers<[1], [0], [0], [1], [0, 0, 1, 1], [], []>} : vector<10x112xf32>, vector<112x256xf32>, vector<10x256xf32> -> vector<10x256xf32>
    %213 = arith.addf %208, %212 : vector<10x256xf32>
    %214 = vector.extract_strided_slice %84 {offsets = [4, 0], sizes = [10, 112], strides = [1, 1]} : vector<14x112xf32> to vector<10x112xf32>
    %c3_121 = arith.constant 3 : index
    %c0_122 = arith.constant 0 : index
    %c0_123 = arith.constant 0 : index
    %215 = vector.load %arg4[%c3_121, %c0_122, %c0_123] : memref<5x112x256xf32, #tpu.memory_space<vmem>>, vector<1x112x256xf32>
    %216 = vector.shape_cast %215 : vector<1x112x256xf32> to vector<112x256xf32>
    %cst_124 = arith.constant dense<0.000000e+00> : vector<10x256xf32>
    %217 = tpu.matmul %214, %216, %cst_124 {dimension_numbers = #tpu.dot_dimension_numbers<[1], [0], [0], [1], [0, 0, 1, 1], [], []>} : vector<10x112xf32>, vector<112x256xf32>, vector<10x256xf32> -> vector<10x256xf32>
    %218 = arith.addf %213, %217 : vector<10x256xf32>
    %219 = vector.extract_strided_slice %165 {offsets = [4, 0], sizes = [10, 112], strides = [1, 1]} : vector<14x112xf32> to vector<10x112xf32>
    %c4_125 = arith.constant 4 : index
    %c0_126 = arith.constant 0 : index
    %c0_127 = arith.constant 0 : index
    %220 = vector.load %arg4[%c4_125, %c0_126, %c0_127] : memref<5x112x256xf32, #tpu.memory_space<vmem>>, vector<1x112x256xf32>
    %221 = vector.shape_cast %220 : vector<1x112x256xf32> to vector<112x256xf32>
    %cst_128 = arith.constant dense<0.000000e+00> : vector<10x256xf32>
    %222 = tpu.matmul %219, %221, %cst_128 {dimension_numbers = #tpu.dot_dimension_numbers<[1], [0], [0], [1], [0, 0, 1, 1], [], []>} : vector<10x112xf32>, vector<112x256xf32>, vector<10x256xf32> -> vector<10x256xf32>
    %223 = arith.addf %218, %222 : vector<10x256xf32>
    %224 = vector.broadcast %3 : vector<1x256xf32> to vector<10x256xf32>
    %225 = arith.addf %223, %224 : vector<10x256xf32>
    %226 = arith.negf %225 : vector<10x256xf32>
    %227 = math.exp %226 : vector<10x256xf32>
    %cst_129 = arith.constant 1.000000e+00 : f32
    %228 = vector.broadcast %cst_129 : f32 to vector<10x256xf32>
    %229 = arith.addf %228, %227 : vector<10x256xf32>
    %230 = arith.divf %228, %229 : vector<10x256xf32>
    %231 = vector.extract_strided_slice %230 {offsets = [0, 0], sizes = [10, 80], strides = [1, 1]} : vector<10x256xf32> to vector<10x80xf32>
    %232 = vector.extract_strided_slice %230 {offsets = [0, 128], sizes = [10, 80], strides = [1, 1]} : vector<10x256xf32> to vector<10x80xf32>
    %233 = arith.addf %231, %232 : vector<10x80xf32>
    %234 = arith.addf %199, %233 : vector<10x80xf32>
    %cst_130 = arith.constant 2.500000e-01 : f32
    %235 = vector.broadcast %cst_130 : f32 to vector<10x80xf32>
    %236 = arith.mulf %235, %234 : vector<10x80xf32>
    %c0_131 = arith.constant 0 : index
    %c0_132 = arith.constant 0 : index
    %237 = vector.load %arg6[%c0_131, %c0_132] : memref<400x128xf32, #tpu.memory_space<vmem>>, vector<400x128xf32>
    %238 = vector.extract_strided_slice %236 {offsets = [0, 0], sizes = [2, 80], strides = [1, 1]} : vector<10x80xf32> to vector<2x80xf32>
    %239 = vector.extract_strided_slice %237 {offsets = [0, 0], sizes = [80, 128], strides = [1, 1]} : vector<400x128xf32> to vector<80x128xf32>
    %cst_133 = arith.constant dense<0.000000e+00> : vector<2x128xf32>
    %240 = tpu.matmul %238, %239, %cst_133 {dimension_numbers = #tpu.dot_dimension_numbers<[1], [0], [0], [1], [0, 0, 1, 1], [], []>} : vector<2x80xf32>, vector<80x128xf32>, vector<2x128xf32> -> vector<2x128xf32>
    %241 = vector.extract_strided_slice %236 {offsets = [2, 0], sizes = [2, 80], strides = [1, 1]} : vector<10x80xf32> to vector<2x80xf32>
    %242 = vector.extract_strided_slice %237 {offsets = [80, 0], sizes = [80, 128], strides = [1, 1]} : vector<400x128xf32> to vector<80x128xf32>
    %cst_134 = arith.constant dense<0.000000e+00> : vector<2x128xf32>
    %243 = tpu.matmul %241, %242, %cst_134 {dimension_numbers = #tpu.dot_dimension_numbers<[1], [0], [0], [1], [0, 0, 1, 1], [], []>} : vector<2x80xf32>, vector<80x128xf32>, vector<2x128xf32> -> vector<2x128xf32>
    %244 = arith.addf %240, %243 : vector<2x128xf32>
    %245 = vector.extract_strided_slice %236 {offsets = [4, 0], sizes = [2, 80], strides = [1, 1]} : vector<10x80xf32> to vector<2x80xf32>
    %246 = vector.extract_strided_slice %237 {offsets = [160, 0], sizes = [80, 128], strides = [1, 1]} : vector<400x128xf32> to vector<80x128xf32>
    %cst_135 = arith.constant dense<0.000000e+00> : vector<2x128xf32>
    %247 = tpu.matmul %245, %246, %cst_135 {dimension_numbers = #tpu.dot_dimension_numbers<[1], [0], [0], [1], [0, 0, 1, 1], [], []>} : vector<2x80xf32>, vector<80x128xf32>, vector<2x128xf32> -> vector<2x128xf32>
    %248 = arith.addf %244, %247 : vector<2x128xf32>
    %249 = vector.extract_strided_slice %236 {offsets = [6, 0], sizes = [2, 80], strides = [1, 1]} : vector<10x80xf32> to vector<2x80xf32>
    %250 = vector.extract_strided_slice %237 {offsets = [240, 0], sizes = [80, 128], strides = [1, 1]} : vector<400x128xf32> to vector<80x128xf32>
    %cst_136 = arith.constant dense<0.000000e+00> : vector<2x128xf32>
    %251 = tpu.matmul %249, %250, %cst_136 {dimension_numbers = #tpu.dot_dimension_numbers<[1], [0], [0], [1], [0, 0, 1, 1], [], []>} : vector<2x80xf32>, vector<80x128xf32>, vector<2x128xf32> -> vector<2x128xf32>
    %252 = arith.addf %248, %251 : vector<2x128xf32>
    %253 = vector.extract_strided_slice %236 {offsets = [8, 0], sizes = [2, 80], strides = [1, 1]} : vector<10x80xf32> to vector<2x80xf32>
    %254 = vector.extract_strided_slice %237 {offsets = [320, 0], sizes = [80, 128], strides = [1, 1]} : vector<400x128xf32> to vector<80x128xf32>
    %cst_137 = arith.constant dense<0.000000e+00> : vector<2x128xf32>
    %255 = tpu.matmul %253, %254, %cst_137 {dimension_numbers = #tpu.dot_dimension_numbers<[1], [0], [0], [1], [0, 0, 1, 1], [], []>} : vector<2x80xf32>, vector<80x128xf32>, vector<2x128xf32> -> vector<2x128xf32>
    %256 = arith.addf %252, %255 : vector<2x128xf32>
    %c0_138 = arith.constant 0 : index
    %c0_139 = arith.constant 0 : index
    %257 = vector.load %arg7[%c0_138, %c0_139] : memref<1x128xf32, #tpu.memory_space<vmem>>, vector<1x128xf32>
    %258 = vector.broadcast %257 : vector<1x128xf32> to vector<2x128xf32>
    %259 = arith.addf %256, %258 : vector<2x128xf32>
    %260 = arith.negf %259 : vector<2x128xf32>
    %261 = math.exp %260 : vector<2x128xf32>
    %cst_140 = arith.constant 1.000000e+00 : f32
    %262 = vector.broadcast %cst_140 : f32 to vector<2x128xf32>
    %263 = arith.addf %262, %261 : vector<2x128xf32>
    %264 = arith.divf %262, %263 : vector<2x128xf32>
    %c0_141 = arith.constant 0 : index
    %c0_142 = arith.constant 0 : index
    %265 = vector.load %arg8[%c0_141, %c0_142] : memref<128x128xf32, #tpu.memory_space<vmem>>, vector<128x128xf32>
    %cst_143 = arith.constant dense<0.000000e+00> : vector<2x128xf32>
    %266 = tpu.matmul %264, %265, %cst_143 {dimension_numbers = #tpu.dot_dimension_numbers<[1], [0], [0], [1], [0, 0, 1, 1], [], []>} : vector<2x128xf32>, vector<128x128xf32>, vector<2x128xf32> -> vector<2x128xf32>
    %c0_144 = arith.constant 0 : index
    %c0_145 = arith.constant 0 : index
    %267 = vector.load %arg9[%c0_144, %c0_145] : memref<1x128xf32, #tpu.memory_space<vmem>>, vector<1x128xf32>
    %268 = vector.broadcast %267 : vector<1x128xf32> to vector<2x128xf32>
    %269 = arith.addf %266, %268 : vector<2x128xf32>
    %270 = arith.negf %269 : vector<2x128xf32>
    %271 = math.exp %270 : vector<2x128xf32>
    %cst_146 = arith.constant 1.000000e+00 : f32
    %272 = vector.broadcast %cst_146 : f32 to vector<2x128xf32>
    %273 = arith.addf %272, %271 : vector<2x128xf32>
    %274 = arith.divf %272, %273 : vector<2x128xf32>
    %c0_147 = arith.constant 0 : index
    %c0_148 = arith.constant 0 : index
    %275 = vector.load %arg10[%c0_147, %c0_148] : memref<128x10xf32, #tpu.memory_space<vmem>>, vector<128x10xf32>
    %cst_149 = arith.constant dense<0.000000e+00> : vector<2x10xf32>
    %276 = tpu.matmul %274, %275, %cst_149 {dimension_numbers = #tpu.dot_dimension_numbers<[1], [0], [0], [1], [0, 0, 1, 1], [], []>} : vector<2x128xf32>, vector<128x10xf32>, vector<2x10xf32> -> vector<2x10xf32>
    %c0_150 = arith.constant 0 : index
    %c0_151 = arith.constant 0 : index
    %277 = vector.load %arg11[%c0_150, %c0_151] : memref<1x10xf32, #tpu.memory_space<vmem>>, vector<1x10xf32>
    %278 = vector.broadcast %277 : vector<1x10xf32> to vector<2x10xf32>
    %279 = arith.addf %276, %278 : vector<2x10xf32>
    %c0_152 = arith.constant 0 : index
    %c0_153 = arith.constant 0 : index
    %280 = vector.load %arg12[%c0_152, %c0_153] : memref<2x10xf32, #tpu.memory_space<vmem>>, vector<2x10xf32>
    tpu.vector_store %arg12[%c0_152, %c0_153], %279 {strides = array<i32>} : memref<2x10xf32, #tpu.memory_space<vmem>>, vector<2x10xf32>,
    return
  }
  func.func @transform_0(%arg0: i32) -> (i32, i32, i32, i32) {
    %c0_i32 = arith.constant 0 : i32
    %c0_i32_0 = arith.constant 0 : i32
    %c0_i32_1 = arith.constant 0 : i32
    %c0_i32_2 = arith.constant 0 : i32
    return %arg0, %c0_i32, %c0_i32_0, %c0_i32_1 : i32, i32, i32, i32
  }
  func.func @transform_1(%arg0: i32) -> (i32, i32, i32) {
    %c0_i32 = arith.constant 0 : i32
    %c0_i32_0 = arith.constant 0 : i32
    %c0_i32_1 = arith.constant 0 : i32
    %c0_i32_2 = arith.constant 0 : i32
    return %c0_i32, %c0_i32_0, %c0_i32_1 : i32, i32, i32
  }
  func.func @transform_2(%arg0: i32) -> (i32, i32) {
    %c0_i32 = arith.constant 0 : i32
    %c0_i32_0 = arith.constant 0 : i32
    %c0_i32_1 = arith.constant 0 : i32
    return %c0_i32, %c0_i32_0 : i32, i32
  }
  func.func @transform_3(%arg0: i32) -> (i32, i32, i32) {
    %c0_i32 = arith.constant 0 : i32
    %c0_i32_0 = arith.constant 0 : i32
    %c0_i32_1 = arith.constant 0 : i32
    %c0_i32_2 = arith.constant 0 : i32
    return %c0_i32, %c0_i32_0, %c0_i32_1 : i32, i32, i32
  }
  func.func @transform_4(%arg0: i32) -> (i32, i32) {
    %c0_i32 = arith.constant 0 : i32
    %c0_i32_0 = arith.constant 0 : i32
    %c0_i32_1 = arith.constant 0 : i32
    return %c0_i32, %c0_i32_0 : i32, i32
  }
  func.func @transform_5(%arg0: i32) -> (i32, i32) {
    %c0_i32 = arith.constant 0 : i32
    %c0_i32_0 = arith.constant 0 : i32
    %c0_i32_1 = arith.constant 0 : i32
    return %c0_i32, %c0_i32_0 : i32, i32
  }
  func.func @transform_6(%arg0: i32) -> (i32, i32) {
    %c0_i32 = arith.constant 0 : i32
    %c0_i32_0 = arith.constant 0 : i32
    %c0_i32_1 = arith.constant 0 : i32
    return %c0_i32, %c0_i32_0 : i32, i32
  }
  func.func @transform_7(%arg0: i32) -> (i32, i32) {
    %c0_i32 = arith.constant 0 : i32
    %c0_i32_0 = arith.constant 0 : i32
    %c0_i32_1 = arith.constant 0 : i32
    return %c0_i32, %c0_i32_0 : i32, i32
  }
  func.func @transform_8(%arg0: i32) -> (i32, i32) {
    %c0_i32 = arith.constant 0 : i32
    %c0_i32_0 = arith.constant 0 : i32
    %c0_i32_1 = arith.constant 0 : i32
    return %c0_i32, %c0_i32_0 : i32, i32
  }
  func.func @transform_9(%arg0: i32) -> (i32, i32) {
    %c0_i32 = arith.constant 0 : i32
    %c0_i32_0 = arith.constant 0 : i32
    %c0_i32_1 = arith.constant 0 : i32
    return %c0_i32, %c0_i32_0 : i32, i32
  }
  func.func @transform_10(%arg0: i32) -> (i32, i32) {
    %c0_i32 = arith.constant 0 : i32
    %c0_i32_0 = arith.constant 0 : i32
    %c0_i32_1 = arith.constant 0 : i32
    return %c0_i32, %c0_i32_0 : i32, i32
  }
  func.func @transform_11(%arg0: i32) -> (i32, i32) {
    %c0_i32 = arith.constant 0 : i32
    %c0_i32_0 = arith.constant 0 : i32
    return %arg0, %c0_i32 : i32, i32
  }
}

</mosaic_0001>

<llo_original>
// kernel: lenet_forward.1
$region0: #{lenet_forward.1}
  #allocation0 [shape = 'u32[]', space=smem, size = 0x4, offset = 0x4, fixed_abs, tag = 'smem constant byte address 0x4 - core index']
  #allocation1 [shape = 'u32[144,128]{1,0:T(1,128)}', space=vmem, size = 0x12000, scoped, tag = 'internal scratch']
  %s0 = inlined_call_operand.vmem [shape: f32[1,4,16,32], index: 0, kind: input, shape index: {}]
  %s1 = inlined_call_operand.hbm [shape: f32[5,32,256], index: 1, kind: input, shape index: {}]
  %s2 = inlined_call_operand.vmem [shape: f32[1,256], index: 2, kind: input, shape index: {}]
  %s3 = inlined_call_operand.hbm [shape: f32[5,112,256], index: 3, kind: input, shape index: {}]
  %s4 = inlined_call_operand.vmem [shape: f32[1,256], index: 4, kind: input, shape index: {}]
  %s5 = inlined_call_operand.vmem [shape: f32[400,128], index: 5, kind: input, shape index: {}]
  %s6 = inlined_call_operand.vmem [shape: f32[1,128], index: 6, kind: input, shape index: {}]
  %s7 = inlined_call_operand.vmem [shape: f32[128,128], index: 7, kind: input, shape index: {}]
  %s8 = inlined_call_operand.vmem [shape: f32[1,128], index: 8, kind: input, shape index: {}]
  %s9 = inlined_call_operand.vmem [shape: f32[128,10], index: 9, kind: input, shape index: {}]
  %s10 = inlined_call_operand.hbm [shape: f32[1,10], index: 10, kind: input, shape index: {}]
  %s11 = inlined_call_operand.hbm [shape: f32[2,10], index: 11, kind: output, shape index: {}]
  %s12 = sld [smem:[#allocation0]]
  $region66: #{lenet_forward.1} parent=0
    _
  %s14 = ssub.s32 1, %s12
  %s15 = scalar_select 0, %s14, %s12
  $region1: #{lenet_forward.1} parent=0
    #allocation2 [shape = 'u8[163840]{0}', space=vmem, size = 0x28000, scoped, tag = 'input window, operand 1, single buffered']
    #allocation3 [shape = 's32[1]{0}', space=sflag, size = 0x4, scoped, tag = 'scoped memory for lenet_forward.1']
    #allocation4 [shape = 's32[1]{0}', space=sflag, size = 0x4, scoped, tag = 'scoped memory for lenet_forward.1']
    #allocation5 [shape = 'u8[573440]{0}', space=vmem, size = 0x8c000, scoped, tag = 'input window, operand 3, single buffered']
    #allocation6 [shape = 's32[1]{0}', space=sflag, size = 0x4, scoped, tag = 'scoped memory for lenet_forward.1']
    #allocation7 [shape = 'u8[512]{0}', space=vmem, size = 0x400, scoped, tag = 'input window, operand 10, single buffered']
    #allocation8 [shape = 'u8[1024]{0}', space=vmem, size = 0x400, scoped, tag = 'output window, operand 0, single buffered']
    %16 = vsyncpa [#allocation3], 0
    %17 = vsyncpa [#allocation6], 0
    %18 = vsyncpa [#allocation4], 0
    // Predicated region
    $region2: #{lenet_forward.1} parent=1 // pred_check
      _
    $region3: #{lenet_forward.1} parent=1 // pred_check_branch
      %20 = sbr.rel (0) target = $region5
    $region4: #{lenet_forward.1} parent=1 // pred_region
      _
    $region5: #{lenet_forward.1} parent=1 // pred_fallthru
      _
    // Predicated region
    $region6: #{lenet_forward.1} parent=1 // pred_check
      _
    $region7: #{lenet_forward.1} parent=1 // pred_check_branch
      %22 = sbr.rel (0) target = $region9
    $region8: #{lenet_forward.1} parent=1 // pred_region
      %s24 = ssub.s32 5120, 5120
      %25 = vsyncadd [#allocation3], %s24
      %s26 = sshll.u32 [#allocation2], 4
      %s27 = int_to_ptr.vmem [resolvable:$true] %s26
      %32 = dma.hbm_to_vmem [thread:$0]  %s1, 5120, %s27, [#allocation3], 256, 256, 16
    $region9: #{lenet_forward.1} parent=1 // pred_fallthru
      _
    // Predicated region
    $region10: #{lenet_forward.1} parent=1 // pred_check
      _
    $region11: #{lenet_forward.1} parent=1 // pred_check_branch
      %34 = sbr.rel (0) target = $region13
    $region12: #{lenet_forward.1} parent=1 // pred_region
      _
    $region13: #{lenet_forward.1} parent=1 // pred_fallthru
      _
    // Predicated region
    $region14: #{lenet_forward.1} parent=1 // pred_check
      _
    $region15: #{lenet_forward.1} parent=1 // pred_check_branch
      %36 = sbr.rel (0) target = $region17
    $region16: #{lenet_forward.1} parent=1 // pred_region
      %s38 = ssub.s32 17920, 17920
      %39 = vsyncadd [#allocation6], %s38
      %s40 = sshll.u32 [#allocation5], 4
      %s41 = int_to_ptr.vmem [resolvable:$true] %s40
      %46 = dma.hbm_to_vmem [thread:$0]  %s3, 17920, %s41, [#allocation6], 256, 256, 16
    $region17: #{lenet_forward.1} parent=1 // pred_fallthru
      _
    // Predicated region
    $region18: #{lenet_forward.1} parent=1 // pred_check
      _
    $region19: #{lenet_forward.1} parent=1 // pred_check_branch
      %48 = sbr.rel (0) target = $region21
    $region20: #{lenet_forward.1} parent=1 // pred_region
      _
    $region21: #{lenet_forward.1} parent=1 // pred_fallthru
      _
    // Predicated region
    $region22: #{lenet_forward.1} parent=1 // pred_check
      _
    $region23: #{lenet_forward.1} parent=1 // pred_check_branch
      %50 = sbr.rel (0) target = $region25
    $region24: #{lenet_forward.1} parent=1 // pred_region
      _
    $region25: #{lenet_forward.1} parent=1 // pred_fallthru
      _
    // Predicated region
    $region26: #{lenet_forward.1} parent=1 // pred_check
      _
    $region27: #{lenet_forward.1} parent=1 // pred_check_branch
      %52 = sbr.rel (0) target = $region29
    $region28: #{lenet_forward.1} parent=1 // pred_region
      _
    $region29: #{lenet_forward.1} parent=1 // pred_fallthru
      _
    // Predicated region
    $region30: #{lenet_forward.1} parent=1 // pred_check
      _
    $region31: #{lenet_forward.1} parent=1 // pred_check_branch
      %54 = sbr.rel (0) target = $region33
    $region32: #{lenet_forward.1} parent=1 // pred_region
      _
    $region33: #{lenet_forward.1} parent=1 // pred_fallthru
      _
    // Predicated region
    $region34: #{lenet_forward.1} parent=1 // pred_check
      _
    $region35: #{lenet_forward.1} parent=1 // pred_check_branch
      %56 = sbr.rel (0) target = $region37
    $region36: #{lenet_forward.1} parent=1 // pred_region
      _
    $region37: #{lenet_forward.1} parent=1 // pred_fallthru
      _
    // Predicated region
    $region38: #{lenet_forward.1} parent=1 // pred_check
      _
    $region39: #{lenet_forward.1} parent=1 // pred_check_branch
      %58 = sbr.rel (0) target = $region41
    $region40: #{lenet_forward.1} parent=1 // pred_region
      _
    $region41: #{lenet_forward.1} parent=1 // pred_fallthru
      _
    // Predicated region
    $region42: #{lenet_forward.1} parent=1 // pred_check
      _
    $region43: #{lenet_forward.1} parent=1 // pred_check_branch
      %60 = sbr.rel (0) target = $region45
    $region44: #{lenet_forward.1} parent=1 // pred_region
      %s62 = ssub.s32 16, 16
      %63 = vsyncadd [#allocation6], %s62
      %s65 = sshll.u32 [#allocation7], 4
      %s66 = int_to_ptr.vmem [resolvable:$true] %s65
      %68 = dma.hbm_to_vmem [thread:$0]  %s10, 16, %s66, [#allocation6]
    $region45: #{lenet_forward.1} parent=1 // pred_fallthru
      _
    // Predicated region
    $region46: #{lenet_forward.1} parent=1 // pred_check
      _
    $region47: #{lenet_forward.1} parent=1 // pred_check_branch
      %70 = sbr.rel (0) target = $region49
    $region48: #{lenet_forward.1} parent=1 // pred_region
      %71 = dma.done [#allocation3], 5120
    $region49: #{lenet_forward.1} parent=1 // pred_fallthru
      _
    // Predicated region
    $region50: #{lenet_forward.1} parent=1 // pred_check
      _
    $region51: #{lenet_forward.1} parent=1 // pred_check_branch
      %73 = sbr.rel (0) target = $region53
    $region52: #{lenet_forward.1} parent=1 // pred_region
      %74 = dma.done [#allocation6], 17920
    $region53: #{lenet_forward.1} parent=1 // pred_fallthru
      _
    // Predicated region
    $region54: #{lenet_forward.1} parent=1 // pred_check
      _
    $region55: #{lenet_forward.1} parent=1 // pred_check_branch
      %76 = sbr.rel (0) target = $region57
    $region56: #{lenet_forward.1} parent=1 // pred_region
      %77 = dma.done [#allocation6], 16
    $region57: #{lenet_forward.1} parent=1 // pred_fallthru
      _
    %v78 = vld [vmem:[%s0] sm:$0xff]
    %v79 = vld [vmem:[%s0 + $0x8] sm:$0xff]
    %v80 = vld [vmem:[%s0 + $0x10] sm:$0xff]
    %v81 = vld [vmem:[%s0 + $0x18] sm:$0xff]
    %v82 = vld [vmem:[%s0 + $0x20] sm:$0xff]
    %v83 = vld [vmem:[%s0 + $0x28] sm:$0xff]
    %v84 = vld [vmem:[%s0 + $0x30] sm:$0xff]
    %v85 = vld [vmem:[%s0 + $0x38] sm:$0xff]
    %v86 = vld [vmem:[%s2] sm:$0x3]
    %v87 = vld [vmem:[%s4] sm:$0x3]
    %v88 = vld [vmem:[#allocation2] sm:$0xff]
    %v89 = vld [vmem:[#allocation2 + $0x8] sm:$0xff]
    %v90 = vld [vmem:[#allocation2 + $0x10] sm:$0xff]
    %v91 = vld [vmem:[#allocation2 + $0x18] sm:$0xff]
    %v92 = vld [vmem:[#allocation2 + $0x20] sm:$0xff]
    %v93 = vld [vmem:[#allocation2 + $0x28] sm:$0xff]
    %v94 = vld [vmem:[#allocation2 + $0x30] sm:$0xff]
    %v95 = vld [vmem:[#allocation2 + $0x38] sm:$0xff]
    %s96 = scalar_lea.vmem [#allocation2], 64
    %v97 = vld [vmem:[%s96] sm:$0xff]
    %v98 = vld [vmem:[%s96 + $0x8] sm:$0xff]
    %v99 = vld [vmem:[%s96 + $0x10] sm:$0xff]
    %v100 = vld [vmem:[%s96 + $0x18] sm:$0xff]
    %v101 = vld [vmem:[%s96 + $0x20] sm:$0xff]
    %v102 = vld [vmem:[%s96 + $0x28] sm:$0xff]
    %v103 = vld [vmem:[%s96 + $0x30] sm:$0xff]
    %v104 = vld [vmem:[%s96 + $0x38] sm:$0xff]
    %vm105 = vcmask 261120
    %v107 = vsel %vm105, %v80, 0
    %v110 = vsel %vm105, %v81, 0
    %112 = vmatprep.subr.mxu0 %v98
    %113 = vmatpush1.msra.mxu0 %v97
    %114 = vmatprep.subr.mxu0 %v100
    %115 = vmatpush1.msra.mxu0 %v99
    %116 = vmatprep.subr.mxu0 %v102
    %117 = vmatpush1.msra.mxu0 %v101
    %118 = vmatprep.subr.mxu0 %v104
    %119 = vmatpush1.msra.mxu0 %v103
    %120 = vmatprep.subr.mxu0 0.0
    %121 = vmatpush1.msra.mxu0 0.0
    %122 = vmatprep.subr.mxu0 0.0
    %123 = vmatpush1.msra.mxu0 0.0
    %124 = vmatprep.subr.mxu0 0.0
    %125 = vmatpush1.msra.mxu0 0.0
    %126 = vmatprep.subr.mxu0 0.0
    %127 = vmatpush1.msra.mxu0 0.0
    %128 = vmatprep.subr.mxu0 0.0
    %129 = vmatpush1.msra.mxu0 0.0
    %130 = vmatprep.subr.mxu0 0.0
    %131 = vmatpush1.msra.mxu0 0.0
    %132 = vmatprep.subr.mxu0 0.0
    %133 = vmatpush1.msra.mxu0 0.0
    %134 = vmatprep.subr.mxu0 0.0
    %135 = vmatpush1.msra.mxu0 0.0
    %136 = vmatprep.subr.mxu0 0.0
    %137 = vmatpush1.msra.mxu0 0.0
    %138 = vmatprep.subr.mxu0 0.0
    %139 = vmatpush1.msra.mxu0 0.0
    %140 = vmatprep.subr.mxu0 0.0
    %141 = vmatpush1.msra.mxu0 0.0
    %142 = vmatprep.subr.mxu0 0.0
    %143 = vmatpush1.msra.mxu0 0.0
    %144 = vmatprep.subr.mxu0 0.0
    %145 = vmatpush1.msra.mxu0 0.0
    %146 = vmatprep.subr.mxu0 0.0
    %147 = vmatpush1.msra.mxu0 0.0
    %148 = vmatprep.subr.mxu0 0.0
    %149 = vmatpush1.msra.mxu0 0.0
    %150 = vmatprep.subr.mxu0 0.0
    %151 = vmatpush1.msra.mxu0 0.0
    %152 = vmatprep.subr.mxu0 0.0
    %153 = vmatpush1.msra.mxu0 0.0
    %154 = vmatprep.subr.mxu0 0.0
    %155 = vmatpush1.msra.mxu0 0.0
    %156 = vmatprep.subr.mxu0 0.0
    %157 = vmatpush1.msra.mxu0 0.0
    %158 = vmatprep.subr.mxu0 0.0
    %159 = vmatpush1.msra.mxu0 0.0
    %160 = vmatprep.subr.mxu0 0.0
    %161 = vmatpush1.msra.mxu0 0.0
    %162 = vmatprep.subr.mxu0 0.0
    %163 = vmatpush1.msra.mxu0 0.0
    %164 = vmatprep.subr.mxu0 0.0
    %165 = vmatpush1.msra.mxu0 0.0
    %166 = vmatprep.subr.mxu0 0.0
    %167 = vmatpush1.msra.mxu0 0.0
    %168 = vmatprep.subr.mxu0 0.0
    %169 = vmatpush1.msra.mxu0 0.0
    %170 = vmatprep.subr.mxu0 0.0
    %171 = vmatpush1.msra.mxu0 0.0
    %172 = vmatprep.subr.mxu0 0.0
    %173 = vmatpush1.msra.mxu0 0.0
    %174 = vmatprep.subr.mxu0 0.0
    %175 = vmatpush1.msra.mxu0 0.0
    %176 = vmatprep.mubr.f32.mxu0 0.0
    %177 = vmatmul.mubr.f32.gmra.mrb[0].mxu0 %v107
    %v178 = vpop.f32.mrb[0].mxu0
    %v179 = vadd.f32 0.0, %v178
    %v180 = vpop.f32.mrb[0].mxu0
    %v181 = vadd.f32 0.0, %v180
    %182 = vmatprep.mubr.f32.mxu0 0.0
    %183 = vmatmul.mubr.f32.gmra.mrb[0].mxu0 %v110
    %v184 = vpop.f32.mrb[0].mxu0
    %v185 = vadd.f32 0.0, %v184
    %v186 = vpop.f32.mrb[0].mxu0
    %v187 = vadd.f32 0.0, %v186
    %188 = vdwg.mxu0
    %v190 = vsel %vm105, %v78, 0
    %v193 = vsel %vm105, %v79, 0
    %195 = vmatprep.subr.mxu0 %v89
    %196 = vmatpush1.msra.mxu0 %v88
    %197 = vmatprep.subr.mxu0 %v91
    %198 = vmatpush1.msra.mxu0 %v90
    %199 = vmatprep.subr.mxu0 %v93
    %200 = vmatpush1.msra.mxu0 %v92
    %201 = vmatprep.subr.mxu0 %v95
    %202 = vmatpush1.msra.mxu0 %v94
    %203 = vmatprep.subr.mxu0 0.0
    %204 = vmatpush1.msra.mxu0 0.0
    %205 = vmatprep.subr.mxu0 0.0
    %206 = vmatpush1.msra.mxu0 0.0
    %207 = vmatprep.subr.mxu0 0.0
    %208 = vmatpush1.msra.mxu0 0.0
    %209 = vmatprep.subr.mxu0 0.0
    %210 = vmatpush1.msra.mxu0 0.0
    %211 = vmatprep.subr.mxu0 0.0
    %212 = vmatpush1.msra.mxu0 0.0
    %213 = vmatprep.subr.mxu0 0.0
    %214 = vmatpush1.msra.mxu0 0.0
    %215 = vmatprep.subr.mxu0 0.0
    %216 = vmatpush1.msra.mxu0 0.0
    %217 = vmatprep.subr.mxu0 0.0
    %218 = vmatpush1.msra.mxu0 0.0
    %219 = vmatprep.subr.mxu0 0.0
    %220 = vmatpush1.msra.mxu0 0.0
    %221 = vmatprep.subr.mxu0 0.0
    %222 = vmatpush1.msra.mxu0 0.0
    %223 = vmatprep.subr.mxu0 0.0
    %224 = vmatpush1.msra.mxu0 0.0
    %225 = vmatprep.subr.mxu0 0.0
    %226 = vmatpush1.msra.mxu0 0.0
    %227 = vmatprep.subr.mxu0 0.0
    %228 = vmatpush1.msra.mxu0 0.0
    %229 = vmatprep.subr.mxu0 0.0
    %230 = vmatpush1.msra.mxu0 0.0
    %231 = vmatprep.subr.mxu0 0.0
    %232 = vmatpush1.msra.mxu0 0.0
    %233 = vmatprep.subr.mxu0 0.0
    %234 = vmatpush1.msra.mxu0 0.0
    %235 = vmatprep.subr.mxu0 0.0
    %236 = vmatpush1.msra.mxu0 0.0
    %237 = vmatprep.subr.mxu0 0.0
    %238 = vmatpush1.msra.mxu0 0.0
    %239 = vmatprep.subr.mxu0 0.0
    %240 = vmatpush1.msra.mxu0 0.0
    %241 = vmatprep.subr.mxu0 0.0
    %242 = vmatpush1.msra.mxu0 0.0
    %243 = vmatprep.subr.mxu0 0.0
    %244 = vmatpush1.msra.mxu0 0.0
    %245 = vmatprep.subr.mxu0 0.0
    %246 = vmatpush1.msra.mxu0 0.0
    %247 = vmatprep.subr.mxu0 0.0
    %248 = vmatpush1.msra.mxu0 0.0
    %249 = vmatprep.subr.mxu0 0.0
    %250 = vmatpush1.msra.mxu0 0.0
    %251 = vmatprep.subr.mxu0 0.0
    %252 = vmatpush1.msra.mxu0 0.0
    %253 = vmatprep.subr.mxu0 0.0
    %254 = vmatpush1.msra.mxu0 0.0
    %255 = vmatprep.subr.mxu0 0.0
    %256 = vmatpush1.msra.mxu0 0.0
    %257 = vmatprep.subr.mxu0 0.0
    %258 = vmatpush1.msra.mxu0 0.0
    %259 = vmatprep.mubr.f32.mxu0 0.0
    %260 = vmatmul.mubr.f32.gmra.mrb[0].mxu0 %v190
    %v261 = vpop.f32.mrb[0].mxu0
    %v262 = vadd.f32 %v179, %v261
    %v263 = vpop.f32.mrb[0].mxu0
    %v264 = vadd.f32 %v181, %v263
    %265 = vmatprep.mubr.f32.mxu0 0.0
    %266 = vmatmul.mubr.f32.gmra.mrb[0].mxu0 %v193
    %v267 = vpop.f32.mrb[0].mxu0
    %v268 = vadd.f32 %v185, %v267
    %v269 = vpop.f32.mrb[0].mxu0
    %v270 = vadd.f32 %v187, %v269
    %271 = vdwg.mxu0
    %s272 = scalar_lea.vmem [#allocation2], 128
    %v273 = vld [vmem:[%s272] sm:$0xff]
    %v274 = vld [vmem:[%s272 + $0x8] sm:$0xff]
    %v275 = vld [vmem:[%s272 + $0x10] sm:$0xff]
    %v276 = vld [vmem:[%s272 + $0x18] sm:$0xff]
    %v277 = vld [vmem:[%s272 + $0x20] sm:$0xff]
    %v278 = vld [vmem:[%s272 + $0x28] sm:$0xff]
    %v279 = vld [vmem:[%s272 + $0x30] sm:$0xff]
    %v280 = vld [vmem:[%s272 + $0x38] sm:$0xff]
    %v282 = vsel %vm105, %v82, 0
    %v285 = vsel %vm105, %v83, 0
    %287 = vmatprep.subr.mxu0 %v274
    %288 = vmatpush1.msra.mxu0 %v273
    %289 = vmatprep.subr.mxu0 %v276
    %290 = vmatpush1.msra.mxu0 %v275
    %291 = vmatprep.subr.mxu0 %v278
    %292 = vmatpush1.msra.mxu0 %v277
    %293 = vmatprep.subr.mxu0 %v280
    %294 = vmatpush1.msra.mxu0 %v279
    %295 = vmatprep.subr.mxu0 0.0
    %296 = vmatpush1.msra.mxu0 0.0
    %297 = vmatprep.subr.mxu0 0.0
    %298 = vmatpush1.msra.mxu0 0.0
    %299 = vmatprep.subr.mxu0 0.0
    %300 = vmatpush1.msra.mxu0 0.0
    %301 = vmatprep.subr.mxu0 0.0
    %302 = vmatpush1.msra.mxu0 0.0
    %303 = vmatprep.subr.mxu0 0.0
    %304 = vmatpush1.msra.mxu0 0.0
    %305 = vmatprep.subr.mxu0 0.0
    %306 = vmatpush1.msra.mxu0 0.0
    %307 = vmatprep.subr.mxu0 0.0
    %308 = vmatpush1.msra.mxu0 0.0
    %309 = vmatprep.subr.mxu0 0.0
    %310 = vmatpush1.msra.mxu0 0.0
    %311 = vmatprep.subr.mxu0 0.0
    %312 = vmatpush1.msra.mxu0 0.0
    %313 = vmatprep.subr.mxu0 0.0
    %314 = vmatpush1.msra.mxu0 0.0
    %315 = vmatprep.subr.mxu0 0.0
    %316 = vmatpush1.msra.mxu0 0.0
    %317 = vmatprep.subr.mxu0 0.0
    %318 = vmatpush1.msra.mxu0 0.0
    %319 = vmatprep.subr.mxu0 0.0
    %320 = vmatpush1.msra.mxu0 0.0
    %321 = vmatprep.subr.mxu0 0.0
    %322 = vmatpush1.msra.mxu0 0.0
    %323 = vmatprep.subr.mxu0 0.0
    %324 = vmatpush1.msra.mxu0 0.0
    %325 = vmatprep.subr.mxu0 0.0
    %326 = vmatpush1.msra.mxu0 0.0
    %327 = vmatprep.subr.mxu0 0.0
    %328 = vmatpush1.msra.mxu0 0.0
    %329 = vmatprep.subr.mxu0 0.0
    %330 = vmatpush1.msra.mxu0 0.0
    %331 = vmatprep.subr.mxu0 0.0
    %332 = vmatpush1.msra.mxu0 0.0
    %333 = vmatprep.subr.mxu0 0.0
    %334 = vmatpush1.msra.mxu0 0.0
    %335 = vmatprep.subr.mxu0 0.0
    %336 = vmatpush1.msra.mxu0 0.0
    %337 = vmatprep.subr.mxu0 0.0
    %338 = vmatpush1.msra.mxu0 0.0
    %339 = vmatprep.subr.mxu0 0.0
    %340 = vmatpush1.msra.mxu0 0.0
    %341 = vmatprep.subr.mxu0 0.0
    %342 = vmatpush1.msra.mxu0 0.0
    %343 = vmatprep.subr.mxu0 0.0
    %344 = vmatpush1.msra.mxu0 0.0
    %345 = vmatprep.subr.mxu0 0.0
    %346 = vmatpush1.msra.mxu0 0.0
    %347 = vmatprep.subr.mxu0 0.0
    %348 = vmatpush1.msra.mxu0 0.0
    %349 = vmatprep.subr.mxu0 0.0
    %350 = vmatpush1.msra.mxu0 0.0
    %351 = vmatprep.mubr.f32.mxu0 0.0
    %352 = vmatmul.mubr.f32.gmra.mrb[0].mxu0 %v282
    %v353 = vpop.f32.mrb[0].mxu0
    %v354 = vadd.f32 0.0, %v353
    %v355 = vpop.f32.mrb[0].mxu0
    %v356 = vadd.f32 0.0, %v355
    %357 = vmatprep.mubr.f32.mxu0 0.0
    %358 = vmatmul.mubr.f32.gmra.mrb[0].mxu0 %v285
    %v359 = vpop.f32.mrb[0].mxu0
    %v360 = vadd.f32 0.0, %v359
    %v361 = vpop.f32.mrb[0].mxu0
    %v362 = vadd.f32 0.0, %v361
    %363 = vdwg.mxu0
    %v364 = vadd.f32 %v262, %v354
    %v365 = vadd.f32 %v264, %v356
    %v366 = vadd.f32 %v268, %v360
    %v367 = vadd.f32 %v270, %v362
    %s368 = scalar_lea.vmem [#allocation2], 192
    %v369 = vld [vmem:[%s368] sm:$0xff]
    %v370 = vld [vmem:[%s368 + $0x8] sm:$0xff]
    %v371 = vld [vmem:[%s368 + $0x10] sm:$0xff]
    %v372 = vld [vmem:[%s368 + $0x18] sm:$0xff]
    %v373 = vld [vmem:[%s368 + $0x20] sm:$0xff]
    %v374 = vld [vmem:[%s368 + $0x28] sm:$0xff]
    %v375 = vld [vmem:[%s368 + $0x30] sm:$0xff]
    %v376 = vld [vmem:[%s368 + $0x38] sm:$0xff]
    %v378 = vsel %vm105, %v84, 0
    %v381 = vsel %vm105, %v85, 0
    %383 = vmatprep.subr.mxu0 %v370
    %384 = vmatpush1.msra.mxu0 %v369
    %385 = vmatprep.subr.mxu0 %v372
    %386 = vmatpush1.msra.mxu0 %v371
    %387 = vmatprep.subr.mxu0 %v374
    %388 = vmatpush1.msra.mxu0 %v373
    %389 = vmatprep.subr.mxu0 %v376
    %390 = vmatpush1.msra.mxu0 %v375
    %391 = vmatprep.subr.mxu0 0.0
    %392 = vmatpush1.msra.mxu0 0.0
    %393 = vmatprep.subr.mxu0 0.0
    %394 = vmatpush1.msra.mxu0 0.0
    %395 = vmatprep.subr.mxu0 0.0
    %396 = vmatpush1.msra.mxu0 0.0
    %397 = vmatprep.subr.mxu0 0.0
    %398 = vmatpush1.msra.mxu0 0.0
    %399 = vmatprep.subr.mxu0 0.0
    %400 = vmatpush1.msra.mxu0 0.0
    %401 = vmatprep.subr.mxu0 0.0
    %402 = vmatpush1.msra.mxu0 0.0
    %403 = vmatprep.subr.mxu0 0.0
    %404 = vmatpush1.msra.mxu0 0.0
    %405 = vmatprep.subr.mxu0 0.0
    %406 = vmatpush1.msra.mxu0 0.0
    %407 = vmatprep.subr.mxu0 0.0
    %408 = vmatpush1.msra.mxu0 0.0
    %409 = vmatprep.subr.mxu0 0.0
    %410 = vmatpush1.msra.mxu0 0.0
    %411 = vmatprep.subr.mxu0 0.0
    %412 = vmatpush1.msra.mxu0 0.0
    %413 = vmatprep.subr.mxu0 0.0
    %414 = vmatpush1.msra.mxu0 0.0
    %415 = vmatprep.subr.mxu0 0.0
    %416 = vmatpush1.msra.mxu0 0.0
    %417 = vmatprep.subr.mxu0 0.0
    %418 = vmatpush1.msra.mxu0 0.0
    %419 = vmatprep.subr.mxu0 0.0
    %420 = vmatpush1.msra.mxu0 0.0
    %421 = vmatprep.subr.mxu0 0.0
    %422 = vmatpush1.msra.mxu0 0.0
    %423 = vmatprep.subr.mxu0 0.0
    %424 = vmatpush1.msra.mxu0 0.0
    %425 = vmatprep.subr.mxu0 0.0
    %426 = vmatpush1.msra.mxu0 0.0
    %427 = vmatprep.subr.mxu0 0.0
    %428 = vmatpush1.msra.mxu0 0.0
    %429 = vmatprep.subr.mxu0 0.0
    %430 = vmatpush1.msra.mxu0 0.0
    %431 = vmatprep.subr.mxu0 0.0
    %432 = vmatpush1.msra.mxu0 0.0
    %433 = vmatprep.subr.mxu0 0.0
    %434 = vmatpush1.msra.mxu0 0.0
    %435 = vmatprep.subr.mxu0 0.0
    %436 = vmatpush1.msra.mxu0 0.0
    %437 = vmatprep.subr.mxu0 0.0
    %438 = vmatpush1.msra.mxu0 0.0
    %439 = vmatprep.subr.mxu0 0.0
    %440 = vmatpush1.msra.mxu0 0.0
    %441 = vmatprep.subr.mxu0 0.0
    %442 = vmatpush1.msra.mxu0 0.0
    %443 = vmatprep.subr.mxu0 0.0
    %444 = vmatpush1.msra.mxu0 0.0
    %445 = vmatprep.subr.mxu0 0.0
    %446 = vmatpush1.msra.mxu0 0.0
    %447 = vmatprep.mubr.f32.mxu0 0.0
    %448 = vmatmul.mubr.f32.gmra.mrb[0].mxu0 %v378
    %v449 = vpop.f32.mrb[0].mxu0
    %v450 = vadd.f32 0.0, %v449
    %v451 = vpop.f32.mrb[0].mxu0
    %v452 = vadd.f32 0.0, %v451
    %453 = vmatprep.mubr.f32.mxu0 0.0
    %454 = vmatmul.mubr.f32.gmra.mrb[0].mxu0 %v381
    %v455 = vpop.f32.mrb[0].mxu0
    %v456 = vadd.f32 0.0, %v455
    %v457 = vpop.f32.mrb[0].mxu0
    %v458 = vadd.f32 0.0, %v457
    %459 = vdwg.mxu0
    %v460 = vadd.f32 %v364, %v450
    %v461 = vadd.f32 %v365, %v452
    %v462 = vadd.f32 %v366, %v456
    %v463 = vadd.f32 %v367, %v458
    %s464 = scalar_lea.vmem [#allocation2], 256
    %v465 = vld [vmem:[%s464] sm:$0xff]
    %v466 = vld [vmem:[%s464 + $0x8] sm:$0xff]
    %v467 = vld [vmem:[%s464 + $0x10] sm:$0xff]
    %v468 = vld [vmem:[%s464 + $0x18] sm:$0xff]
    %v469 = vld [vmem:[%s464 + $0x20] sm:$0xff]
    %v470 = vld [vmem:[%s464 + $0x28] sm:$0xff]
    %v471 = vld [vmem:[%s464 + $0x30] sm:$0xff]
    %v472 = vld [vmem:[%s464 + $0x38] sm:$0xff]
    %vm473 = vcmask 1045504
    %v474 = vrot.slane %v78, 2
    %v475 = vrot.slane %v79, 2
    %v476 = vsel %vm473, %v474, %v475
    %v477 = vsel %vm105, %v476, 0
    %v479 = vsel %vm105, %v475, 0
    %481 = vmatprep.subr.mxu0 %v466
    %482 = vmatpush1.msra.mxu0 %v465
    %483 = vmatprep.subr.mxu0 %v468
    %484 = vmatpush1.msra.mxu0 %v467
    %485 = vmatprep.subr.mxu0 %v470
    %486 = vmatpush1.msra.mxu0 %v469
    %487 = vmatprep.subr.mxu0 %v472
    %488 = vmatpush1.msra.mxu0 %v471
    %489 = vmatprep.subr.mxu0 0.0
    %490 = vmatpush1.msra.mxu0 0.0
    %491 = vmatprep.subr.mxu0 0.0
    %492 = vmatpush1.msra.mxu0 0.0
    %493 = vmatprep.subr.mxu0 0.0
    %494 = vmatpush1.msra.mxu0 0.0
    %495 = vmatprep.subr.mxu0 0.0
    %496 = vmatpush1.msra.mxu0 0.0
    %497 = vmatprep.subr.mxu0 0.0
    %498 = vmatpush1.msra.mxu0 0.0
    %499 = vmatprep.subr.mxu0 0.0
    %500 = vmatpush1.msra.mxu0 0.0
    %501 = vmatprep.subr.mxu0 0.0
    %502 = vmatpush1.msra.mxu0 0.0
    %503 = vmatprep.subr.mxu0 0.0
    %504 = vmatpush1.msra.mxu0 0.0
    %505 = vmatprep.subr.mxu0 0.0
    %506 = vmatpush1.msra.mxu0 0.0
    %507 = vmatprep.subr.mxu0 0.0
    %508 = vmatpush1.msra.mxu0 0.0
    %509 = vmatprep.subr.mxu0 0.0
    %510 = vmatpush1.msra.mxu0 0.0
    %511 = vmatprep.subr.mxu0 0.0
    %512 = vmatpush1.msra.mxu0 0.0
    %513 = vmatprep.subr.mxu0 0.0
    %514 = vmatpush1.msra.mxu0 0.0
    %515 = vmatprep.subr.mxu0 0.0
    %516 = vmatpush1.msra.mxu0 0.0
    %517 = vmatprep.subr.mxu0 0.0
    %518 = vmatpush1.msra.mxu0 0.0
    %519 = vmatprep.subr.mxu0 0.0
    %520 = vmatpush1.msra.mxu0 0.0
    %521 = vmatprep.subr.mxu0 0.0
    %522 = vmatpush1.msra.mxu0 0.0
    %523 = vmatprep.subr.mxu0 0.0
    %524 = vmatpush1.msra.mxu0 0.0
    %525 = vmatprep.subr.mxu0 0.0
    %526 = vmatpush1.msra.mxu0 0.0
    %527 = vmatprep.subr.mxu0 0.0
    %528 = vmatpush1.msra.mxu0 0.0
    %529 = vmatprep.subr.mxu0 0.0
    %530 = vmatpush1.msra.mxu0 0.0
    %531 = vmatprep.subr.mxu0 0.0
    %532 = vmatpush1.msra.mxu0 0.0
    %533 = vmatprep.subr.mxu0 0.0
    %534 = vmatpush1.msra.mxu0 0.0
    %535 = vmatprep.subr.mxu0 0.0
    %536 = vmatpush1.msra.mxu0 0.0
    %537 = vmatprep.subr.mxu0 0.0
    %538 = vmatpush1.msra.mxu0 0.0
    %539 = vmatprep.subr.mxu0 0.0
    %540 = vmatpush1.msra.mxu0 0.0
    %541 = vmatprep.subr.mxu0 0.0
    %542 = vmatpush1.msra.mxu0 0.0
    %543 = vmatprep.subr.mxu0 0.0
    %544 = vmatpush1.msra.mxu0 0.0
    %545 = vmatprep.mubr.f32.mxu0 0.0
    %546 = vmatmul.mubr.f32.gmra.mrb[0].mxu0 %v477
    %v547 = vpop.f32.mrb[0].mxu0
    %v548 = vadd.f32 0.0, %v547
    %v549 = vpop.f32.mrb[0].mxu0
    %v550 = vadd.f32 0.0, %v549
    %551 = vmatprep.mubr.f32.mxu0 0.0
    %552 = vmatmul.mubr.f32.gmra.mrb[0].mxu0 %v479
    %v553 = vpop.f32.mrb[0].mxu0
    %v554 = vadd.f32 0.0, %v553
    %v555 = vpop.f32.mrb[0].mxu0
    %v556 = vadd.f32 0.0, %v555
    %557 = vdwg.mxu0
    %v558 = vadd.f32 %v460, %v548
    %v559 = vadd.f32 %v461, %v550
    %v560 = vadd.f32 %v462, %v554
    %v561 = vadd.f32 %v463, %v556
    %v563 = vlaneseq
    %v564 = vshrl.u32 %v563, 7
    %v565 = vsub.s32 0, %v564
    %v566 = vrot.slane %v86, %v565
    %v567 = vlaneseq
    %v568 = vshrl.u32 %v567, 7
    %v569 = vsub.s32 1, %v568
    %v570 = vrot.slane %v86, %v569
    %v573 = vadd.f32 %v558, %v566
    %v574 = vadd.f32 %v559, %v570
    %v575 = vadd.f32 %v560, %v566
    %v576 = vadd.f32 %v561, %v570
    %v577 = vxor.u32 %v573, 2147483648
    %v578 = vxor.u32 %v574, 2147483648
    %v579 = vxor.u32 %v575, 2147483648
    %v580 = vxor.u32 %v576, 2147483648
    %v581 = vmul.f32 %v577, 1.442695
    %v582 = vpow.pop %v581
    %v583 = vmul.f32 %v578, 1.442695
    %v584 = vpow.pop %v583
    %v585 = vmul.f32 %v579, 1.442695
    %v586 = vpow.pop %v585
    %v587 = vmul.f32 %v580, 1.442695
    %v588 = vpow.pop %v587
    %v589 = vadd.f32 %v582, 1.0
    %v590 = vadd.f32 %v584, 1.0
    %v591 = vadd.f32 %v586, 1.0
    %v592 = vadd.f32 %v588, 1.0
    %v593 = vrcp.pop %v589
    %v594 = vmul.f32 1.0, %v593
    %v595 = vrcp.pop %v590
    %v596 = vmul.f32 1.0, %v595
    %v597 = vrcp.pop %v591
    %v598 = vmul.f32 1.0, %v597
    %v599 = vrcp.pop %v592
    %v600 = vmul.f32 1.0, %v599
    %v601 = vadd.f32 %v594, %v596
    %v602 = vadd.f32 %v598, %v600
    %603 = vmatprep.subr.mxu0 %v98
    %604 = vmatpush1.msra.mxu0 %v97
    %605 = vmatprep.subr.mxu0 %v100
    %606 = vmatpush1.msra.mxu0 %v99
    %607 = vmatprep.subr.mxu0 %v102
    %608 = vmatpush1.msra.mxu0 %v101
    %609 = vmatprep.subr.mxu0 %v104
    %610 = vmatpush1.msra.mxu0 %v103
    %611 = vmatprep.subr.mxu0 0.0
    %612 = vmatpush1.msra.mxu0 0.0
    %613 = vmatprep.subr.mxu0 0.0
    %614 = vmatpush1.msra.mxu0 0.0
    %615 = vmatprep.subr.mxu0 0.0
    %616 = vmatpush1.msra.mxu0 0.0
    %617 = vmatprep.subr.mxu0 0.0
    %618 = vmatpush1.msra.mxu0 0.0
    %619 = vmatprep.subr.mxu0 0.0
    %620 = vmatpush1.msra.mxu0 0.0
    %621 = vmatprep.subr.mxu0 0.0
    %622 = vmatpush1.msra.mxu0 0.0
    %623 = vmatprep.subr.mxu0 0.0
    %624 = vmatpush1.msra.mxu0 0.0
    %625 = vmatprep.subr.mxu0 0.0
    %626 = vmatpush1.msra.mxu0 0.0
    %627 = vmatprep.subr.mxu0 0.0
    %628 = vmatpush1.msra.mxu0 0.0
    %629 = vmatprep.subr.mxu0 0.0
    %630 = vmatpush1.msra.mxu0 0.0
    %631 = vmatprep.subr.mxu0 0.0
    %632 = vmatpush1.msra.mxu0 0.0
    %633 = vmatprep.subr.mxu0 0.0
    %634 = vmatpush1.msra.mxu0 0.0
    %635 = vmatprep.subr.mxu0 0.0
    %636 = vmatpush1.msra.mxu0 0.0
    %637 = vmatprep.subr.mxu0 0.0
    %638 = vmatpush1.msra.mxu0 0.0
    %639 = vmatprep.subr.mxu0 0.0
    %640 = vmatpush1.msra.mxu0 0.0
    %641 = vmatprep.subr.mxu0 0.0
    %642 = vmatpush1.msra.mxu0 0.0
    %643 = vmatprep.subr.mxu0 0.0
    %644 = vmatpush1.msra.mxu0 0.0
    %645 = vmatprep.subr.mxu0 0.0
    %646 = vmatpush1.msra.mxu0 0.0
    %647 = vmatprep.subr.mxu0 0.0
    %648 = vmatpush1.msra.mxu0 0.0
    %649 = vmatprep.subr.mxu0 0.0
    %650 = vmatpush1.msra.mxu0 0.0
    %651 = vmatprep.subr.mxu0 0.0
    %652 = vmatpush1.msra.mxu0 0.0
    %653 = vmatprep.subr.mxu0 0.0
    %654 = vmatpush1.msra.mxu0 0.0
    %655 = vmatprep.subr.mxu0 0.0
    %656 = vmatpush1.msra.mxu0 0.0
    %657 = vmatprep.subr.mxu0 0.0
    %658 = vmatpush1.msra.mxu0 0.0
    %659 = vmatprep.subr.mxu0 0.0
    %660 = vmatpush1.msra.mxu0 0.0
    %661 = vmatprep.subr.mxu0 0.0
    %662 = vmatpush1.msra.mxu0 0.0
    %663 = vmatprep.subr.mxu0 0.0
    %664 = vmatpush1.msra.mxu0 0.0
    %665 = vmatprep.subr.mxu0 0.0
    %666 = vmatpush1.msra.mxu0 0.0
    %667 = vmatprep.mubr.f32.mxu0 0.0
    %668 = vmatmul.mubr.f32.gmra.mrb[0].mxu0 %v282
    %v669 = vpop.f32.mrb[0].mxu0
    %v670 = vadd.f32 0.0, %v669
    %v671 = vpop.f32.mrb[0].mxu0
    %v672 = vadd.f32 0.0, %v671
    %673 = vmatprep.mubr.f32.mxu0 0.0
    %674 = vmatmul.mubr.f32.gmra.mrb[0].mxu0 %v285
    %v675 = vpop.f32.mrb[0].mxu0
    %v676 = vadd.f32 0.0, %v675
    %v677 = vpop.f32.mrb[0].mxu0
    %v678 = vadd.f32 0.0, %v677
    %679 = vdwg.mxu0
    %680 = vmatprep.subr.mxu0 %v89
    %681 = vmatpush1.msra.mxu0 %v88
    %682 = vmatprep.subr.mxu0 %v91
    %683 = vmatpush1.msra.mxu0 %v90
    %684 = vmatprep.subr.mxu0 %v93
    %685 = vmatpush1.msra.mxu0 %v92
    %686 = vmatprep.subr.mxu0 %v95
    %687 = vmatpush1.msra.mxu0 %v94
    %688 = vmatprep.subr.mxu0 0.0
    %689 = vmatpush1.msra.mxu0 0.0
    %690 = vmatprep.subr.mxu0 0.0
    %691 = vmatpush1.msra.mxu0 0.0
    %692 = vmatprep.subr.mxu0 0.0
    %693 = vmatpush1.msra.mxu0 0.0
    %694 = vmatprep.subr.mxu0 0.0
    %695 = vmatpush1.msra.mxu0 0.0
    %696 = vmatprep.subr.mxu0 0.0
    %697 = vmatpush1.msra.mxu0 0.0
    %698 = vmatprep.subr.mxu0 0.0
    %699 = vmatpush1.msra.mxu0 0.0
    %700 = vmatprep.subr.mxu0 0.0
    %701 = vmatpush1.msra.mxu0 0.0
    %702 = vmatprep.subr.mxu0 0.0
    %703 = vmatpush1.msra.mxu0 0.0
    %704 = vmatprep.subr.mxu0 0.0
    %705 = vmatpush1.msra.mxu0 0.0
    %706 = vmatprep.subr.mxu0 0.0
    %707 = vmatpush1.msra.mxu0 0.0
    %708 = vmatprep.subr.mxu0 0.0
    %709 = vmatpush1.msra.mxu0 0.0
    %710 = vmatprep.subr.mxu0 0.0
    %711 = vmatpush1.msra.mxu0 0.0
    %712 = vmatprep.subr.mxu0 0.0
    %713 = vmatpush1.msra.mxu0 0.0
    %714 = vmatprep.subr.mxu0 0.0
    %715 = vmatpush1.msra.mxu0 0.0
    %716 = vmatprep.subr.mxu0 0.0
    %717 = vmatpush1.msra.mxu0 0.0
    %718 = vmatprep.subr.mxu0 0.0
    %719 = vmatpush1.msra.mxu0 0.0
    %720 = vmatprep.subr.mxu0 0.0
    %721 = vmatpush1.msra.mxu0 0.0
    %722 = vmatprep.subr.mxu0 0.0
    %723 = vmatpush1.msra.mxu0 0.0
    %724 = vmatprep.subr.mxu0 0.0
    %725 = vmatpush1.msra.mxu0 0.0
    %726 = vmatprep.subr.mxu0 0.0
    %727 = vmatpush1.msra.mxu0 0.0
    %728 = vmatprep.subr.mxu0 0.0
    %729 = vmatpush1.msra.mxu0 0.0
    %730 = vmatprep.subr.mxu0 0.0
    %731 = vmatpush1.msra.mxu0 0.0
    %732 = vmatprep.subr.mxu0 0.0
    %733 = vmatpush1.msra.mxu0 0.0
    %734 = vmatprep.subr.mxu0 0.0
    %735 = vmatpush1.msra.mxu0 0.0
    %736 = vmatprep.subr.mxu0 0.0
    %737 = vmatpush1.msra.mxu0 0.0
    %738 = vmatprep.subr.mxu0 0.0
    %739 = vmatpush1.msra.mxu0 0.0
    %740 = vmatprep.subr.mxu0 0.0
    %741 = vmatpush1.msra.mxu0 0.0
    %742 = vmatprep.subr.mxu0 0.0
    %743 = vmatpush1.msra.mxu0 0.0
    %744 = vmatprep.mubr.f32.mxu0 0.0
    %745 = vmatmul.mubr.f32.gmra.mrb[0].mxu0 %v107
    %v746 = vpop.f32.mrb[0].mxu0
    %v747 = vadd.f32 %v670, %v746
    %v748 = vpop.f32.mrb[0].mxu0
    %v749 = vadd.f32 %v672, %v748
    %750 = vmatprep.mubr.f32.mxu0 0.0
    %751 = vmatmul.mubr.f32.gmra.mrb[0].mxu0 %v110
    %v752 = vpop.f32.mrb[0].mxu0
    %v753 = vadd.f32 %v676, %v752
    %v754 = vpop.f32.mrb[0].mxu0
    %v755 = vadd.f32 %v678, %v754
    %756 = vdwg.mxu0
    %757 = vmatprep.subr.mxu0 %v274
    %758 = vmatpush1.msra.mxu0 %v273
    %759 = vmatprep.subr.mxu0 %v276
    %760 = vmatpush1.msra.mxu0 %v275
    %761 = vmatprep.subr.mxu0 %v278
    %762 = vmatpush1.msra.mxu0 %v277
    %763 = vmatprep.subr.mxu0 %v280
    %764 = vmatpush1.msra.mxu0 %v279
    %765 = vmatprep.subr.mxu0 0.0
    %766 = vmatpush1.msra.mxu0 0.0
    %767 = vmatprep.subr.mxu0 0.0
    %768 = vmatpush1.msra.mxu0 0.0
    %769 = vmatprep.subr.mxu0 0.0
    %770 = vmatpush1.msra.mxu0 0.0
    %771 = vmatprep.subr.mxu0 0.0
    %772 = vmatpush1.msra.mxu0 0.0
    %773 = vmatprep.subr.mxu0 0.0
    %774 = vmatpush1.msra.mxu0 0.0
    %775 = vmatprep.subr.mxu0 0.0
    %776 = vmatpush1.msra.mxu0 0.0
    %777 = vmatprep.subr.mxu0 0.0
    %778 = vmatpush1.msra.mxu0 0.0
    %779 = vmatprep.subr.mxu0 0.0
    %780 = vmatpush1.msra.mxu0 0.0
    %781 = vmatprep.subr.mxu0 0.0
    %782 = vmatpush1.msra.mxu0 0.0
    %783 = vmatprep.subr.mxu0 0.0
    %784 = vmatpush1.msra.mxu0 0.0
    %785 = vmatprep.subr.mxu0 0.0
    %786 = vmatpush1.msra.mxu0 0.0
    %787 = vmatprep.subr.mxu0 0.0
    %788 = vmatpush1.msra.mxu0 0.0
    %789 = vmatprep.subr.mxu0 0.0
    %790 = vmatpush1.msra.mxu0 0.0
    %791 = vmatprep.subr.mxu0 0.0
    %792 = vmatpush1.msra.mxu0 0.0
    %793 = vmatprep.subr.mxu0 0.0
    %794 = vmatpush1.msra.mxu0 0.0
    %795 = vmatprep.subr.mxu0 0.0
    %796 = vmatpush1.msra.mxu0 0.0
    %797 = vmatprep.subr.mxu0 0.0
    %798 = vmatpush1.msra.mxu0 0.0
    %799 = vmatprep.subr.mxu0 0.0
    %800 = vmatpush1.msra.mxu0 0.0
    %801 = vmatprep.subr.mxu0 0.0
    %802 = vmatpush1.msra.mxu0 0.0
    %803 = vmatprep.subr.mxu0 0.0
    %804 = vmatpush1.msra.mxu0 0.0
    %805 = vmatprep.subr.mxu0 0.0
    %806 = vmatpush1.msra.mxu0 0.0
    %807 = vmatprep.subr.mxu0 0.0
    %808 = vmatpush1.msra.mxu0 0.0
    %809 = vmatprep.subr.mxu0 0.0
    %810 = vmatpush1.msra.mxu0 0.0
    %811 = vmatprep.subr.mxu0 0.0
    %812 = vmatpush1.msra.mxu0 0.0
    %813 = vmatprep.subr.mxu0 0.0
    %814 = vmatpush1.msra.mxu0 0.0
    %815 = vmatprep.subr.mxu0 0.0
    %816 = vmatpush1.msra.mxu0 0.0
    %817 = vmatprep.subr.mxu0 0.0
    %818 = vmatpush1.msra.mxu0 0.0
    %819 = vmatprep.subr.mxu0 0.0
    %820 = vmatpush1.msra.mxu0 0.0
    %821 = vmatprep.mubr.f32.mxu0 0.0
    %822 = vmatmul.mubr.f32.gmra.mrb[0].mxu0 %v378
    %v823 = vpop.f32.mrb[0].mxu0
    %v824 = vadd.f32 0.0, %v823
    %v825 = vpop.f32.mrb[0].mxu0
    %v826 = vadd.f32 0.0, %v825
    %827 = vmatprep.mubr.f32.mxu0 0.0
    %828 = vmatmul.mubr.f32.gmra.mrb[0].mxu0 %v381
    %v829 = vpop.f32.mrb[0].mxu0
    %v830 = vadd.f32 0.0, %v829
    %v831 = vpop.f32.mrb[0].mxu0
    %v832 = vadd.f32 0.0, %v831
    %833 = vdwg.mxu0
    %v834 = vadd.f32 %v747, %v824
    %v835 = vadd.f32 %v749, %v826
    %v836 = vadd.f32 %v753, %v830
    %v837 = vadd.f32 %v755, %v832
    %838 = vmatprep.subr.mxu0 %v370
    %839 = vmatpush1.msra.mxu0 %v369
    %840 = vmatprep.subr.mxu0 %v372
    %841 = vmatpush1.msra.mxu0 %v371
    %842 = vmatprep.subr.mxu0 %v374
    %843 = vmatpush1.msra.mxu0 %v373
    %844 = vmatprep.subr.mxu0 %v376
    %845 = vmatpush1.msra.mxu0 %v375
    %846 = vmatprep.subr.mxu0 0.0
    %847 = vmatpush1.msra.mxu0 0.0
    %848 = vmatprep.subr.mxu0 0.0
    %849 = vmatpush1.msra.mxu0 0.0
    %850 = vmatprep.subr.mxu0 0.0
    %851 = vmatpush1.msra.mxu0 0.0
    %852 = vmatprep.subr.mxu0 0.0
    %853 = vmatpush1.msra.mxu0 0.0
    %854 = vmatprep.subr.mxu0 0.0
    %855 = vmatpush1.msra.mxu0 0.0
    %856 = vmatprep.subr.mxu0 0.0
    %857 = vmatpush1.msra.mxu0 0.0
    %858 = vmatprep.subr.mxu0 0.0
    %859 = vmatpush1.msra.mxu0 0.0
    %860 = vmatprep.subr.mxu0 0.0
    %861 = vmatpush1.msra.mxu0 0.0
    %862 = vmatprep.subr.mxu0 0.0
    %863 = vmatpush1.msra.mxu0 0.0
    %864 = vmatprep.subr.mxu0 0.0
    %865 = vmatpush1.msra.mxu0 0.0
    %866 = vmatprep.subr.mxu0 0.0
    %867 = vmatpush1.msra.mxu0 0.0
    %868 = vmatprep.subr.mxu0 0.0
    %869 = vmatpush1.msra.mxu0 0.0
    %870 = vmatprep.subr.mxu0 0.0
    %871 = vmatpush1.msra.mxu0 0.0
    %872 = vmatprep.subr.mxu0 0.0
    %873 = vmatpush1.msra.mxu0 0.0
    %874 = vmatprep.subr.mxu0 0.0
    %875 = vmatpush1.msra.mxu0 0.0
    %876 = vmatprep.subr.mxu0 0.0
    %877 = vmatpush1.msra.mxu0 0.0
    %878 = vmatprep.subr.mxu0 0.0
    %879 = vmatpush1.msra.mxu0 0.0
    %880 = vmatprep.subr.mxu0 0.0
    %881 = vmatpush1.msra.mxu0 0.0
    %882 = vmatprep.subr.mxu0 0.0
    %883 = vmatpush1.msra.mxu0 0.0
    %884 = vmatprep.subr.mxu0 0.0
    %885 = vmatpush1.msra.mxu0 0.0
    %886 = vmatprep.subr.mxu0 0.0
    %887 = vmatpush1.msra.mxu0 0.0
    %888 = vmatprep.subr.mxu0 0.0
    %889 = vmatpush1.msra.mxu0 0.0
    %890 = vmatprep.subr.mxu0 0.0
    %891 = vmatpush1.msra.mxu0 0.0
    %892 = vmatprep.subr.mxu0 0.0
    %893 = vmatpush1.msra.mxu0 0.0
    %894 = vmatprep.subr.mxu0 0.0
    %895 = vmatpush1.msra.mxu0 0.0
    %896 = vmatprep.subr.mxu0 0.0
    %897 = vmatpush1.msra.mxu0 0.0
    %898 = vmatprep.subr.mxu0 0.0
    %899 = vmatpush1.msra.mxu0 0.0
    %900 = vmatprep.subr.mxu0 0.0
    %901 = vmatpush1.msra.mxu0 0.0
    %902 = vmatprep.mubr.f32.mxu0 0.0
    %903 = vmatmul.mubr.f32.gmra.mrb[0].mxu0 %v477
    %v904 = vpop.f32.mrb[0].mxu0
    %v905 = vadd.f32 0.0, %v904
    %v906 = vpop.f32.mrb[0].mxu0
    %v907 = vadd.f32 0.0, %v906
    %908 = vmatprep.mubr.f32.mxu0 0.0
    %909 = vmatmul.mubr.f32.gmra.mrb[0].mxu0 %v479
    %v910 = vpop.f32.mrb[0].mxu0
    %v911 = vadd.f32 0.0, %v910
    %v912 = vpop.f32.mrb[0].mxu0
    %v913 = vadd.f32 0.0, %v912
    %914 = vdwg.mxu0
    %v915 = vadd.f32 %v834, %v905
    %v916 = vadd.f32 %v835, %v907
    %v917 = vadd.f32 %v836, %v911
    %v918 = vadd.f32 %v837, %v913
    %v919 = vrot.slane %v80, 2
    %v920 = vrot.slane %v81, 2
    %v921 = vsel %vm473, %v919, %v920
    %v922 = vsel %vm105, %v921, 0
    %v924 = vsel %vm105, %v920, 0
    %926 = vmatprep.subr.mxu0 %v466
    %927 = vmatpush1.msra.mxu0 %v465
    %928 = vmatprep.subr.mxu0 %v468
    %929 = vmatpush1.msra.mxu0 %v467
    %930 = vmatprep.subr.mxu0 %v470
    %931 = vmatpush1.msra.mxu0 %v469
    %932 = vmatprep.subr.mxu0 %v472
    %933 = vmatpush1.msra.mxu0 %v471
    %934 = vmatprep.subr.mxu0 0.0
    %935 = vmatpush1.msra.mxu0 0.0
    %936 = vmatprep.subr.mxu0 0.0
    %937 = vmatpush1.msra.mxu0 0.0
    %938 = vmatprep.subr.mxu0 0.0
    %939 = vmatpush1.msra.mxu0 0.0
    %940 = vmatprep.subr.mxu0 0.0
    %941 = vmatpush1.msra.mxu0 0.0
    %942 = vmatprep.subr.mxu0 0.0
    %943 = vmatpush1.msra.mxu0 0.0
    %944 = vmatprep.subr.mxu0 0.0
    %945 = vmatpush1.msra.mxu0 0.0
    %946 = vmatprep.subr.mxu0 0.0
    %947 = vmatpush1.msra.mxu0 0.0
    %948 = vmatprep.subr.mxu0 0.0
    %949 = vmatpush1.msra.mxu0 0.0
    %950 = vmatprep.subr.mxu0 0.0
    %951 = vmatpush1.msra.mxu0 0.0
    %952 = vmatprep.subr.mxu0 0.0
    %953 = vmatpush1.msra.mxu0 0.0
    %954 = vmatprep.subr.mxu0 0.0
    %955 = vmatpush1.msra.mxu0 0.0
    %956 = vmatprep.subr.mxu0 0.0
    %957 = vmatpush1.msra.mxu0 0.0
    %958 = vmatprep.subr.mxu0 0.0
    %959 = vmatpush1.msra.mxu0 0.0
    %960 = vmatprep.subr.mxu0 0.0
    %961 = vmatpush1.msra.mxu0 0.0
    %962 = vmatprep.subr.mxu0 0.0
    %963 = vmatpush1.msra.mxu0 0.0
    %964 = vmatprep.subr.mxu0 0.0
    %965 = vmatpush1.msra.mxu0 0.0
    %966 = vmatprep.subr.mxu0 0.0
    %967 = vmatpush1.msra.mxu0 0.0
    %968 = vmatprep.subr.mxu0 0.0
    %969 = vmatpush1.msra.mxu0 0.0
    %970 = vmatprep.subr.mxu0 0.0
    %971 = vmatpush1.msra.mxu0 0.0
    %972 = vmatprep.subr.mxu0 0.0
    %973 = vmatpush1.msra.mxu0 0.0
    %974 = vmatprep.subr.mxu0 0.0
    %975 = vmatpush1.msra.mxu0 0.0
    %976 = vmatprep.subr.mxu0 0.0
    %977 = vmatpush1.msra.mxu0 0.0
    %978 = vmatprep.subr.mxu0 0.0
    %979 = vmatpush1.msra.mxu0 0.0
    %980 = vmatprep.subr.mxu0 0.0
    %981 = vmatpush1.msra.mxu0 0.0
    %982 = vmatprep.subr.mxu0 0.0
    %983 = vmatpush1.msra.mxu0 0.0
    %984 = vmatprep.subr.mxu0 0.0
    %985 = vmatpush1.msra.mxu0 0.0
    %986 = vmatprep.subr.mxu0 0.0
    %987 = vmatpush1.msra.mxu0 0.0
    %988 = vmatprep.subr.mxu0 0.0
    %989 = vmatpush1.msra.mxu0 0.0
    %990 = vmatprep.mubr.f32.mxu0 0.0
    %991 = vmatmul.mubr.f32.gmra.mrb[0].mxu0 %v922
    %v992 = vpop.f32.mrb[0].mxu0
    %v993 = vadd.f32 0.0, %v992
    %v994 = vpop.f32.mrb[0].mxu0
    %v995 = vadd.f32 0.0, %v994
    %996 = vmatprep.mubr.f32.mxu0 0.0
    %997 = vmatmul.mubr.f32.gmra.mrb[0].mxu0 %v924
    %v998 = vpop.f32.mrb[0].mxu0
    %v999 = vadd.f32 0.0, %v998
    %v1000 = vpop.f32.mrb[0].mxu0
    %v1001 = vadd.f32 0.0, %v1000
    %1002 = vdwg.mxu0
    %v1003 = vadd.f32 %v915, %v993
    %v1004 = vadd.f32 %v916, %v995
    %v1005 = vadd.f32 %v917, %v999
    %v1006 = vadd.f32 %v918, %v1001
    %v1007 = vadd.f32 %v1003, %v566
    %v1008 = vadd.f32 %v1004, %v570
    %v1009 = vadd.f32 %v1005, %v566
    %v1010 = vadd.f32 %v1006, %v570
    %v1011 = vxor.u32 %v1007, 2147483648
    %v1012 = vxor.u32 %v1008, 2147483648
    %v1013 = vxor.u32 %v1009, 2147483648
    %v1014 = vxor.u32 %v1010, 2147483648
    %v1015 = vmul.f32 %v1011, 1.442695
    %v1016 = vpow.pop %v1015
    %v1017 = vmul.f32 %v1012, 1.442695
    %v1018 = vpow.pop %v1017
    %v1019 = vmul.f32 %v1013, 1.442695
    %v1020 = vpow.pop %v1019
    %v1021 = vmul.f32 %v1014, 1.442695
    %v1022 = vpow.pop %v1021
    %v1023 = vadd.f32 %v1016, 1.0
    %v1024 = vadd.f32 %v1018, 1.0
    %v1025 = vadd.f32 %v1020, 1.0
    %v1026 = vadd.f32 %v1022, 1.0
    %v1027 = vrcp.pop %v1023
    %v1028 = vmul.f32 1.0, %v1027
    %v1029 = vrcp.pop %v1024
    %v1030 = vmul.f32 1.0, %v1029
    %v1031 = vrcp.pop %v1025
    %v1032 = vmul.f32 1.0, %v1031
    %v1033 = vrcp.pop %v1026
    %v1034 = vmul.f32 1.0, %v1033
    %v1035 = vadd.f32 %v1028, %v1030
    %v1036 = vadd.f32 %v1032, %v1034
    %v1037 = vadd.f32 %v601, %v1035
    %v1038 = vadd.f32 %v602, %v1036
    %v1039 = vmul.f32 %v1037, 0.25
    %v1040 = vmul.f32 %v1038, 0.25
    %1041 = vmatprep.subr.mxu0 %v98
    %1042 = vmatpush1.msra.mxu0 %v97
    %1043 = vmatprep.subr.mxu0 %v100
    %1044 = vmatpush1.msra.mxu0 %v99
    %1045 = vmatprep.subr.mxu0 %v102
    %1046 = vmatpush1.msra.mxu0 %v101
    %1047 = vmatprep.subr.mxu0 %v104
    %1048 = vmatpush1.msra.mxu0 %v103
    %1049 = vmatprep.subr.mxu0 0.0
    %1050 = vmatpush1.msra.mxu0 0.0
    %1051 = vmatprep.subr.mxu0 0.0
    %1052 = vmatpush1.msra.mxu0 0.0
    %1053 = vmatprep.subr.mxu0 0.0
    %1054 = vmatpush1.msra.mxu0 0.0
    %1055 = vmatprep.subr.mxu0 0.0
    %1056 = vmatpush1.msra.mxu0 0.0
    %1057 = vmatprep.subr.mxu0 0.0
    %1058 = vmatpush1.msra.mxu0 0.0
    %1059 = vmatprep.subr.mxu0 0.0
    %1060 = vmatpush1.msra.mxu0 0.0
    %1061 = vmatprep.subr.mxu0 0.0
    %1062 = vmatpush1.msra.mxu0 0.0
    %1063 = vmatprep.subr.mxu0 0.0
    %1064 = vmatpush1.msra.mxu0 0.0
    %1065 = vmatprep.subr.mxu0 0.0
    %1066 = vmatpush1.msra.mxu0 0.0
    %1067 = vmatprep.subr.mxu0 0.0
    %1068 = vmatpush1.msra.mxu0 0.0
    %1069 = vmatprep.subr.mxu0 0.0
    %1070 = vmatpush1.msra.mxu0 0.0
    %1071 = vmatprep.subr.mxu0 0.0
    %1072 = vmatpush1.msra.mxu0 0.0
    %1073 = vmatprep.subr.mxu0 0.0
    %1074 = vmatpush1.msra.mxu0 0.0
    %1075 = vmatprep.subr.mxu0 0.0
    %1076 = vmatpush1.msra.mxu0 0.0
    %1077 = vmatprep.subr.mxu0 0.0
    %1078 = vmatpush1.msra.mxu0 0.0
    %1079 = vmatprep.subr.mxu0 0.0
    %1080 = vmatpush1.msra.mxu0 0.0
    %1081 = vmatprep.subr.mxu0 0.0
    %1082 = vmatpush1.msra.mxu0 0.0
    %1083 = vmatprep.subr.mxu0 0.0
    %1084 = vmatpush1.msra.mxu0 0.0
    %1085 = vmatprep.subr.mxu0 0.0
    %1086 = vmatpush1.msra.mxu0 0.0
    %1087 = vmatprep.subr.mxu0 0.0
    %1088 = vmatpush1.msra.mxu0 0.0
    %1089 = vmatprep.subr.mxu0 0.0
    %1090 = vmatpush1.msra.mxu0 0.0
    %1091 = vmatprep.subr.mxu0 0.0
    %1092 = vmatpush1.msra.mxu0 0.0
    %1093 = vmatprep.subr.mxu0 0.0
    %1094 = vmatpush1.msra.mxu0 0.0
    %1095 = vmatprep.subr.mxu0 0.0
    %1096 = vmatpush1.msra.mxu0 0.0
    %1097 = vmatprep.subr.mxu0 0.0
    %1098 = vmatpush1.msra.mxu0 0.0
    %1099 = vmatprep.subr.mxu0 0.0
    %1100 = vmatpush1.msra.mxu0 0.0
    %1101 = vmatprep.subr.mxu0 0.0
    %1102 = vmatpush1.msra.mxu0 0.0
    %1103 = vmatprep.subr.mxu0 0.0
    %1104 = vmatpush1.msra.mxu0 0.0
    %1105 = vmatprep.mubr.f32.mxu0 0.0
    %1106 = vmatmul.mubr.f32.gmra.mrb[0].mxu0 %v378
    %v1107 = vpop.f32.mrb[0].mxu0
    %v1108 = vadd.f32 0.0, %v1107
    %v1109 = vpop.f32.mrb[0].mxu0
    %v1110 = vadd.f32 0.0, %v1109
    %1111 = vmatprep.mubr.f32.mxu0 0.0
    %1112 = vmatmul.mubr.f32.gmra.mrb[0].mxu0 %v381
    %v1113 = vpop.f32.mrb[0].mxu0
    %v1114 = vadd.f32 0.0, %v1113
    %v1115 = vpop.f32.mrb[0].mxu0
    %v1116 = vadd.f32 0.0, %v1115
    %1117 = vdwg.mxu0
    %1118 = vmatprep.subr.mxu0 %v89
    %1119 = vmatpush1.msra.mxu0 %v88
    %1120 = vmatprep.subr.mxu0 %v91
    %1121 = vmatpush1.msra.mxu0 %v90
    %1122 = vmatprep.subr.mxu0 %v93
    %1123 = vmatpush1.msra.mxu0 %v92
    %1124 = vmatprep.subr.mxu0 %v95
    %1125 = vmatpush1.msra.mxu0 %v94
    %1126 = vmatprep.subr.mxu0 0.0
    %1127 = vmatpush1.msra.mxu0 0.0
    %1128 = vmatprep.subr.mxu0 0.0
    %1129 = vmatpush1.msra.mxu0 0.0
    %1130 = vmatprep.subr.mxu0 0.0
    %1131 = vmatpush1.msra.mxu0 0.0
    %1132 = vmatprep.subr.mxu0 0.0
    %1133 = vmatpush1.msra.mxu0 0.0
    %1134 = vmatprep.subr.mxu0 0.0
    %1135 = vmatpush1.msra.mxu0 0.0
    %1136 = vmatprep.subr.mxu0 0.0
    %1137 = vmatpush1.msra.mxu0 0.0
    %1138 = vmatprep.subr.mxu0 0.0
    %1139 = vmatpush1.msra.mxu0 0.0
    %1140 = vmatprep.subr.mxu0 0.0
    %1141 = vmatpush1.msra.mxu0 0.0
    %1142 = vmatprep.subr.mxu0 0.0
    %1143 = vmatpush1.msra.mxu0 0.0
    %1144 = vmatprep.subr.mxu0 0.0
    %1145 = vmatpush1.msra.mxu0 0.0
    %1146 = vmatprep.subr.mxu0 0.0
    %1147 = vmatpush1.msra.mxu0 0.0
    %1148 = vmatprep.subr.mxu0 0.0
    %1149 = vmatpush1.msra.mxu0 0.0
    %1150 = vmatprep.subr.mxu0 0.0
    %1151 = vmatpush1.msra.mxu0 0.0
    %1152 = vmatprep.subr.mxu0 0.0
    %1153 = vmatpush1.msra.mxu0 0.0
    %1154 = vmatprep.subr.mxu0 0.0
    %1155 = vmatpush1.msra.mxu0 0.0
    %1156 = vmatprep.subr.mxu0 0.0
    %1157 = vmatpush1.msra.mxu0 0.0
    %1158 = vmatprep.subr.mxu0 0.0
    %1159 = vmatpush1.msra.mxu0 0.0
    %1160 = vmatprep.subr.mxu0 0.0
    %1161 = vmatpush1.msra.mxu0 0.0
    %1162 = vmatprep.subr.mxu0 0.0
    %1163 = vmatpush1.msra.mxu0 0.0
    %1164 = vmatprep.subr.mxu0 0.0
    %1165 = vmatpush1.msra.mxu0 0.0
    %1166 = vmatprep.subr.mxu0 0.0
    %1167 = vmatpush1.msra.mxu0 0.0
    %1168 = vmatprep.subr.mxu0 0.0
    %1169 = vmatpush1.msra.mxu0 0.0
    %1170 = vmatprep.subr.mxu0 0.0
    %1171 = vmatpush1.msra.mxu0 0.0
    %1172 = vmatprep.subr.mxu0 0.0
    %1173 = vmatpush1.msra.mxu0 0.0
    %1174 = vmatprep.subr.mxu0 0.0
    %1175 = vmatpush1.msra.mxu0 0.0
    %1176 = vmatprep.subr.mxu0 0.0
    %1177 = vmatpush1.msra.mxu0 0.0
    %1178 = vmatprep.subr.mxu0 0.0
    %1179 = vmatpush1.msra.mxu0 0.0
    %1180 = vmatprep.subr.mxu0 0.0
    %1181 = vmatpush1.msra.mxu0 0.0
    %1182 = vmatprep.mubr.f32.mxu0 0.0
    %1183 = vmatmul.mubr.f32.gmra.mrb[0].mxu0 %v282
    %v1184 = vpop.f32.mrb[0].mxu0
    %v1185 = vadd.f32 %v1108, %v1184
    %v1186 = vpop.f32.mrb[0].mxu0
    %v1187 = vadd.f32 %v1110, %v1186
    %1188 = vmatprep.mubr.f32.mxu0 0.0
    %1189 = vmatmul.mubr.f32.gmra.mrb[0].mxu0 %v285
    %v1190 = vpop.f32.mrb[0].mxu0
    %v1191 = vadd.f32 %v1114, %v1190
    %v1192 = vpop.f32.mrb[0].mxu0
    %v1193 = vadd.f32 %v1116, %v1192
    %1194 = vdwg.mxu0
    %1195 = vmatprep.subr.mxu0 %v274
    %1196 = vmatpush1.msra.mxu0 %v273
    %1197 = vmatprep.subr.mxu0 %v276
    %1198 = vmatpush1.msra.mxu0 %v275
    %1199 = vmatprep.subr.mxu0 %v278
    %1200 = vmatpush1.msra.mxu0 %v277
    %1201 = vmatprep.subr.mxu0 %v280
    %1202 = vmatpush1.msra.mxu0 %v279
    %1203 = vmatprep.subr.mxu0 0.0
    %1204 = vmatpush1.msra.mxu0 0.0
    %1205 = vmatprep.subr.mxu0 0.0
    %1206 = vmatpush1.msra.mxu0 0.0
    %1207 = vmatprep.subr.mxu0 0.0
    %1208 = vmatpush1.msra.mxu0 0.0
    %1209 = vmatprep.subr.mxu0 0.0
    %1210 = vmatpush1.msra.mxu0 0.0
    %1211 = vmatprep.subr.mxu0 0.0
    %1212 = vmatpush1.msra.mxu0 0.0
    %1213 = vmatprep.subr.mxu0 0.0
    %1214 = vmatpush1.msra.mxu0 0.0
    %1215 = vmatprep.subr.mxu0 0.0
    %1216 = vmatpush1.msra.mxu0 0.0
    %1217 = vmatprep.subr.mxu0 0.0
    %1218 = vmatpush1.msra.mxu0 0.0
    %1219 = vmatprep.subr.mxu0 0.0
    %1220 = vmatpush1.msra.mxu0 0.0
    %1221 = vmatprep.subr.mxu0 0.0
    %1222 = vmatpush1.msra.mxu0 0.0
    %1223 = vmatprep.subr.mxu0 0.0
    %1224 = vmatpush1.msra.mxu0 0.0
    %1225 = vmatprep.subr.mxu0 0.0
    %1226 = vmatpush1.msra.mxu0 0.0
    %1227 = vmatprep.subr.mxu0 0.0
    %1228 = vmatpush1.msra.mxu0 0.0
    %1229 = vmatprep.subr.mxu0 0.0
    %1230 = vmatpush1.msra.mxu0 0.0
    %1231 = vmatprep.subr.mxu0 0.0
    %1232 = vmatpush1.msra.mxu0 0.0
    %1233 = vmatprep.subr.mxu0 0.0
    %1234 = vmatpush1.msra.mxu0 0.0
    %1235 = vmatprep.subr.mxu0 0.0
    %1236 = vmatpush1.msra.mxu0 0.0
    %1237 = vmatprep.subr.mxu0 0.0
    %1238 = vmatpush1.msra.mxu0 0.0
    %1239 = vmatprep.subr.mxu0 0.0
    %1240 = vmatpush1.msra.mxu0 0.0
    %1241 = vmatprep.subr.mxu0 0.0
    %1242 = vmatpush1.msra.mxu0 0.0
    %1243 = vmatprep.subr.mxu0 0.0
    %1244 = vmatpush1.msra.mxu0 0.0
    %1245 = vmatprep.subr.mxu0 0.0
    %1246 = vmatpush1.msra.mxu0 0.0
    %1247 = vmatprep.subr.mxu0 0.0
    %1248 = vmatpush1.msra.mxu0 0.0
    %1249 = vmatprep.subr.mxu0 0.0
    %1250 = vmatpush1.msra.mxu0 0.0
    %1251 = vmatprep.subr.mxu0 0.0
    %1252 = vmatpush1.msra.mxu0 0.0
    %1253 = vmatprep.subr.mxu0 0.0
    %1254 = vmatpush1.msra.mxu0 0.0
    %1255 = vmatprep.subr.mxu0 0.0
    %1256 = vmatpush1.msra.mxu0 0.0
    %1257 = vmatprep.subr.mxu0 0.0
    %1258 = vmatpush1.msra.mxu0 0.0
    %1259 = vmatprep.mubr.f32.mxu0 0.0
    %1260 = vmatmul.mubr.f32.gmra.mrb[0].mxu0 %v477
    %v1261 = vpop.f32.mrb[0].mxu0
    %v1262 = vadd.f32 0.0, %v1261
    %v1263 = vpop.f32.mrb[0].mxu0
    %v1264 = vadd.f32 0.0, %v1263
    %1265 = vmatprep.mubr.f32.mxu0 0.0
    %1266 = vmatmul.mubr.f32.gmra.mrb[0].mxu0 %v479
    %v1267 = vpop.f32.mrb[0].mxu0
    %v1268 = vadd.f32 0.0, %v1267
    %v1269 = vpop.f32.mrb[0].mxu0
    %v1270 = vadd.f32 0.0, %v1269
    %1271 = vdwg.mxu0
    %v1272 = vadd.f32 %v1185, %v1262
    %v1273 = vadd.f32 %v1187, %v1264
    %v1274 = vadd.f32 %v1191, %v1268
    %v1275 = vadd.f32 %v1193, %v1270
    %1276 = vmatprep.subr.mxu0 %v370
    %1277 = vmatpush1.msra.mxu0 %v369
    %1278 = vmatprep.subr.mxu0 %v372
    %1279 = vmatpush1.msra.mxu0 %v371
    %1280 = vmatprep.subr.mxu0 %v374
    %1281 = vmatpush1.msra.mxu0 %v373
    %1282 = vmatprep.subr.mxu0 %v376
    %1283 = vmatpush1.msra.mxu0 %v375
    %1284 = vmatprep.subr.mxu0 0.0
    %1285 = vmatpush1.msra.mxu0 0.0
    %1286 = vmatprep.subr.mxu0 0.0
    %1287 = vmatpush1.msra.mxu0 0.0
    %1288 = vmatprep.subr.mxu0 0.0
    %1289 = vmatpush1.msra.mxu0 0.0
    %1290 = vmatprep.subr.mxu0 0.0
    %1291 = vmatpush1.msra.mxu0 0.0
    %1292 = vmatprep.subr.mxu0 0.0
    %1293 = vmatpush1.msra.mxu0 0.0
    %1294 = vmatprep.subr.mxu0 0.0
    %1295 = vmatpush1.msra.mxu0 0.0
    %1296 = vmatprep.subr.mxu0 0.0
    %1297 = vmatpush1.msra.mxu0 0.0
    %1298 = vmatprep.subr.mxu0 0.0
    %1299 = vmatpush1.msra.mxu0 0.0
    %1300 = vmatprep.subr.mxu0 0.0
    %1301 = vmatpush1.msra.mxu0 0.0
    %1302 = vmatprep.subr.mxu0 0.0
    %1303 = vmatpush1.msra.mxu0 0.0
    %1304 = vmatprep.subr.mxu0 0.0
    %1305 = vmatpush1.msra.mxu0 0.0
    %1306 = vmatprep.subr.mxu0 0.0
    %1307 = vmatpush1.msra.mxu0 0.0
    %1308 = vmatprep.subr.mxu0 0.0
    %1309 = vmatpush1.msra.mxu0 0.0
    %1310 = vmatprep.subr.mxu0 0.0
    %1311 = vmatpush1.msra.mxu0 0.0
    %1312 = vmatprep.subr.mxu0 0.0
    %1313 = vmatpush1.msra.mxu0 0.0
    %1314 = vmatprep.subr.mxu0 0.0
    %1315 = vmatpush1.msra.mxu0 0.0
    %1316 = vmatprep.subr.mxu0 0.0
    %1317 = vmatpush1.msra.mxu0 0.0
    %1318 = vmatprep.subr.mxu0 0.0
    %1319 = vmatpush1.msra.mxu0 0.0
    %1320 = vmatprep.subr.mxu0 0.0
    %1321 = vmatpush1.msra.mxu0 0.0
    %1322 = vmatprep.subr.mxu0 0.0
    %1323 = vmatpush1.msra.mxu0 0.0
    %1324 = vmatprep.subr.mxu0 0.0
    %1325 = vmatpush1.msra.mxu0 0.0
    %1326 = vmatprep.subr.mxu0 0.0
    %1327 = vmatpush1.msra.mxu0 0.0
    %1328 = vmatprep.subr.mxu0 0.0
    %1329 = vmatpush1.msra.mxu0 0.0
    %1330 = vmatprep.subr.mxu0 0.0
    %1331 = vmatpush1.msra.mxu0 0.0
    %1332 = vmatprep.subr.mxu0 0.0
    %1333 = vmatpush1.msra.mxu0 0.0
    %1334 = vmatprep.subr.mxu0 0.0
    %1335 = vmatpush1.msra.mxu0 0.0
    %1336 = vmatprep.subr.mxu0 0.0
    %1337 = vmatpush1.msra.mxu0 0.0
    %1338 = vmatprep.subr.mxu0 0.0
    %1339 = vmatpush1.msra.mxu0 0.0
    %1340 = vmatprep.mubr.f32.mxu0 0.0
    %1341 = vmatmul.mubr.f32.gmra.mrb[0].mxu0 %v922
    %v1342 = vpop.f32.mrb[0].mxu0
    %v1343 = vadd.f32 0.0, %v1342
    %v1344 = vpop.f32.mrb[0].mxu0
    %v1345 = vadd.f32 0.0, %v1344
    %1346 = vmatprep.mubr.f32.mxu0 0.0
    %1347 = vmatmul.mubr.f32.gmra.mrb[0].mxu0 %v924
    %v1348 = vpop.f32.mrb[0].mxu0
    %v1349 = vadd.f32 0.0, %v1348
    %v1350 = vpop.f32.mrb[0].mxu0
    %v1351 = vadd.f32 0.0, %v1350
    %1352 = vdwg.mxu0
    %v1353 = vadd.f32 %v1272, %v1343
    %v1354 = vadd.f32 %v1273, %v1345
    %v1355 = vadd.f32 %v1274, %v1349
    %v1356 = vadd.f32 %v1275, %v1351
    %v1357 = vrot.slane %v82, 2
    %v1358 = vrot.slane %v83, 2
    %v1359 = vsel %vm473, %v1357, %v1358
    %v1360 = vsel %vm105, %v1359, 0
    %v1362 = vsel %vm105, %v1358, 0
    %1364 = vmatprep.subr.mxu0 %v466
    %1365 = vmatpush1.msra.mxu0 %v465
    %1366 = vmatprep.subr.mxu0 %v468
    %1367 = vmatpush1.msra.mxu0 %v467
    %1368 = vmatprep.subr.mxu0 %v470
    %1369 = vmatpush1.msra.mxu0 %v469
    %1370 = vmatprep.subr.mxu0 %v472
    %1371 = vmatpush1.msra.mxu0 %v471
    %1372 = vmatprep.subr.mxu0 0.0
    %1373 = vmatpush1.msra.mxu0 0.0
    %1374 = vmatprep.subr.mxu0 0.0
    %1375 = vmatpush1.msra.mxu0 0.0
    %1376 = vmatprep.subr.mxu0 0.0
    %1377 = vmatpush1.msra.mxu0 0.0
    %1378 = vmatprep.subr.mxu0 0.0
    %1379 = vmatpush1.msra.mxu0 0.0
    %1380 = vmatprep.subr.mxu0 0.0
    %1381 = vmatpush1.msra.mxu0 0.0
    %1382 = vmatprep.subr.mxu0 0.0
    %1383 = vmatpush1.msra.mxu0 0.0
    %1384 = vmatprep.subr.mxu0 0.0
    %1385 = vmatpush1.msra.mxu0 0.0
    %1386 = vmatprep.subr.mxu0 0.0
    %1387 = vmatpush1.msra.mxu0 0.0
    %1388 = vmatprep.subr.mxu0 0.0
    %1389 = vmatpush1.msra.mxu0 0.0
    %1390 = vmatprep.subr.mxu0 0.0
    %1391 = vmatpush1.msra.mxu0 0.0
    %1392 = vmatprep.subr.mxu0 0.0
    %1393 = vmatpush1.msra.mxu0 0.0
    %1394 = vmatprep.subr.mxu0 0.0
    %1395 = vmatpush1.msra.mxu0 0.0
    %1396 = vmatprep.subr.mxu0 0.0
    %1397 = vmatpush1.msra.mxu0 0.0
    %1398 = vmatprep.subr.mxu0 0.0
    %1399 = vmatpush1.msra.mxu0 0.0
    %1400 = vmatprep.subr.mxu0 0.0
    %1401 = vmatpush1.msra.mxu0 0.0
    %1402 = vmatprep.subr.mxu0 0.0
    %1403 = vmatpush1.msra.mxu0 0.0
    %1404 = vmatprep.subr.mxu0 0.0
    %1405 = vmatpush1.msra.mxu0 0.0
    %1406 = vmatprep.subr.mxu0 0.0
    %1407 = vmatpush1.msra.mxu0 0.0
    %1408 = vmatprep.subr.mxu0 0.0
    %1409 = vmatpush1.msra.mxu0 0.0
    %1410 = vmatprep.subr.mxu0 0.0
    %1411 = vmatpush1.msra.mxu0 0.0
    %1412 = vmatprep.subr.mxu0 0.0
    %1413 = vmatpush1.msra.mxu0 0.0
    %1414 = vmatprep.subr.mxu0 0.0
    %1415 = vmatpush1.msra.mxu0 0.0
    %1416 = vmatprep.subr.mxu0 0.0
    %1417 = vmatpush1.msra.mxu0 0.0
    %1418 = vmatprep.subr.mxu0 0.0
    %1419 = vmatpush1.msra.mxu0 0.0
    %1420 = vmatprep.subr.mxu0 0.0
    %1421 = vmatpush1.msra.mxu0 0.0
    %1422 = vmatprep.subr.mxu0 0.0
    %1423 = vmatpush1.msra.mxu0 0.0
    %1424 = vmatprep.subr.mxu0 0.0
    %1425 = vmatpush1.msra.mxu0 0.0
    %1426 = vmatprep.subr.mxu0 0.0
    %1427 = vmatpush1.msra.mxu0 0.0
    %1428 = vmatprep.mubr.f32.mxu0 0.0
    %1429 = vmatmul.mubr.f32.gmra.mrb[0].mxu0 %v1360
    %v1430 = vpop.f32.mrb[0].mxu0
    %v1431 = vadd.f32 0.0, %v1430
    %v1432 = vpop.f32.mrb[0].mxu0
    %v1433 = vadd.f32 0.0, %v1432
    %1434 = vmatprep.mubr.f32.mxu0 0.0
    %1435 = vmatmul.mubr.f32.gmra.mrb[0].mxu0 %v1362
    %v1436 = vpop.f32.mrb[0].mxu0
    %v1437 = vadd.f32 0.0, %v1436
    %v1438 = vpop.f32.mrb[0].mxu0
    %v1439 = vadd.f32 0.0, %v1438
    %1440 = vdwg.mxu0
    %v1441 = vadd.f32 %v1353, %v1431
    %v1442 = vadd.f32 %v1354, %v1433
    %v1443 = vadd.f32 %v1355, %v1437
    %v1444 = vadd.f32 %v1356, %v1439
    %v1445 = vadd.f32 %v1441, %v566
    %v1446 = vadd.f32 %v1442, %v570
    %v1447 = vadd.f32 %v1443, %v566
    %v1448 = vadd.f32 %v1444, %v570
    %v1449 = vxor.u32 %v1445, 2147483648
    %v1450 = vxor.u32 %v1446, 2147483648
    %v1451 = vxor.u32 %v1447, 2147483648
    %v1452 = vxor.u32 %v1448, 2147483648
    %v1453 = vmul.f32 %v1449, 1.442695
    %v1454 = vpow.pop %v1453
    %v1455 = vmul.f32 %v1450, 1.442695
    %v1456 = vpow.pop %v1455
    %v1457 = vmul.f32 %v1451, 1.442695
    %v1458 = vpow.pop %v1457
    %v1459 = vmul.f32 %v1452, 1.442695
    %v1460 = vpow.pop %v1459
    %v1461 = vadd.f32 %v1454, 1.0
    %v1462 = vadd.f32 %v1456, 1.0
    %v1463 = vadd.f32 %v1458, 1.0
    %v1464 = vadd.f32 %v1460, 1.0
    %v1465 = vrcp.pop %v1461
    %v1466 = vmul.f32 1.0, %v1465
    %v1467 = vrcp.pop %v1462
    %v1468 = vmul.f32 1.0, %v1467
    %v1469 = vrcp.pop %v1463
    %v1470 = vmul.f32 1.0, %v1469
    %v1471 = vrcp.pop %v1464
    %v1472 = vmul.f32 1.0, %v1471
    %v1473 = vadd.f32 %v1466, %v1468
    %v1474 = vadd.f32 %v1470, %v1472
    %1475 = vmatprep.subr.mxu0 %v98
    %1476 = vmatpush1.msra.mxu0 %v97
    %1477 = vmatprep.subr.mxu0 %v100
    %1478 = vmatpush1.msra.mxu0 %v99
    %1479 = vmatprep.subr.mxu0 %v102
    %1480 = vmatpush1.msra.mxu0 %v101
    %1481 = vmatprep.subr.mxu0 %v104
    %1482 = vmatpush1.msra.mxu0 %v103
    %1483 = vmatprep.subr.mxu0 0.0
    %1484 = vmatpush1.msra.mxu0 0.0
    %1485 = vmatprep.subr.mxu0 0.0
    %1486 = vmatpush1.msra.mxu0 0.0
    %1487 = vmatprep.subr.mxu0 0.0
    %1488 = vmatpush1.msra.mxu0 0.0
    %1489 = vmatprep.subr.mxu0 0.0
    %1490 = vmatpush1.msra.mxu0 0.0
    %1491 = vmatprep.subr.mxu0 0.0
    %1492 = vmatpush1.msra.mxu0 0.0
    %1493 = vmatprep.subr.mxu0 0.0
    %1494 = vmatpush1.msra.mxu0 0.0
    %1495 = vmatprep.subr.mxu0 0.0
    %1496 = vmatpush1.msra.mxu0 0.0
    %1497 = vmatprep.subr.mxu0 0.0
    %1498 = vmatpush1.msra.mxu0 0.0
    %1499 = vmatprep.subr.mxu0 0.0
    %1500 = vmatpush1.msra.mxu0 0.0
    %1501 = vmatprep.subr.mxu0 0.0
    %1502 = vmatpush1.msra.mxu0 0.0
    %1503 = vmatprep.subr.mxu0 0.0
    %1504 = vmatpush1.msra.mxu0 0.0
    %1505 = vmatprep.subr.mxu0 0.0
    %1506 = vmatpush1.msra.mxu0 0.0
    %1507 = vmatprep.subr.mxu0 0.0
    %1508 = vmatpush1.msra.mxu0 0.0
    %1509 = vmatprep.subr.mxu0 0.0
    %1510 = vmatpush1.msra.mxu0 0.0
    %1511 = vmatprep.subr.mxu0 0.0
    %1512 = vmatpush1.msra.mxu0 0.0
    %1513 = vmatprep.subr.mxu0 0.0
    %1514 = vmatpush1.msra.mxu0 0.0
    %1515 = vmatprep.subr.mxu0 0.0
    %1516 = vmatpush1.msra.mxu0 0.0
    %1517 = vmatprep.subr.mxu0 0.0
    %1518 = vmatpush1.msra.mxu0 0.0
    %1519 = vmatprep.subr.mxu0 0.0
    %1520 = vmatpush1.msra.mxu0 0.0
    %1521 = vmatprep.subr.mxu0 0.0
    %1522 = vmatpush1.msra.mxu0 0.0
    %1523 = vmatprep.subr.mxu0 0.0
    %1524 = vmatpush1.msra.mxu0 0.0
    %1525 = vmatprep.subr.mxu0 0.0
    %1526 = vmatpush1.msra.mxu0 0.0
    %1527 = vmatprep.subr.mxu0 0.0
    %1528 = vmatpush1.msra.mxu0 0.0
    %1529 = vmatprep.subr.mxu0 0.0
    %1530 = vmatpush1.msra.mxu0 0.0
    %1531 = vmatprep.subr.mxu0 0.0
    %1532 = vmatpush1.msra.mxu0 0.0
    %1533 = vmatprep.subr.mxu0 0.0
    %1534 = vmatpush1.msra.mxu0 0.0
    %1535 = vmatprep.subr.mxu0 0.0
    %1536 = vmatpush1.msra.mxu0 0.0
    %1537 = vmatprep.subr.mxu0 0.0
    %1538 = vmatpush1.msra.mxu0 0.0
    %1539 = vmatprep.mubr.f32.mxu0 0.0
    %1540 = vmatmul.mubr.f32.gmra.mrb[0].mxu0 %v477
    %v1541 = vpop.f32.mrb[0].mxu0
    %v1542 = vadd.f32 0.0, %v1541
    %v1543 = vpop.f32.mrb[0].mxu0
    %v1544 = vadd.f32 0.0, %v1543
    %1545 = vmatprep.mubr.f32.mxu0 0.0
    %1546 = vmatmul.mubr.f32.gmra.mrb[0].mxu0 %v479
    %v1547 = vpop.f32.mrb[0].mxu0
    %v1548 = vadd.f32 0.0, %v1547
    %v1549 = vpop.f32.mrb[0].mxu0
    %v1550 = vadd.f32 0.0, %v1549
    %1551 = vdwg.mxu0
    %1552 = vmatprep.subr.mxu0 %v89
    %1553 = vmatpush1.msra.mxu0 %v88
    %1554 = vmatprep.subr.mxu0 %v91
    %1555 = vmatpush1.msra.mxu0 %v90
    %1556 = vmatprep.subr.mxu0 %v93
    %1557 = vmatpush1.msra.mxu0 %v92
    %1558 = vmatprep.subr.mxu0 %v95
    %1559 = vmatpush1.msra.mxu0 %v94
    %1560 = vmatprep.subr.mxu0 0.0
    %1561 = vmatpush1.msra.mxu0 0.0
    %1562 = vmatprep.subr.mxu0 0.0
    %1563 = vmatpush1.msra.mxu0 0.0
    %1564 = vmatprep.subr.mxu0 0.0
    %1565 = vmatpush1.msra.mxu0 0.0
    %1566 = vmatprep.subr.mxu0 0.0
    %1567 = vmatpush1.msra.mxu0 0.0
    %1568 = vmatprep.subr.mxu0 0.0
    %1569 = vmatpush1.msra.mxu0 0.0
    %1570 = vmatprep.subr.mxu0 0.0
    %1571 = vmatpush1.msra.mxu0 0.0
    %1572 = vmatprep.subr.mxu0 0.0
    %1573 = vmatpush1.msra.mxu0 0.0
    %1574 = vmatprep.subr.mxu0 0.0
    %1575 = vmatpush1.msra.mxu0 0.0
    %1576 = vmatprep.subr.mxu0 0.0
    %1577 = vmatpush1.msra.mxu0 0.0
    %1578 = vmatprep.subr.mxu0 0.0
    %1579 = vmatpush1.msra.mxu0 0.0
    %1580 = vmatprep.subr.mxu0 0.0
    %1581 = vmatpush1.msra.mxu0 0.0
    %1582 = vmatprep.subr.mxu0 0.0
    %1583 = vmatpush1.msra.mxu0 0.0
    %1584 = vmatprep.subr.mxu0 0.0
    %1585 = vmatpush1.msra.mxu0 0.0
    %1586 = vmatprep.subr.mxu0 0.0
    %1587 = vmatpush1.msra.mxu0 0.0
    %1588 = vmatprep.subr.mxu0 0.0
    %1589 = vmatpush1.msra.mxu0 0.0
    %1590 = vmatprep.subr.mxu0 0.0
    %1591 = vmatpush1.msra.mxu0 0.0
    %1592 = vmatprep.subr.mxu0 0.0
    %1593 = vmatpush1.msra.mxu0 0.0
    %1594 = vmatprep.subr.mxu0 0.0
    %1595 = vmatpush1.msra.mxu0 0.0
    %1596 = vmatprep.subr.mxu0 0.0
    %1597 = vmatpush1.msra.mxu0 0.0
    %1598 = vmatprep.subr.mxu0 0.0
    %1599 = vmatpush1.msra.mxu0 0.0
    %1600 = vmatprep.subr.mxu0 0.0
    %1601 = vmatpush1.msra.mxu0 0.0
    %1602 = vmatprep.subr.mxu0 0.0
    %1603 = vmatpush1.msra.mxu0 0.0
    %1604 = vmatprep.subr.mxu0 0.0
    %1605 = vmatpush1.msra.mxu0 0.0
    %1606 = vmatprep.subr.mxu0 0.0
    %1607 = vmatpush1.msra.mxu0 0.0
    %1608 = vmatprep.subr.mxu0 0.0
    %1609 = vmatpush1.msra.mxu0 0.0
    %1610 = vmatprep.subr.mxu0 0.0
    %1611 = vmatpush1.msra.mxu0 0.0
    %1612 = vmatprep.subr.mxu0 0.0
    %1613 = vmatpush1.msra.mxu0 0.0
    %1614 = vmatprep.subr.mxu0 0.0
    %1615 = vmatpush1.msra.mxu0 0.0
    %1616 = vmatprep.mubr.f32.mxu0 0.0
    %1617 = vmatmul.mubr.f32.gmra.mrb[0].mxu0 %v378
    %v1618 = vpop.f32.mrb[0].mxu0
    %v1619 = vadd.f32 %v1542, %v1618
    %v1620 = vpop.f32.mrb[0].mxu0
    %v1621 = vadd.f32 %v1544, %v1620
    %1622 = vmatprep.mubr.f32.mxu0 0.0
    %1623 = vmatmul.mubr.f32.gmra.mrb[0].mxu0 %v381
    %v1624 = vpop.f32.mrb[0].mxu0
    %v1625 = vadd.f32 %v1548, %v1624
    %v1626 = vpop.f32.mrb[0].mxu0
    %v1627 = vadd.f32 %v1550, %v1626
    %1628 = vdwg.mxu0
    %1629 = vmatprep.subr.mxu0 %v274
    %1630 = vmatpush1.msra.mxu0 %v273
    %1631 = vmatprep.subr.mxu0 %v276
    %1632 = vmatpush1.msra.mxu0 %v275
    %1633 = vmatprep.subr.mxu0 %v278
    %1634 = vmatpush1.msra.mxu0 %v277
    %1635 = vmatprep.subr.mxu0 %v280
    %1636 = vmatpush1.msra.mxu0 %v279
    %1637 = vmatprep.subr.mxu0 0.0
    %1638 = vmatpush1.msra.mxu0 0.0
    %1639 = vmatprep.subr.mxu0 0.0
    %1640 = vmatpush1.msra.mxu0 0.0
    %1641 = vmatprep.subr.mxu0 0.0
    %1642 = vmatpush1.msra.mxu0 0.0
    %1643 = vmatprep.subr.mxu0 0.0
    %1644 = vmatpush1.msra.mxu0 0.0
    %1645 = vmatprep.subr.mxu0 0.0
    %1646 = vmatpush1.msra.mxu0 0.0
    %1647 = vmatprep.subr.mxu0 0.0
    %1648 = vmatpush1.msra.mxu0 0.0
    %1649 = vmatprep.subr.mxu0 0.0
    %1650 = vmatpush1.msra.mxu0 0.0
    %1651 = vmatprep.subr.mxu0 0.0
    %1652 = vmatpush1.msra.mxu0 0.0
    %1653 = vmatprep.subr.mxu0 0.0
    %1654 = vmatpush1.msra.mxu0 0.0
    %1655 = vmatprep.subr.mxu0 0.0
    %1656 = vmatpush1.msra.mxu0 0.0
    %1657 = vmatprep.subr.mxu0 0.0
    %1658 = vmatpush1.msra.mxu0 0.0
    %1659 = vmatprep.subr.mxu0 0.0
    %1660 = vmatpush1.msra.mxu0 0.0
    %1661 = vmatprep.subr.mxu0 0.0
    %1662 = vmatpush1.msra.mxu0 0.0
    %1663 = vmatprep.subr.mxu0 0.0
    %1664 = vmatpush1.msra.mxu0 0.0
    %1665 = vmatprep.subr.mxu0 0.0
    %1666 = vmatpush1.msra.mxu0 0.0
    %1667 = vmatprep.subr.mxu0 0.0
    %1668 = vmatpush1.msra.mxu0 0.0
    %1669 = vmatprep.subr.mxu0 0.0
    %1670 = vmatpush1.msra.mxu0 0.0
    %1671 = vmatprep.subr.mxu0 0.0
    %1672 = vmatpush1.msra.mxu0 0.0
    %1673 = vmatprep.subr.mxu0 0.0
    %1674 = vmatpush1.msra.mxu0 0.0
    %1675 = vmatprep.subr.mxu0 0.0
    %1676 = vmatpush1.msra.mxu0 0.0
    %1677 = vmatprep.subr.mxu0 0.0
    %1678 = vmatpush1.msra.mxu0 0.0
    %1679 = vmatprep.subr.mxu0 0.0
    %1680 = vmatpush1.msra.mxu0 0.0
    %1681 = vmatprep.subr.mxu0 0.0
    %1682 = vmatpush1.msra.mxu0 0.0
    %1683 = vmatprep.subr.mxu0 0.0
    %1684 = vmatpush1.msra.mxu0 0.0
    %1685 = vmatprep.subr.mxu0 0.0
    %1686 = vmatpush1.msra.mxu0 0.0
    %1687 = vmatprep.subr.mxu0 0.0
    %1688 = vmatpush1.msra.mxu0 0.0
    %1689 = vmatprep.subr.mxu0 0.0
    %1690 = vmatpush1.msra.mxu0 0.0
    %1691 = vmatprep.subr.mxu0 0.0
    %1692 = vmatpush1.msra.mxu0 0.0
    %1693 = vmatprep.mubr.f32.mxu0 0.0
    %1694 = vmatmul.mubr.f32.gmra.mrb[0].mxu0 %v922
    %v1695 = vpop.f32.mrb[0].mxu0
    %v1696 = vadd.f32 0.0, %v1695
    %v1697 = vpop.f32.mrb[0].mxu0
    %v1698 = vadd.f32 0.0, %v1697
    %1699 = vmatprep.mubr.f32.mxu0 0.0
    %1700 = vmatmul.mubr.f32.gmra.mrb[0].mxu0 %v924
    %v1701 = vpop.f32.mrb[0].mxu0
    %v1702 = vadd.f32 0.0, %v1701
    %v1703 = vpop.f32.mrb[0].mxu0
    %v1704 = vadd.f32 0.0, %v1703
    %1705 = vdwg.mxu0
    %v1706 = vadd.f32 %v1619, %v1696
    %v1707 = vadd.f32 %v1621, %v1698
    %v1708 = vadd.f32 %v1625, %v1702
    %v1709 = vadd.f32 %v1627, %v1704
    %1710 = vmatprep.subr.mxu0 %v370
    %1711 = vmatpush1.msra.mxu0 %v369
    %1712 = vmatprep.subr.mxu0 %v372
    %1713 = vmatpush1.msra.mxu0 %v371
    %1714 = vmatprep.subr.mxu0 %v374
    %1715 = vmatpush1.msra.mxu0 %v373
    %1716 = vmatprep.subr.mxu0 %v376
    %1717 = vmatpush1.msra.mxu0 %v375
    %1718 = vmatprep.subr.mxu0 0.0
    %1719 = vmatpush1.msra.mxu0 0.0
    %1720 = vmatprep.subr.mxu0 0.0
    %1721 = vmatpush1.msra.mxu0 0.0
    %1722 = vmatprep.subr.mxu0 0.0
    %1723 = vmatpush1.msra.mxu0 0.0
    %1724 = vmatprep.subr.mxu0 0.0
    %1725 = vmatpush1.msra.mxu0 0.0
    %1726 = vmatprep.subr.mxu0 0.0
    %1727 = vmatpush1.msra.mxu0 0.0
    %1728 = vmatprep.subr.mxu0 0.0
    %1729 = vmatpush1.msra.mxu0 0.0
    %1730 = vmatprep.subr.mxu0 0.0
    %1731 = vmatpush1.msra.mxu0 0.0
    %1732 = vmatprep.subr.mxu0 0.0
    %1733 = vmatpush1.msra.mxu0 0.0
    %1734 = vmatprep.subr.mxu0 0.0
    %1735 = vmatpush1.msra.mxu0 0.0
    %1736 = vmatprep.subr.mxu0 0.0
    %1737 = vmatpush1.msra.mxu0 0.0
    %1738 = vmatprep.subr.mxu0 0.0
    %1739 = vmatpush1.msra.mxu0 0.0
    %1740 = vmatprep.subr.mxu0 0.0
    %1741 = vmatpush1.msra.mxu0 0.0
    %1742 = vmatprep.subr.mxu0 0.0
    %1743 = vmatpush1.msra.mxu0 0.0
    %1744 = vmatprep.subr.mxu0 0.0
    %1745 = vmatpush1.msra.mxu0 0.0
    %1746 = vmatprep.subr.mxu0 0.0
    %1747 = vmatpush1.msra.mxu0 0.0
    %1748 = vmatprep.subr.mxu0 0.0
    %1749 = vmatpush1.msra.mxu0 0.0
    %1750 = vmatprep.subr.mxu0 0.0
    %1751 = vmatpush1.msra.mxu0 0.0
    %1752 = vmatprep.subr.mxu0 0.0
    %1753 = vmatpush1.msra.mxu0 0.0
    %1754 = vmatprep.subr.mxu0 0.0
    %1755 = vmatpush1.msra.mxu0 0.0
    %1756 = vmatprep.subr.mxu0 0.0
    %1757 = vmatpush1.msra.mxu0 0.0
    %1758 = vmatprep.subr.mxu0 0.0
    %1759 = vmatpush1.msra.mxu0 0.0
    %1760 = vmatprep.subr.mxu0 0.0
    %1761 = vmatpush1.msra.mxu0 0.0
    %1762 = vmatprep.subr.mxu0 0.0
    %1763 = vmatpush1.msra.mxu0 0.0
    %1764 = vmatprep.subr.mxu0 0.0
    %1765 = vmatpush1.msra.mxu0 0.0
    %1766 = vmatprep.subr.mxu0 0.0
    %1767 = vmatpush1.msra.mxu0 0.0
    %1768 = vmatprep.subr.mxu0 0.0
    %1769 = vmatpush1.msra.mxu0 0.0
    %1770 = vmatprep.subr.mxu0 0.0
    %1771 = vmatpush1.msra.mxu0 0.0
    %1772 = vmatprep.subr.mxu0 0.0
    %1773 = vmatpush1.msra.mxu0 0.0
    %1774 = vmatprep.mubr.f32.mxu0 0.0
    %1775 = vmatmul.mubr.f32.gmra.mrb[0].mxu0 %v1360
    %v1776 = vpop.f32.mrb[0].mxu0
    %v1777 = vadd.f32 0.0, %v1776
    %v1778 = vpop.f32.mrb[0].mxu0
    %v1779 = vadd.f32 0.0, %v1778
    %1780 = vmatprep.mubr.f32.mxu0 0.0
    %1781 = vmatmul.mubr.f32.gmra.mrb[0].mxu0 %v1362
    %v1782 = vpop.f32.mrb[0].mxu0
    %v1783 = vadd.f32 0.0, %v1782
    %v1784 = vpop.f32.mrb[0].mxu0
    %v1785 = vadd.f32 0.0, %v1784
    %1786 = vdwg.mxu0
    %v1787 = vadd.f32 %v1706, %v1777
    %v1788 = vadd.f32 %v1707, %v1779
    %v1789 = vadd.f32 %v1708, %v1783
    %v1790 = vadd.f32 %v1709, %v1785
    %v1791 = vrot.slane %v84, 2
    %v1792 = vrot.slane %v85, 2
    %v1793 = vsel %vm473, %v1791, %v1792
    %v1794 = vsel %vm105, %v1793, 0
    %v1796 = vsel %vm105, %v1792, 0
    %1798 = vmatprep.subr.mxu0 %v466
    %1799 = vmatpush1.msra.mxu0 %v465
    %1800 = vmatprep.subr.mxu0 %v468
    %1801 = vmatpush1.msra.mxu0 %v467
    %1802 = vmatprep.subr.mxu0 %v470
    %1803 = vmatpush1.msra.mxu0 %v469
    %1804 = vmatprep.subr.mxu0 %v472
    %1805 = vmatpush1.msra.mxu0 %v471
    %1806 = vmatprep.subr.mxu0 0.0
    %1807 = vmatpush1.msra.mxu0 0.0
    %1808 = vmatprep.subr.mxu0 0.0
    %1809 = vmatpush1.msra.mxu0 0.0
    %1810 = vmatprep.subr.mxu0 0.0
    %1811 = vmatpush1.msra.mxu0 0.0
    %1812 = vmatprep.subr.mxu0 0.0
    %1813 = vmatpush1.msra.mxu0 0.0
    %1814 = vmatprep.subr.mxu0 0.0
    %1815 = vmatpush1.msra.mxu0 0.0
    %1816 = vmatprep.subr.mxu0 0.0
    %1817 = vmatpush1.msra.mxu0 0.0
    %1818 = vmatprep.subr.mxu0 0.0
    %1819 = vmatpush1.msra.mxu0 0.0
    %1820 = vmatprep.subr.mxu0 0.0
    %1821 = vmatpush1.msra.mxu0 0.0
    %1822 = vmatprep.subr.mxu0 0.0
    %1823 = vmatpush1.msra.mxu0 0.0
    %1824 = vmatprep.subr.mxu0 0.0
    %1825 = vmatpush1.msra.mxu0 0.0
    %1826 = vmatprep.subr.mxu0 0.0
    %1827 = vmatpush1.msra.mxu0 0.0
    %1828 = vmatprep.subr.mxu0 0.0
    %1829 = vmatpush1.msra.mxu0 0.0
    %1830 = vmatprep.subr.mxu0 0.0
    %1831 = vmatpush1.msra.mxu0 0.0
    %1832 = vmatprep.subr.mxu0 0.0
    %1833 = vmatpush1.msra.mxu0 0.0
    %1834 = vmatprep.subr.mxu0 0.0
    %1835 = vmatpush1.msra.mxu0 0.0
    %1836 = vmatprep.subr.mxu0 0.0
    %1837 = vmatpush1.msra.mxu0 0.0
    %1838 = vmatprep.subr.mxu0 0.0
    %1839 = vmatpush1.msra.mxu0 0.0
    %1840 = vmatprep.subr.mxu0 0.0
    %1841 = vmatpush1.msra.mxu0 0.0
    %1842 = vmatprep.subr.mxu0 0.0
    %1843 = vmatpush1.msra.mxu0 0.0
    %1844 = vmatprep.subr.mxu0 0.0
    %1845 = vmatpush1.msra.mxu0 0.0
    %1846 = vmatprep.subr.mxu0 0.0
    %1847 = vmatpush1.msra.mxu0 0.0
    %1848 = vmatprep.subr.mxu0 0.0
    %1849 = vmatpush1.msra.mxu0 0.0
    %1850 = vmatprep.subr.mxu0 0.0
    %1851 = vmatpush1.msra.mxu0 0.0
    %1852 = vmatprep.subr.mxu0 0.0
    %1853 = vmatpush1.msra.mxu0 0.0
    %1854 = vmatprep.subr.mxu0 0.0
    %1855 = vmatpush1.msra.mxu0 0.0
    %1856 = vmatprep.subr.mxu0 0.0
    %1857 = vmatpush1.msra.mxu0 0.0
    %1858 = vmatprep.subr.mxu0 0.0
    %1859 = vmatpush1.msra.mxu0 0.0
    %1860 = vmatprep.subr.mxu0 0.0
    %1861 = vmatpush1.msra.mxu0 0.0
    %1862 = vmatprep.mubr.f32.mxu0 0.0
    %1863 = vmatmul.mubr.f32.gmra.mrb[0].mxu0 %v1794
    %v1864 = vpop.f32.mrb[0].mxu0
    %v1865 = vadd.f32 0.0, %v1864
    %v1866 = vpop.f32.mrb[0].mxu0
    %v1867 = vadd.f32 0.0, %v1866
    %1868 = vmatprep.mubr.f32.mxu0 0.0
    %1869 = vmatmul.mubr.f32.gmra.mrb[0].mxu0 %v1796
    %v1870 = vpop.f32.mrb[0].mxu0
    %v1871 = vadd.f32 0.0, %v1870
    %v1872 = vpop.f32.mrb[0].mxu0
    %v1873 = vadd.f32 0.0, %v1872
    %1874 = vdwg.mxu0
    %v1875 = vadd.f32 %v1787, %v1865
    %v1876 = vadd.f32 %v1788, %v1867
    %v1877 = vadd.f32 %v1789, %v1871
    %v1878 = vadd.f32 %v1790, %v1873
    %v1879 = vadd.f32 %v1875, %v566
    %v1880 = vadd.f32 %v1876, %v570
    %v1881 = vadd.f32 %v1877, %v566
    %v1882 = vadd.f32 %v1878, %v570
    %v1883 = vxor.u32 %v1879, 2147483648
    %v1884 = vxor.u32 %v1880, 2147483648
    %v1885 = vxor.u32 %v1881, 2147483648
    %v1886 = vxor.u32 %v1882, 2147483648
    %v1887 = vmul.f32 %v1883, 1.442695
    %v1888 = vpow.pop %v1887
    %v1889 = vmul.f32 %v1884, 1.442695
    %v1890 = vpow.pop %v1889
    %v1891 = vmul.f32 %v1885, 1.442695
    %v1892 = vpow.pop %v1891
    %v1893 = vmul.f32 %v1886, 1.442695
    %v1894 = vpow.pop %v1893
    %v1895 = vadd.f32 %v1888, 1.0
    %v1896 = vadd.f32 %v1890, 1.0
    %v1897 = vadd.f32 %v1892, 1.0
    %v1898 = vadd.f32 %v1894, 1.0
    %v1899 = vrcp.pop %v1895
    %v1900 = vmul.f32 1.0, %v1899
    %v1901 = vrcp.pop %v1896
    %v1902 = vmul.f32 1.0, %v1901
    %v1903 = vrcp.pop %v1897
    %v1904 = vmul.f32 1.0, %v1903
    %v1905 = vrcp.pop %v1898
    %v1906 = vmul.f32 1.0, %v1905
    %v1907 = vadd.f32 %v1900, %v1902
    %v1908 = vadd.f32 %v1904, %v1906
    %v1909 = vadd.f32 %v1473, %v1907
    %v1910 = vadd.f32 %v1474, %v1908
    %v1911 = vmul.f32 %v1909, 0.25
    %v1912 = vmul.f32 %v1910, 0.25
    %v1913 = vld [vmem:[#allocation5] sm:$0xff]
    %v1914 = vld [vmem:[#allocation5 + $0x8] sm:$0xff]
    %v1915 = vld [vmem:[#allocation5 + $0x10] sm:$0xff]
    %v1916 = vld [vmem:[#allocation5 + $0x18] sm:$0xff]
    %v1917 = vld [vmem:[#allocation5 + $0x20] sm:$0xff]
    %v1918 = vld [vmem:[#allocation5 + $0x28] sm:$0xff]
    %v1919 = vld [vmem:[#allocation5 + $0x30] sm:$0xff]
    %v1920 = vld [vmem:[#allocation5 + $0x38] sm:$0xff]
    %v1921 = vld [vmem:[#allocation5 + $0x40] sm:$0xff]
    %v1922 = vld [vmem:[#allocation5 + $0x48] sm:$0xff]
    %v1923 = vld [vmem:[#allocation5 + $0x50] sm:$0xff]
    %v1924 = vld [vmem:[#allocation5 + $0x58] sm:$0xff]
    %v1925 = vld [vmem:[#allocation5 + $0x60] sm:$0xff]
    %v1926 = vld [vmem:[#allocation5 + $0x68] sm:$0xff]
    %v1927 = vld [vmem:[#allocation5 + $0x70] sm:$0xff]
    %v1928 = vld [vmem:[#allocation5 + $0x78] sm:$0xff]
    %v1929 = vld [vmem:[#allocation5 + $0x80] sm:$0xff]
    %v1930 = vld [vmem:[#allocation5 + $0x88] sm:$0xff]
    %v1931 = vld [vmem:[#allocation5 + $0x90] sm:$0xff]
    %v1932 = vld [vmem:[#allocation5 + $0x98] sm:$0xff]
    %v1933 = vld [vmem:[#allocation5 + $0xa0] sm:$0xff]
    %v1934 = vld [vmem:[#allocation5 + $0xa8] sm:$0xff]
    %v1935 = vld [vmem:[#allocation5 + $0xb0] sm:$0xff]
    %v1936 = vld [vmem:[#allocation5 + $0xb8] sm:$0xff]
    %v1937 = vld [vmem:[#allocation5 + $0xc0] sm:$0xff]
    %v1938 = vld [vmem:[#allocation5 + $0xc8] sm:$0xff]
    %v1939 = vld [vmem:[#allocation5 + $0xd0] sm:$0xff]
    %v1940 = vld [vmem:[#allocation5 + $0xd8] sm:$0xff]
    %s1941 = scalar_lea.vmem [#allocation5], 224
    %v1942 = vld [vmem:[%s1941] sm:$0xff]
    %v1943 = vld [vmem:[%s1941 + $0x8] sm:$0xff]
    %v1944 = vld [vmem:[%s1941 + $0x10] sm:$0xff]
    %v1945 = vld [vmem:[%s1941 + $0x18] sm:$0xff]
    %v1946 = vld [vmem:[%s1941 + $0x20] sm:$0xff]
    %v1947 = vld [vmem:[%s1941 + $0x28] sm:$0xff]
    %v1948 = vld [vmem:[%s1941 + $0x30] sm:$0xff]
    %v1949 = vld [vmem:[%s1941 + $0x38] sm:$0xff]
    %v1950 = vld [vmem:[%s1941 + $0x40] sm:$0xff]
    %v1951 = vld [vmem:[%s1941 + $0x48] sm:$0xff]
    %v1952 = vld [vmem:[%s1941 + $0x50] sm:$0xff]
    %v1953 = vld [vmem:[%s1941 + $0x58] sm:$0xff]
    %v1954 = vld [vmem:[%s1941 + $0x60] sm:$0xff]
    %v1955 = vld [vmem:[%s1941 + $0x68] sm:$0xff]
    %v1956 = vld [vmem:[%s1941 + $0x70] sm:$0xff]
    %v1957 = vld [vmem:[%s1941 + $0x78] sm:$0xff]
    %v1958 = vld [vmem:[%s1941 + $0x80] sm:$0xff]
    %v1959 = vld [vmem:[%s1941 + $0x88] sm:$0xff]
    %v1960 = vld [vmem:[%s1941 + $0x90] sm:$0xff]
    %v1961 = vld [vmem:[%s1941 + $0x98] sm:$0xff]
    %v1962 = vld [vmem:[%s1941 + $0xa0] sm:$0xff]
    %v1963 = vld [vmem:[%s1941 + $0xa8] sm:$0xff]
    %v1964 = vld [vmem:[%s1941 + $0xb0] sm:$0xff]
    %v1965 = vld [vmem:[%s1941 + $0xb8] sm:$0xff]
    %v1966 = vld [vmem:[%s1941 + $0xc0] sm:$0xff]
    %v1967 = vld [vmem:[%s1941 + $0xc8] sm:$0xff]
    %v1968 = vld [vmem:[%s1941 + $0xd0] sm:$0xff]
    %v1969 = vld [vmem:[%s1941 + $0xd8] sm:$0xff]
    %vm1970 = vcmask 916480
    %v1972 = vsel %vm1970, %v1911, 0
    %v1975 = vsel %vm1970, %v1912, 0
    %1977 = vmatprep.subr.mxu0 %v1943
    %1978 = vmatpush1.msra.mxu0 %v1942
    %1979 = vmatprep.subr.mxu0 %v1945
    %1980 = vmatpush1.msra.mxu0 %v1944
    %1981 = vmatprep.subr.mxu0 %v1947
    %1982 = vmatpush1.msra.mxu0 %v1946
    %1983 = vmatprep.subr.mxu0 %v1949
    %1984 = vmatpush1.msra.mxu0 %v1948
    %1985 = vmatprep.subr.mxu0 %v1951
    %1986 = vmatpush1.msra.mxu0 %v1950
    %1987 = vmatprep.subr.mxu0 %v1953
    %1988 = vmatpush1.msra.mxu0 %v1952
    %1989 = vmatprep.subr.mxu0 %v1955
    %1990 = vmatpush1.msra.mxu0 %v1954
    %1991 = vmatprep.subr.mxu0 %v1957
    %1992 = vmatpush1.msra.mxu0 %v1956
    %1993 = vmatprep.subr.mxu0 %v1959
    %1994 = vmatpush1.msra.mxu0 %v1958
    %1995 = vmatprep.subr.mxu0 %v1961
    %1996 = vmatpush1.msra.mxu0 %v1960
    %1997 = vmatprep.subr.mxu0 %v1963
    %1998 = vmatpush1.msra.mxu0 %v1962
    %1999 = vmatprep.subr.mxu0 %v1965
    %2000 = vmatpush1.msra.mxu0 %v1964
    %2001 = vmatprep.subr.mxu0 %v1967
    %2002 = vmatpush1.msra.mxu0 %v1966
    %2003 = vmatprep.subr.mxu0 %v1969
    %2004 = vmatpush1.msra.mxu0 %v1968
    %2005 = vmatprep.subr.mxu0 0.0
    %2006 = vmatpush1.msra.mxu0 0.0
    %2007 = vmatprep.subr.mxu0 0.0
    %2008 = vmatpush1.msra.mxu0 0.0
    %2009 = vmatprep.subr.mxu0 0.0
    %2010 = vmatpush1.msra.mxu0 0.0
    %2011 = vmatprep.subr.mxu0 0.0
    %2012 = vmatpush1.msra.mxu0 0.0
    %2013 = vmatprep.subr.mxu0 0.0
    %2014 = vmatpush1.msra.mxu0 0.0
    %2015 = vmatprep.subr.mxu0 0.0
    %2016 = vmatpush1.msra.mxu0 0.0
    %2017 = vmatprep.subr.mxu0 0.0
    %2018 = vmatpush1.msra.mxu0 0.0
    %2019 = vmatprep.subr.mxu0 0.0
    %2020 = vmatpush1.msra.mxu0 0.0
    %2021 = vmatprep.subr.mxu0 0.0
    %2022 = vmatpush1.msra.mxu0 0.0
    %2023 = vmatprep.subr.mxu0 0.0
    %2024 = vmatpush1.msra.mxu0 0.0
    %2025 = vmatprep.subr.mxu0 0.0
    %2026 = vmatpush1.msra.mxu0 0.0
    %2027 = vmatprep.subr.mxu0 0.0
    %2028 = vmatpush1.msra.mxu0 0.0
    %2029 = vmatprep.subr.mxu0 0.0
    %2030 = vmatpush1.msra.mxu0 0.0
    %2031 = vmatprep.subr.mxu0 0.0
    %2032 = vmatpush1.msra.mxu0 0.0
    %2033 = vmatprep.subr.mxu0 0.0
    %2034 = vmatpush1.msra.mxu0 0.0
    %2035 = vmatprep.subr.mxu0 0.0
    %2036 = vmatpush1.msra.mxu0 0.0
    %2037 = vmatprep.subr.mxu0 0.0
    %2038 = vmatpush1.msra.mxu0 0.0
    %2039 = vmatprep.subr.mxu0 0.0
    %2040 = vmatpush1.msra.mxu0 0.0
    %2041 = vmatprep.mubr.f32.mxu0 0.0
    %2042 = vmatmul.mubr.f32.gmra.mrb[0].mxu0 %v1972
    %v2043 = vpop.f32.mrb[0].mxu0
    %v2044 = vadd.f32 0.0, %v2043
    %v2045 = vpop.f32.mrb[0].mxu0
    %v2046 = vadd.f32 0.0, %v2045
    %2047 = vmatprep.mubr.f32.mxu0 0.0
    %2048 = vmatmul.mubr.f32.gmra.mrb[0].mxu0 %v1975
    %v2049 = vpop.f32.mrb[0].mxu0
    %v2050 = vadd.f32 0.0, %v2049
    %v2051 = vpop.f32.mrb[0].mxu0
    %v2052 = vadd.f32 0.0, %v2051
    %2053 = vdwg.mxu0
    %v2055 = vsel %vm1970, %v1039, 0
    %v2058 = vsel %vm1970, %v1040, 0
    %2060 = vmatprep.subr.mxu0 %v1914
    %2061 = vmatpush1.msra.mxu0 %v1913
    %2062 = vmatprep.subr.mxu0 %v1916
    %2063 = vmatpush1.msra.mxu0 %v1915
    %2064 = vmatprep.subr.mxu0 %v1918
    %2065 = vmatpush1.msra.mxu0 %v1917
    %2066 = vmatprep.subr.mxu0 %v1920
    %2067 = vmatpush1.msra.mxu0 %v1919
    %2068 = vmatprep.subr.mxu0 %v1922
    %2069 = vmatpush1.msra.mxu0 %v1921
    %2070 = vmatprep.subr.mxu0 %v1924
    %2071 = vmatpush1.msra.mxu0 %v1923
    %2072 = vmatprep.subr.mxu0 %v1926
    %2073 = vmatpush1.msra.mxu0 %v1925
    %2074 = vmatprep.subr.mxu0 %v1928
    %2075 = vmatpush1.msra.mxu0 %v1927
    %2076 = vmatprep.subr.mxu0 %v1930
    %2077 = vmatpush1.msra.mxu0 %v1929
    %2078 = vmatprep.subr.mxu0 %v1932
    %2079 = vmatpush1.msra.mxu0 %v1931
    %2080 = vmatprep.subr.mxu0 %v1934
    %2081 = vmatpush1.msra.mxu0 %v1933
    %2082 = vmatprep.subr.mxu0 %v1936
    %2083 = vmatpush1.msra.mxu0 %v1935
    %2084 = vmatprep.subr.mxu0 %v1938
    %2085 = vmatpush1.msra.mxu0 %v1937
    %2086 = vmatprep.subr.mxu0 %v1940
    %2087 = vmatpush1.msra.mxu0 %v1939
    %2088 = vmatprep.subr.mxu0 0.0
    %2089 = vmatpush1.msra.mxu0 0.0
    %2090 = vmatprep.subr.mxu0 0.0
    %2091 = vmatpush1.msra.mxu0 0.0
    %2092 = vmatprep.subr.mxu0 0.0
    %2093 = vmatpush1.msra.mxu0 0.0
    %2094 = vmatprep.subr.mxu0 0.0
    %2095 = vmatpush1.msra.mxu0 0.0
    %2096 = vmatprep.subr.mxu0 0.0
    %2097 = vmatpush1.msra.mxu0 0.0
    %2098 = vmatprep.subr.mxu0 0.0
    %2099 = vmatpush1.msra.mxu0 0.0
    %2100 = vmatprep.subr.mxu0 0.0
    %2101 = vmatpush1.msra.mxu0 0.0
    %2102 = vmatprep.subr.mxu0 0.0
    %2103 = vmatpush1.msra.mxu0 0.0
    %2104 = vmatprep.subr.mxu0 0.0
    %2105 = vmatpush1.msra.mxu0 0.0
    %2106 = vmatprep.subr.mxu0 0.0
    %2107 = vmatpush1.msra.mxu0 0.0
    %2108 = vmatprep.subr.mxu0 0.0
    %2109 = vmatpush1.msra.mxu0 0.0
    %2110 = vmatprep.subr.mxu0 0.0
    %2111 = vmatpush1.msra.mxu0 0.0
    %2112 = vmatprep.subr.mxu0 0.0
    %2113 = vmatpush1.msra.mxu0 0.0
    %2114 = vmatprep.subr.mxu0 0.0
    %2115 = vmatpush1.msra.mxu0 0.0
    %2116 = vmatprep.subr.mxu0 0.0
    %2117 = vmatpush1.msra.mxu0 0.0
    %2118 = vmatprep.subr.mxu0 0.0
    %2119 = vmatpush1.msra.mxu0 0.0
    %2120 = vmatprep.subr.mxu0 0.0
    %2121 = vmatpush1.msra.mxu0 0.0
    %2122 = vmatprep.subr.mxu0 0.0
    %2123 = vmatpush1.msra.mxu0 0.0
    %2124 = vmatprep.mubr.f32.mxu0 0.0
    %2125 = vmatmul.mubr.f32.gmra.mrb[0].mxu0 %v2055
    %v2126 = vpop.f32.mrb[0].mxu0
    %v2127 = vadd.f32 %v2044, %v2126
    %v2128 = vpop.f32.mrb[0].mxu0
    %v2129 = vadd.f32 %v2046, %v2128
    %2130 = vmatprep.mubr.f32.mxu0 0.0
    %2131 = vmatmul.mubr.f32.gmra.mrb[0].mxu0 %v2058
    %v2132 = vpop.f32.mrb[0].mxu0
    %v2133 = vadd.f32 %v2050, %v2132
    %v2134 = vpop.f32.mrb[0].mxu0
    %v2135 = vadd.f32 %v2052, %v2134
    %2136 = vdwg.mxu0
    %s2137 = scalar_lea.vmem [#allocation5], 448
    %v2138 = vld [vmem:[%s2137] sm:$0xff]
    %v2139 = vld [vmem:[%s2137 + $0x8] sm:$0xff]
    %v2140 = vld [vmem:[%s2137 + $0x10] sm:$0xff]
    %v2141 = vld [vmem:[%s2137 + $0x18] sm:$0xff]
    %v2142 = vld [vmem:[%s2137 + $0x20] sm:$0xff]
    %v2143 = vld [vmem:[%s2137 + $0x28] sm:$0xff]
    %v2144 = vld [vmem:[%s2137 + $0x30] sm:$0xff]
    %v2145 = vld [vmem:[%s2137 + $0x38] sm:$0xff]
    %v2146 = vld [vmem:[%s2137 + $0x40] sm:$0xff]
    %v2147 = vld [vmem:[%s2137 + $0x48] sm:$0xff]
    %v2148 = vld [vmem:[%s2137 + $0x50] sm:$0xff]
    %v2149 = vld [vmem:[%s2137 + $0x58] sm:$0xff]
    %v2150 = vld [vmem:[%s2137 + $0x60] sm:$0xff]
    %v2151 = vld [vmem:[%s2137 + $0x68] sm:$0xff]
    %v2152 = vld [vmem:[%s2137 + $0x70] sm:$0xff]
    %v2153 = vld [vmem:[%s2137 + $0x78] sm:$0xff]
    %v2154 = vld [vmem:[%s2137 + $0x80] sm:$0xff]
    %v2155 = vld [vmem:[%s2137 + $0x88] sm:$0xff]
    %v2156 = vld [vmem:[%s2137 + $0x90] sm:$0xff]
    %v2157 = vld [vmem:[%s2137 + $0x98] sm:$0xff]
    %v2158 = vld [vmem:[%s2137 + $0xa0] sm:$0xff]
    %v2159 = vld [vmem:[%s2137 + $0xa8] sm:$0xff]
    %v2160 = vld [vmem:[%s2137 + $0xb0] sm:$0xff]
    %v2161 = vld [vmem:[%s2137 + $0xb8] sm:$0xff]
    %v2162 = vld [vmem:[%s2137 + $0xc0] sm:$0xff]
    %v2163 = vld [vmem:[%s2137 + $0xc8] sm:$0xff]
    %v2164 = vld [vmem:[%s2137 + $0xd0] sm:$0xff]
    %v2165 = vld [vmem:[%s2137 + $0xd8] sm:$0xff]
    %v2166 = vrot.slane %v1039, 2
    %v2167 = vrot.slane %v1040, 2
    %v2168 = vsel %vm473, %v2166, %v2167
    %v2169 = vsel %vm1970, %v2168, 0
    %v2171 = vsel %vm1970, %v2167, 0
    %2173 = vmatprep.subr.mxu0 %v2139
    %2174 = vmatpush1.msra.mxu0 %v2138
    %2175 = vmatprep.subr.mxu0 %v2141
    %2176 = vmatpush1.msra.mxu0 %v2140
    %2177 = vmatprep.subr.mxu0 %v2143
    %2178 = vmatpush1.msra.mxu0 %v2142
    %2179 = vmatprep.subr.mxu0 %v2145
    %2180 = vmatpush1.msra.mxu0 %v2144
    %2181 = vmatprep.subr.mxu0 %v2147
    %2182 = vmatpush1.msra.mxu0 %v2146
    %2183 = vmatprep.subr.mxu0 %v2149
    %2184 = vmatpush1.msra.mxu0 %v2148
    %2185 = vmatprep.subr.mxu0 %v2151
    %2186 = vmatpush1.msra.mxu0 %v2150
    %2187 = vmatprep.subr.mxu0 %v2153
    %2188 = vmatpush1.msra.mxu0 %v2152
    %2189 = vmatprep.subr.mxu0 %v2155
    %2190 = vmatpush1.msra.mxu0 %v2154
    %2191 = vmatprep.subr.mxu0 %v2157
    %2192 = vmatpush1.msra.mxu0 %v2156
    %2193 = vmatprep.subr.mxu0 %v2159
    %2194 = vmatpush1.msra.mxu0 %v2158
    %2195 = vmatprep.subr.mxu0 %v2161
    %2196 = vmatpush1.msra.mxu0 %v2160
    %2197 = vmatprep.subr.mxu0 %v2163
    %2198 = vmatpush1.msra.mxu0 %v2162
    %2199 = vmatprep.subr.mxu0 %v2165
    %2200 = vmatpush1.msra.mxu0 %v2164
    %2201 = vmatprep.subr.mxu0 0.0
    %2202 = vmatpush1.msra.mxu0 0.0
    %2203 = vmatprep.subr.mxu0 0.0
    %2204 = vmatpush1.msra.mxu0 0.0
    %2205 = vmatprep.subr.mxu0 0.0
    %2206 = vmatpush1.msra.mxu0 0.0
    %2207 = vmatprep.subr.mxu0 0.0
    %2208 = vmatpush1.msra.mxu0 0.0
    %2209 = vmatprep.subr.mxu0 0.0
    %2210 = vmatpush1.msra.mxu0 0.0
    %2211 = vmatprep.subr.mxu0 0.0
    %2212 = vmatpush1.msra.mxu0 0.0
    %2213 = vmatprep.subr.mxu0 0.0
    %2214 = vmatpush1.msra.mxu0 0.0
    %2215 = vmatprep.subr.mxu0 0.0
    %2216 = vmatpush1.msra.mxu0 0.0
    %2217 = vmatprep.subr.mxu0 0.0
    %2218 = vmatpush1.msra.mxu0 0.0
    %2219 = vmatprep.subr.mxu0 0.0
    %2220 = vmatpush1.msra.mxu0 0.0
    %2221 = vmatprep.subr.mxu0 0.0
    %2222 = vmatpush1.msra.mxu0 0.0
    %2223 = vmatprep.subr.mxu0 0.0
    %2224 = vmatpush1.msra.mxu0 0.0
    %2225 = vmatprep.subr.mxu0 0.0
    %2226 = vmatpush1.msra.mxu0 0.0
    %2227 = vmatprep.subr.mxu0 0.0
    %2228 = vmatpush1.msra.mxu0 0.0
    %2229 = vmatprep.subr.mxu0 0.0
    %2230 = vmatpush1.msra.mxu0 0.0
    %2231 = vmatprep.subr.mxu0 0.0
    %2232 = vmatpush1.msra.mxu0 0.0
    %2233 = vmatprep.subr.mxu0 0.0
    %2234 = vmatpush1.msra.mxu0 0.0
    %2235 = vmatprep.subr.mxu0 0.0
    %2236 = vmatpush1.msra.mxu0 0.0
    %2237 = vmatprep.mubr.f32.mxu0 0.0
    %2238 = vmatmul.mubr.f32.gmra.mrb[0].mxu0 %v2169
    %v2239 = vpop.f32.mrb[0].mxu0
    %v2240 = vadd.f32 0.0, %v2239
    %v2241 = vpop.f32.mrb[0].mxu0
    %v2242 = vadd.f32 0.0, %v2241
    %2243 = vmatprep.mubr.f32.mxu0 0.0
    %2244 = vmatmul.mubr.f32.gmra.mrb[0].mxu0 %v2171
    %v2245 = vpop.f32.mrb[0].mxu0
    %v2246 = vadd.f32 0.0, %v2245
    %v2247 = vpop.f32.mrb[0].mxu0
    %v2248 = vadd.f32 0.0, %v2247
    %2249 = vdwg.mxu0
    %v2250 = vadd.f32 %v2127, %v2240
    %v2251 = vadd.f32 %v2129, %v2242
    %v2252 = vadd.f32 %v2133, %v2246
    %v2253 = vadd.f32 %v2135, %v2248
    %s2254 = scalar_lea.vmem [#allocation5], 672
    %v2255 = vld [vmem:[%s2254] sm:$0xff]
    %v2256 = vld [vmem:[%s2254 + $0x8] sm:$0xff]
    %v2257 = vld [vmem:[%s2254 + $0x10] sm:$0xff]
    %v2258 = vld [vmem:[%s2254 + $0x18] sm:$0xff]
    %v2259 = vld [vmem:[%s2254 + $0x20] sm:$0xff]
    %v2260 = vld [vmem:[%s2254 + $0x28] sm:$0xff]
    %v2261 = vld [vmem:[%s2254 + $0x30] sm:$0xff]
    %v2262 = vld [vmem:[%s2254 + $0x38] sm:$0xff]
    %v2263 = vld [vmem:[%s2254 + $0x40] sm:$0xff]
    %v2264 = vld [vmem:[%s2254 + $0x48] sm:$0xff]
    %v2265 = vld [vmem:[%s2254 + $0x50] sm:$0xff]
    %v2266 = vld [vmem:[%s2254 + $0x58] sm:$0xff]
    %v2267 = vld [vmem:[%s2254 + $0x60] sm:$0xff]
    %v2268 = vld [vmem:[%s2254 + $0x68] sm:$0xff]
    %v2269 = vld [vmem:[%s2254 + $0x70] sm:$0xff]
    %v2270 = vld [vmem:[%s2254 + $0x78] sm:$0xff]
    %v2271 = vld [vmem:[%s2254 + $0x80] sm:$0xff]
    %v2272 = vld [vmem:[%s2254 + $0x88] sm:$0xff]
    %v2273 = vld [vmem:[%s2254 + $0x90] sm:$0xff]
    %v2274 = vld [vmem:[%s2254 + $0x98] sm:$0xff]
    %v2275 = vld [vmem:[%s2254 + $0xa0] sm:$0xff]
    %v2276 = vld [vmem:[%s2254 + $0xa8] sm:$0xff]
    %v2277 = vld [vmem:[%s2254 + $0xb0] sm:$0xff]
    %v2278 = vld [vmem:[%s2254 + $0xb8] sm:$0xff]
    %v2279 = vld [vmem:[%s2254 + $0xc0] sm:$0xff]
    %v2280 = vld [vmem:[%s2254 + $0xc8] sm:$0xff]
    %v2281 = vld [vmem:[%s2254 + $0xd0] sm:$0xff]
    %v2282 = vld [vmem:[%s2254 + $0xd8] sm:$0xff]
    %v2283 = vrot.slane %v1911, 2
    %v2284 = vrot.slane %v1912, 2
    %v2285 = vsel %vm473, %v2283, %v2284
    %v2286 = vsel %vm1970, %v2285, 0
    %v2288 = vsel %vm1970, %v2284, 0
    %2290 = vmatprep.subr.mxu0 %v2256
    %2291 = vmatpush1.msra.mxu0 %v2255
    %2292 = vmatprep.subr.mxu0 %v2258
    %2293 = vmatpush1.msra.mxu0 %v2257
    %2294 = vmatprep.subr.mxu0 %v2260
    %2295 = vmatpush1.msra.mxu0 %v2259
    %2296 = vmatprep.subr.mxu0 %v2262
    %2297 = vmatpush1.msra.mxu0 %v2261
    %2298 = vmatprep.subr.mxu0 %v2264
    %2299 = vmatpush1.msra.mxu0 %v2263
    %2300 = vmatprep.subr.mxu0 %v2266
    %2301 = vmatpush1.msra.mxu0 %v2265
    %2302 = vmatprep.subr.mxu0 %v2268
    %2303 = vmatpush1.msra.mxu0 %v2267
    %2304 = vmatprep.subr.mxu0 %v2270
    %2305 = vmatpush1.msra.mxu0 %v2269
    %2306 = vmatprep.subr.mxu0 %v2272
    %2307 = vmatpush1.msra.mxu0 %v2271
    %2308 = vmatprep.subr.mxu0 %v2274
    %2309 = vmatpush1.msra.mxu0 %v2273
    %2310 = vmatprep.subr.mxu0 %v2276
    %2311 = vmatpush1.msra.mxu0 %v2275
    %2312 = vmatprep.subr.mxu0 %v2278
    %2313 = vmatpush1.msra.mxu0 %v2277
    %2314 = vmatprep.subr.mxu0 %v2280
    %2315 = vmatpush1.msra.mxu0 %v2279
    %2316 = vmatprep.subr.mxu0 %v2282
    %2317 = vmatpush1.msra.mxu0 %v2281
    %2318 = vmatprep.subr.mxu0 0.0
    %2319 = vmatpush1.msra.mxu0 0.0
    %2320 = vmatprep.subr.mxu0 0.0
    %2321 = vmatpush1.msra.mxu0 0.0
    %2322 = vmatprep.subr.mxu0 0.0
    %2323 = vmatpush1.msra.mxu0 0.0
    %2324 = vmatprep.subr.mxu0 0.0
    %2325 = vmatpush1.msra.mxu0 0.0
    %2326 = vmatprep.subr.mxu0 0.0
    %2327 = vmatpush1.msra.mxu0 0.0
    %2328 = vmatprep.subr.mxu0 0.0
    %2329 = vmatpush1.msra.mxu0 0.0
    %2330 = vmatprep.subr.mxu0 0.0
    %2331 = vmatpush1.msra.mxu0 0.0
    %2332 = vmatprep.subr.mxu0 0.0
    %2333 = vmatpush1.msra.mxu0 0.0
    %2334 = vmatprep.subr.mxu0 0.0
    %2335 = vmatpush1.msra.mxu0 0.0
    %2336 = vmatprep.subr.mxu0 0.0
    %2337 = vmatpush1.msra.mxu0 0.0
    %2338 = vmatprep.subr.mxu0 0.0
    %2339 = vmatpush1.msra.mxu0 0.0
    %2340 = vmatprep.subr.mxu0 0.0
    %2341 = vmatpush1.msra.mxu0 0.0
    %2342 = vmatprep.subr.mxu0 0.0
    %2343 = vmatpush1.msra.mxu0 0.0
    %2344 = vmatprep.subr.mxu0 0.0
    %2345 = vmatpush1.msra.mxu0 0.0
    %2346 = vmatprep.subr.mxu0 0.0
    %2347 = vmatpush1.msra.mxu0 0.0
    %2348 = vmatprep.subr.mxu0 0.0
    %2349 = vmatpush1.msra.mxu0 0.0
    %2350 = vmatprep.subr.mxu0 0.0
    %2351 = vmatpush1.msra.mxu0 0.0
    %2352 = vmatprep.subr.mxu0 0.0
    %2353 = vmatpush1.msra.mxu0 0.0
    %2354 = vmatprep.mubr.f32.mxu0 0.0
    %2355 = vmatmul.mubr.f32.gmra.mrb[0].mxu0 %v2286
    %v2356 = vpop.f32.mrb[0].mxu0
    %v2357 = vadd.f32 0.0, %v2356
    %v2358 = vpop.f32.mrb[0].mxu0
    %v2359 = vadd.f32 0.0, %v2358
    %2360 = vmatprep.mubr.f32.mxu0 0.0
    %2361 = vmatmul.mubr.f32.gmra.mrb[0].mxu0 %v2288
    %v2362 = vpop.f32.mrb[0].mxu0
    %v2363 = vadd.f32 0.0, %v2362
    %v2364 = vpop.f32.mrb[0].mxu0
    %v2365 = vadd.f32 0.0, %v2364
    %2366 = vdwg.mxu0
    %v2367 = vadd.f32 %v2250, %v2357
    %v2368 = vadd.f32 %v2251, %v2359
    %v2369 = vadd.f32 %v2252, %v2363
    %v2370 = vadd.f32 %v2253, %v2365
    %s2371 = scalar_lea.vmem [#allocation5], 896
    %v2372 = vld [vmem:[%s2371] sm:$0xff]
    %v2373 = vld [vmem:[%s2371 + $0x8] sm:$0xff]
    %v2374 = vld [vmem:[%s2371 + $0x10] sm:$0xff]
    %v2375 = vld [vmem:[%s2371 + $0x18] sm:$0xff]
    %v2376 = vld [vmem:[%s2371 + $0x20] sm:$0xff]
    %v2377 = vld [vmem:[%s2371 + $0x28] sm:$0xff]
    %v2378 = vld [vmem:[%s2371 + $0x30] sm:$0xff]
    %v2379 = vld [vmem:[%s2371 + $0x38] sm:$0xff]
    %v2380 = vld [vmem:[%s2371 + $0x40] sm:$0xff]
    %v2381 = vld [vmem:[%s2371 + $0x48] sm:$0xff]
    %v2382 = vld [vmem:[%s2371 + $0x50] sm:$0xff]
    %v2383 = vld [vmem:[%s2371 + $0x58] sm:$0xff]
    %v2384 = vld [vmem:[%s2371 + $0x60] sm:$0xff]
    %v2385 = vld [vmem:[%s2371 + $0x68] sm:$0xff]
    %v2386 = vld [vmem:[%s2371 + $0x70] sm:$0xff]
    %v2387 = vld [vmem:[%s2371 + $0x78] sm:$0xff]
    %v2388 = vld [vmem:[%s2371 + $0x80] sm:$0xff]
    %v2389 = vld [vmem:[%s2371 + $0x88] sm:$0xff]
    %v2390 = vld [vmem:[%s2371 + $0x90] sm:$0xff]
    %v2391 = vld [vmem:[%s2371 + $0x98] sm:$0xff]
    %v2392 = vld [vmem:[%s2371 + $0xa0] sm:$0xff]
    %v2393 = vld [vmem:[%s2371 + $0xa8] sm:$0xff]
    %v2394 = vld [vmem:[%s2371 + $0xb0] sm:$0xff]
    %v2395 = vld [vmem:[%s2371 + $0xb8] sm:$0xff]
    %v2396 = vld [vmem:[%s2371 + $0xc0] sm:$0xff]
    %v2397 = vld [vmem:[%s2371 + $0xc8] sm:$0xff]
    %v2398 = vld [vmem:[%s2371 + $0xd0] sm:$0xff]
    %v2399 = vld [vmem:[%s2371 + $0xd8] sm:$0xff]
    %vm2400 = vcmask 1043456
    %v2401 = vrot.slane %v1039, 4
    %v2402 = vrot.slane %v1040, 4
    %v2403 = vsel %vm2400, %v2401, %v2402
    %v2404 = vsel %vm1970, %v2403, 0
    %v2406 = vsel %vm1970, %v2402, 0
    %2408 = vmatprep.subr.mxu0 %v2373
    %2409 = vmatpush1.msra.mxu0 %v2372
    %2410 = vmatprep.subr.mxu0 %v2375
    %2411 = vmatpush1.msra.mxu0 %v2374
    %2412 = vmatprep.subr.mxu0 %v2377
    %2413 = vmatpush1.msra.mxu0 %v2376
    %2414 = vmatprep.subr.mxu0 %v2379
    %2415 = vmatpush1.msra.mxu0 %v2378
    %2416 = vmatprep.subr.mxu0 %v2381
    %2417 = vmatpush1.msra.mxu0 %v2380
    %2418 = vmatprep.subr.mxu0 %v2383
    %2419 = vmatpush1.msra.mxu0 %v2382
    %2420 = vmatprep.subr.mxu0 %v2385
    %2421 = vmatpush1.msra.mxu0 %v2384
    %2422 = vmatprep.subr.mxu0 %v2387
    %2423 = vmatpush1.msra.mxu0 %v2386
    %2424 = vmatprep.subr.mxu0 %v2389
    %2425 = vmatpush1.msra.mxu0 %v2388
    %2426 = vmatprep.subr.mxu0 %v2391
    %2427 = vmatpush1.msra.mxu0 %v2390
    %2428 = vmatprep.subr.mxu0 %v2393
    %2429 = vmatpush1.msra.mxu0 %v2392
    %2430 = vmatprep.subr.mxu0 %v2395
    %2431 = vmatpush1.msra.mxu0 %v2394
    %2432 = vmatprep.subr.mxu0 %v2397
    %2433 = vmatpush1.msra.mxu0 %v2396
    %2434 = vmatprep.subr.mxu0 %v2399
    %2435 = vmatpush1.msra.mxu0 %v2398
    %2436 = vmatprep.subr.mxu0 0.0
    %2437 = vmatpush1.msra.mxu0 0.0
    %2438 = vmatprep.subr.mxu0 0.0
    %2439 = vmatpush1.msra.mxu0 0.0
    %2440 = vmatprep.subr.mxu0 0.0
    %2441 = vmatpush1.msra.mxu0 0.0
    %2442 = vmatprep.subr.mxu0 0.0
    %2443 = vmatpush1.msra.mxu0 0.0
    %2444 = vmatprep.subr.mxu0 0.0
    %2445 = vmatpush1.msra.mxu0 0.0
    %2446 = vmatprep.subr.mxu0 0.0
    %2447 = vmatpush1.msra.mxu0 0.0
    %2448 = vmatprep.subr.mxu0 0.0
    %2449 = vmatpush1.msra.mxu0 0.0
    %2450 = vmatprep.subr.mxu0 0.0
    %2451 = vmatpush1.msra.mxu0 0.0
    %2452 = vmatprep.subr.mxu0 0.0
    %2453 = vmatpush1.msra.mxu0 0.0
    %2454 = vmatprep.subr.mxu0 0.0
    %2455 = vmatpush1.msra.mxu0 0.0
    %2456 = vmatprep.subr.mxu0 0.0
    %2457 = vmatpush1.msra.mxu0 0.0
    %2458 = vmatprep.subr.mxu0 0.0
    %2459 = vmatpush1.msra.mxu0 0.0
    %2460 = vmatprep.subr.mxu0 0.0
    %2461 = vmatpush1.msra.mxu0 0.0
    %2462 = vmatprep.subr.mxu0 0.0
    %2463 = vmatpush1.msra.mxu0 0.0
    %2464 = vmatprep.subr.mxu0 0.0
    %2465 = vmatpush1.msra.mxu0 0.0
    %2466 = vmatprep.subr.mxu0 0.0
    %2467 = vmatpush1.msra.mxu0 0.0
    %2468 = vmatprep.subr.mxu0 0.0
    %2469 = vmatpush1.msra.mxu0 0.0
    %2470 = vmatprep.subr.mxu0 0.0
    %2471 = vmatpush1.msra.mxu0 0.0
    %2472 = vmatprep.mubr.f32.mxu0 0.0
    %2473 = vmatmul.mubr.f32.gmra.mrb[0].mxu0 %v2404
    %v2474 = vpop.f32.mrb[0].mxu0
    %v2475 = vadd.f32 0.0, %v2474
    %v2476 = vpop.f32.mrb[0].mxu0
    %v2477 = vadd.f32 0.0, %v2476
    %2478 = vmatprep.mubr.f32.mxu0 0.0
    %2479 = vmatmul.mubr.f32.gmra.mrb[0].mxu0 %v2406
    %v2480 = vpop.f32.mrb[0].mxu0
    %v2481 = vadd.f32 0.0, %v2480
    %v2482 = vpop.f32.mrb[0].mxu0
    %v2483 = vadd.f32 0.0, %v2482
    %2484 = vdwg.mxu0
    %v2485 = vadd.f32 %v2367, %v2475
    %v2486 = vadd.f32 %v2368, %v2477
    %v2487 = vadd.f32 %v2369, %v2481
    %v2488 = vadd.f32 %v2370, %v2483
    %v2490 = vlaneseq
    %v2491 = vshrl.u32 %v2490, 7
    %v2492 = vsub.s32 0, %v2491
    %v2493 = vrot.slane %v87, %v2492
    %v2494 = vlaneseq
    %v2495 = vshrl.u32 %v2494, 7
    %v2496 = vsub.s32 1, %v2495
    %v2497 = vrot.slane %v87, %v2496
    %v2500 = vadd.f32 %v2485, %v2493
    %v2501 = vadd.f32 %v2486, %v2497
    %v2502 = vadd.f32 %v2487, %v2493
    %v2503 = vadd.f32 %v2488, %v2497
    %v2504 = vxor.u32 %v2500, 2147483648
    %v2505 = vxor.u32 %v2501, 2147483648
    %v2506 = vxor.u32 %v2502, 2147483648
    %v2507 = vxor.u32 %v2503, 2147483648
    %v2508 = vmul.f32 %v2504, 1.442695
    %v2509 = vpow.pop %v2508
    %v2510 = vmul.f32 %v2505, 1.442695
    %v2511 = vpow.pop %v2510
    %v2512 = vmul.f32 %v2506, 1.442695
    %v2513 = vpow.pop %v2512
    %v2514 = vmul.f32 %v2507, 1.442695
    %v2515 = vpow.pop %v2514
    %v2516 = vadd.f32 %v2509, 1.0
    %v2517 = vadd.f32 %v2511, 1.0
    %v2518 = vadd.f32 %v2513, 1.0
    %v2519 = vadd.f32 %v2515, 1.0
    %v2520 = vrcp.pop %v2516
    %v2521 = vmul.f32 1.0, %v2520
    %v2522 = vrcp.pop %v2517
    %v2523 = vmul.f32 1.0, %v2522
    %v2524 = vrcp.pop %v2518
    %v2525 = vmul.f32 1.0, %v2524
    %v2526 = vrcp.pop %v2519
    %v2527 = vmul.f32 1.0, %v2526
    %v2528 = vadd.f32 %v2521, %v2523
    %v2529 = vadd.f32 %v2525, %v2527
    %2530 = vmatprep.subr.mxu0 %v1943
    %2531 = vmatpush1.msra.mxu0 %v1942
    %2532 = vmatprep.subr.mxu0 %v1945
    %2533 = vmatpush1.msra.mxu0 %v1944
    %2534 = vmatprep.subr.mxu0 %v1947
    %2535 = vmatpush1.msra.mxu0 %v1946
    %2536 = vmatprep.subr.mxu0 %v1949
    %2537 = vmatpush1.msra.mxu0 %v1948
    %2538 = vmatprep.subr.mxu0 %v1951
    %2539 = vmatpush1.msra.mxu0 %v1950
    %2540 = vmatprep.subr.mxu0 %v1953
    %2541 = vmatpush1.msra.mxu0 %v1952
    %2542 = vmatprep.subr.mxu0 %v1955
    %2543 = vmatpush1.msra.mxu0 %v1954
    %2544 = vmatprep.subr.mxu0 %v1957
    %2545 = vmatpush1.msra.mxu0 %v1956
    %2546 = vmatprep.subr.mxu0 %v1959
    %2547 = vmatpush1.msra.mxu0 %v1958
    %2548 = vmatprep.subr.mxu0 %v1961
    %2549 = vmatpush1.msra.mxu0 %v1960
    %2550 = vmatprep.subr.mxu0 %v1963
    %2551 = vmatpush1.msra.mxu0 %v1962
    %2552 = vmatprep.subr.mxu0 %v1965
    %2553 = vmatpush1.msra.mxu0 %v1964
    %2554 = vmatprep.subr.mxu0 %v1967
    %2555 = vmatpush1.msra.mxu0 %v1966
    %2556 = vmatprep.subr.mxu0 %v1969
    %2557 = vmatpush1.msra.mxu0 %v1968
    %2558 = vmatprep.subr.mxu0 0.0
    %2559 = vmatpush1.msra.mxu0 0.0
    %2560 = vmatprep.subr.mxu0 0.0
    %2561 = vmatpush1.msra.mxu0 0.0
    %2562 = vmatprep.subr.mxu0 0.0
    %2563 = vmatpush1.msra.mxu0 0.0
    %2564 = vmatprep.subr.mxu0 0.0
    %2565 = vmatpush1.msra.mxu0 0.0
    %2566 = vmatprep.subr.mxu0 0.0
    %2567 = vmatpush1.msra.mxu0 0.0
    %2568 = vmatprep.subr.mxu0 0.0
    %2569 = vmatpush1.msra.mxu0 0.0
    %2570 = vmatprep.subr.mxu0 0.0
    %2571 = vmatpush1.msra.mxu0 0.0
    %2572 = vmatprep.subr.mxu0 0.0
    %2573 = vmatpush1.msra.mxu0 0.0
    %2574 = vmatprep.subr.mxu0 0.0
    %2575 = vmatpush1.msra.mxu0 0.0
    %2576 = vmatprep.subr.mxu0 0.0
    %2577 = vmatpush1.msra.mxu0 0.0
    %2578 = vmatprep.subr.mxu0 0.0
    %2579 = vmatpush1.msra.mxu0 0.0
    %2580 = vmatprep.subr.mxu0 0.0
    %2581 = vmatpush1.msra.mxu0 0.0
    %2582 = vmatprep.subr.mxu0 0.0
    %2583 = vmatpush1.msra.mxu0 0.0
    %2584 = vmatprep.subr.mxu0 0.0
    %2585 = vmatpush1.msra.mxu0 0.0
    %2586 = vmatprep.subr.mxu0 0.0
    %2587 = vmatpush1.msra.mxu0 0.0
    %2588 = vmatprep.subr.mxu0 0.0
    %2589 = vmatpush1.msra.mxu0 0.0
    %2590 = vmatprep.subr.mxu0 0.0
    %2591 = vmatpush1.msra.mxu0 0.0
    %2592 = vmatprep.subr.mxu0 0.0
    %2593 = vmatpush1.msra.mxu0 0.0
    %2594 = vmatprep.mubr.f32.mxu0 0.0
    %2595 = vmatmul.mubr.f32.gmra.mrb[0].mxu0 %v2169
    %v2596 = vpop.f32.mrb[0].mxu0
    %v2597 = vadd.f32 0.0, %v2596
    %v2598 = vpop.f32.mrb[0].mxu0
    %v2599 = vadd.f32 0.0, %v2598
    %2600 = vmatprep.mubr.f32.mxu0 0.0
    %2601 = vmatmul.mubr.f32.gmra.mrb[0].mxu0 %v2171
    %v2602 = vpop.f32.mrb[0].mxu0
    %v2603 = vadd.f32 0.0, %v2602
    %v2604 = vpop.f32.mrb[0].mxu0
    %v2605 = vadd.f32 0.0, %v2604
    %2606 = vdwg.mxu0
    %2607 = vmatprep.subr.mxu0 %v1914
    %2608 = vmatpush1.msra.mxu0 %v1913
    %2609 = vmatprep.subr.mxu0 %v1916
    %2610 = vmatpush1.msra.mxu0 %v1915
    %2611 = vmatprep.subr.mxu0 %v1918
    %2612 = vmatpush1.msra.mxu0 %v1917
    %2613 = vmatprep.subr.mxu0 %v1920
    %2614 = vmatpush1.msra.mxu0 %v1919
    %2615 = vmatprep.subr.mxu0 %v1922
    %2616 = vmatpush1.msra.mxu0 %v1921
    %2617 = vmatprep.subr.mxu0 %v1924
    %2618 = vmatpush1.msra.mxu0 %v1923
    %2619 = vmatprep.subr.mxu0 %v1926
    %2620 = vmatpush1.msra.mxu0 %v1925
    %2621 = vmatprep.subr.mxu0 %v1928
    %2622 = vmatpush1.msra.mxu0 %v1927
    %2623 = vmatprep.subr.mxu0 %v1930
    %2624 = vmatpush1.msra.mxu0 %v1929
    %2625 = vmatprep.subr.mxu0 %v1932
    %2626 = vmatpush1.msra.mxu0 %v1931
    %2627 = vmatprep.subr.mxu0 %v1934
    %2628 = vmatpush1.msra.mxu0 %v1933
    %2629 = vmatprep.subr.mxu0 %v1936
    %2630 = vmatpush1.msra.mxu0 %v1935
    %2631 = vmatprep.subr.mxu0 %v1938
    %2632 = vmatpush1.msra.mxu0 %v1937
    %2633 = vmatprep.subr.mxu0 %v1940
    %2634 = vmatpush1.msra.mxu0 %v1939
    %2635 = vmatprep.subr.mxu0 0.0
    %2636 = vmatpush1.msra.mxu0 0.0
    %2637 = vmatprep.subr.mxu0 0.0
    %2638 = vmatpush1.msra.mxu0 0.0
    %2639 = vmatprep.subr.mxu0 0.0
    %2640 = vmatpush1.msra.mxu0 0.0
    %2641 = vmatprep.subr.mxu0 0.0
    %2642 = vmatpush1.msra.mxu0 0.0
    %2643 = vmatprep.subr.mxu0 0.0
    %2644 = vmatpush1.msra.mxu0 0.0
    %2645 = vmatprep.subr.mxu0 0.0
    %2646 = vmatpush1.msra.mxu0 0.0
    %2647 = vmatprep.subr.mxu0 0.0
    %2648 = vmatpush1.msra.mxu0 0.0
    %2649 = vmatprep.subr.mxu0 0.0
    %2650 = vmatpush1.msra.mxu0 0.0
    %2651 = vmatprep.subr.mxu0 0.0
    %2652 = vmatpush1.msra.mxu0 0.0
    %2653 = vmatprep.subr.mxu0 0.0
    %2654 = vmatpush1.msra.mxu0 0.0
    %2655 = vmatprep.subr.mxu0 0.0
    %2656 = vmatpush1.msra.mxu0 0.0
    %2657 = vmatprep.subr.mxu0 0.0
    %2658 = vmatpush1.msra.mxu0 0.0
    %2659 = vmatprep.subr.mxu0 0.0
    %2660 = vmatpush1.msra.mxu0 0.0
    %2661 = vmatprep.subr.mxu0 0.0
    %2662 = vmatpush1.msra.mxu0 0.0
    %2663 = vmatprep.subr.mxu0 0.0
    %2664 = vmatpush1.msra.mxu0 0.0
    %2665 = vmatprep.subr.mxu0 0.0
    %2666 = vmatpush1.msra.mxu0 0.0
    %2667 = vmatprep.subr.mxu0 0.0
    %2668 = vmatpush1.msra.mxu0 0.0
    %2669 = vmatprep.subr.mxu0 0.0
    %2670 = vmatpush1.msra.mxu0 0.0
    %2671 = vmatprep.mubr.f32.mxu0 0.0
    %2672 = vmatmul.mubr.f32.gmra.mrb[0].mxu0 %v1972
    %v2673 = vpop.f32.mrb[0].mxu0
    %v2674 = vadd.f32 %v2597, %v2673
    %v2675 = vpop.f32.mrb[0].mxu0
    %v2676 = vadd.f32 %v2599, %v2675
    %2677 = vmatprep.mubr.f32.mxu0 0.0
    %2678 = vmatmul.mubr.f32.gmra.mrb[0].mxu0 %v1975
    %v2679 = vpop.f32.mrb[0].mxu0
    %v2680 = vadd.f32 %v2603, %v2679
    %v2681 = vpop.f32.mrb[0].mxu0
    %v2682 = vadd.f32 %v2605, %v2681
    %2683 = vdwg.mxu0
    %2684 = vmatprep.subr.mxu0 %v2139
    %2685 = vmatpush1.msra.mxu0 %v2138
    %2686 = vmatprep.subr.mxu0 %v2141
    %2687 = vmatpush1.msra.mxu0 %v2140
    %2688 = vmatprep.subr.mxu0 %v2143
    %2689 = vmatpush1.msra.mxu0 %v2142
    %2690 = vmatprep.subr.mxu0 %v2145
    %2691 = vmatpush1.msra.mxu0 %v2144
    %2692 = vmatprep.subr.mxu0 %v2147
    %2693 = vmatpush1.msra.mxu0 %v2146
    %2694 = vmatprep.subr.mxu0 %v2149
    %2695 = vmatpush1.msra.mxu0 %v2148
    %2696 = vmatprep.subr.mxu0 %v2151
    %2697 = vmatpush1.msra.mxu0 %v2150
    %2698 = vmatprep.subr.mxu0 %v2153
    %2699 = vmatpush1.msra.mxu0 %v2152
    %2700 = vmatprep.subr.mxu0 %v2155
    %2701 = vmatpush1.msra.mxu0 %v2154
    %2702 = vmatprep.subr.mxu0 %v2157
    %2703 = vmatpush1.msra.mxu0 %v2156
    %2704 = vmatprep.subr.mxu0 %v2159
    %2705 = vmatpush1.msra.mxu0 %v2158
    %2706 = vmatprep.subr.mxu0 %v2161
    %2707 = vmatpush1.msra.mxu0 %v2160
    %2708 = vmatprep.subr.mxu0 %v2163
    %2709 = vmatpush1.msra.mxu0 %v2162
    %2710 = vmatprep.subr.mxu0 %v2165
    %2711 = vmatpush1.msra.mxu0 %v2164
    %2712 = vmatprep.subr.mxu0 0.0
    %2713 = vmatpush1.msra.mxu0 0.0
    %2714 = vmatprep.subr.mxu0 0.0
    %2715 = vmatpush1.msra.mxu0 0.0
    %2716 = vmatprep.subr.mxu0 0.0
    %2717 = vmatpush1.msra.mxu0 0.0
    %2718 = vmatprep.subr.mxu0 0.0
    %2719 = vmatpush1.msra.mxu0 0.0
    %2720 = vmatprep.subr.mxu0 0.0
    %2721 = vmatpush1.msra.mxu0 0.0
    %2722 = vmatprep.subr.mxu0 0.0
    %2723 = vmatpush1.msra.mxu0 0.0
    %2724 = vmatprep.subr.mxu0 0.0
    %2725 = vmatpush1.msra.mxu0 0.0
    %2726 = vmatprep.subr.mxu0 0.0
    %2727 = vmatpush1.msra.mxu0 0.0
    %2728 = vmatprep.subr.mxu0 0.0
    %2729 = vmatpush1.msra.mxu0 0.0
    %2730 = vmatprep.subr.mxu0 0.0
    %2731 = vmatpush1.msra.mxu0 0.0
    %2732 = vmatprep.subr.mxu0 0.0
    %2733 = vmatpush1.msra.mxu0 0.0
    %2734 = vmatprep.subr.mxu0 0.0
    %2735 = vmatpush1.msra.mxu0 0.0
    %2736 = vmatprep.subr.mxu0 0.0
    %2737 = vmatpush1.msra.mxu0 0.0
    %2738 = vmatprep.subr.mxu0 0.0
    %2739 = vmatpush1.msra.mxu0 0.0
    %2740 = vmatprep.subr.mxu0 0.0
    %2741 = vmatpush1.msra.mxu0 0.0
    %2742 = vmatprep.subr.mxu0 0.0
    %2743 = vmatpush1.msra.mxu0 0.0
    %2744 = vmatprep.subr.mxu0 0.0
    %2745 = vmatpush1.msra.mxu0 0.0
    %2746 = vmatprep.subr.mxu0 0.0
    %2747 = vmatpush1.msra.mxu0 0.0
    %2748 = vmatprep.mubr.f32.mxu0 0.0
    %2749 = vmatmul.mubr.f32.gmra.mrb[0].mxu0 %v2286
    %v2750 = vpop.f32.mrb[0].mxu0
    %v2751 = vadd.f32 0.0, %v2750
    %v2752 = vpop.f32.mrb[0].mxu0
    %v2753 = vadd.f32 0.0, %v2752
    %2754 = vmatprep.mubr.f32.mxu0 0.0
    %2755 = vmatmul.mubr.f32.gmra.mrb[0].mxu0 %v2288
    %v2756 = vpop.f32.mrb[0].mxu0
    %v2757 = vadd.f32 0.0, %v2756
    %v2758 = vpop.f32.mrb[0].mxu0
    %v2759 = vadd.f32 0.0, %v2758
    %2760 = vdwg.mxu0
    %v2761 = vadd.f32 %v2674, %v2751
    %v2762 = vadd.f32 %v2676, %v2753
    %v2763 = vadd.f32 %v2680, %v2757
    %v2764 = vadd.f32 %v2682, %v2759
    %2765 = vmatprep.subr.mxu0 %v2256
    %2766 = vmatpush1.msra.mxu0 %v2255
    %2767 = vmatprep.subr.mxu0 %v2258
    %2768 = vmatpush1.msra.mxu0 %v2257
    %2769 = vmatprep.subr.mxu0 %v2260
    %2770 = vmatpush1.msra.mxu0 %v2259
    %2771 = vmatprep.subr.mxu0 %v2262
    %2772 = vmatpush1.msra.mxu0 %v2261
    %2773 = vmatprep.subr.mxu0 %v2264
    %2774 = vmatpush1.msra.mxu0 %v2263
    %2775 = vmatprep.subr.mxu0 %v2266
    %2776 = vmatpush1.msra.mxu0 %v2265
    %2777 = vmatprep.subr.mxu0 %v2268
    %2778 = vmatpush1.msra.mxu0 %v2267
    %2779 = vmatprep.subr.mxu0 %v2270
    %2780 = vmatpush1.msra.mxu0 %v2269
    %2781 = vmatprep.subr.mxu0 %v2272
    %2782 = vmatpush1.msra.mxu0 %v2271
    %2783 = vmatprep.subr.mxu0 %v2274
    %2784 = vmatpush1.msra.mxu0 %v2273
    %2785 = vmatprep.subr.mxu0 %v2276
    %2786 = vmatpush1.msra.mxu0 %v2275
    %2787 = vmatprep.subr.mxu0 %v2278
    %2788 = vmatpush1.msra.mxu0 %v2277
    %2789 = vmatprep.subr.mxu0 %v2280
    %2790 = vmatpush1.msra.mxu0 %v2279
    %2791 = vmatprep.subr.mxu0 %v2282
    %2792 = vmatpush1.msra.mxu0 %v2281
    %2793 = vmatprep.subr.mxu0 0.0
    %2794 = vmatpush1.msra.mxu0 0.0
    %2795 = vmatprep.subr.mxu0 0.0
    %2796 = vmatpush1.msra.mxu0 0.0
    %2797 = vmatprep.subr.mxu0 0.0
    %2798 = vmatpush1.msra.mxu0 0.0
    %2799 = vmatprep.subr.mxu0 0.0
    %2800 = vmatpush1.msra.mxu0 0.0
    %2801 = vmatprep.subr.mxu0 0.0
    %2802 = vmatpush1.msra.mxu0 0.0
    %2803 = vmatprep.subr.mxu0 0.0
    %2804 = vmatpush1.msra.mxu0 0.0
    %2805 = vmatprep.subr.mxu0 0.0
    %2806 = vmatpush1.msra.mxu0 0.0
    %2807 = vmatprep.subr.mxu0 0.0
    %2808 = vmatpush1.msra.mxu0 0.0
    %2809 = vmatprep.subr.mxu0 0.0
    %2810 = vmatpush1.msra.mxu0 0.0
    %2811 = vmatprep.subr.mxu0 0.0
    %2812 = vmatpush1.msra.mxu0 0.0
    %2813 = vmatprep.subr.mxu0 0.0
    %2814 = vmatpush1.msra.mxu0 0.0
    %2815 = vmatprep.subr.mxu0 0.0
    %2816 = vmatpush1.msra.mxu0 0.0
    %2817 = vmatprep.subr.mxu0 0.0
    %2818 = vmatpush1.msra.mxu0 0.0
    %2819 = vmatprep.subr.mxu0 0.0
    %2820 = vmatpush1.msra.mxu0 0.0
    %2821 = vmatprep.subr.mxu0 0.0
    %2822 = vmatpush1.msra.mxu0 0.0
    %2823 = vmatprep.subr.mxu0 0.0
    %2824 = vmatpush1.msra.mxu0 0.0
    %2825 = vmatprep.subr.mxu0 0.0
    %2826 = vmatpush1.msra.mxu0 0.0
    %2827 = vmatprep.subr.mxu0 0.0
    %2828 = vmatpush1.msra.mxu0 0.0
    %2829 = vmatprep.mubr.f32.mxu0 0.0
    %2830 = vmatmul.mubr.f32.gmra.mrb[0].mxu0 %v2404
    %v2831 = vpop.f32.mrb[0].mxu0
    %v2832 = vadd.f32 0.0, %v2831
    %v2833 = vpop.f32.mrb[0].mxu0
    %v2834 = vadd.f32 0.0, %v2833
    %2835 = vmatprep.mubr.f32.mxu0 0.0
    %2836 = vmatmul.mubr.f32.gmra.mrb[0].mxu0 %v2406
    %v2837 = vpop.f32.mrb[0].mxu0
    %v2838 = vadd.f32 0.0, %v2837
    %v2839 = vpop.f32.mrb[0].mxu0
    %v2840 = vadd.f32 0.0, %v2839
    %2841 = vdwg.mxu0
    %v2842 = vadd.f32 %v2761, %v2832
    %v2843 = vadd.f32 %v2762, %v2834
    %v2844 = vadd.f32 %v2763, %v2838
    %v2845 = vadd.f32 %v2764, %v2840
    %v2846 = vrot.slane %v1911, 4
    %v2847 = vrot.slane %v1912, 4
    %v2848 = vsel %vm2400, %v2846, %v2847
    %v2849 = vsel %vm1970, %v2848, 0
    %v2851 = vsel %vm1970, %v2847, 0
    %2853 = vmatprep.subr.mxu0 %v2373
    %2854 = vmatpush1.msra.mxu0 %v2372
    %2855 = vmatprep.subr.mxu0 %v2375
    %2856 = vmatpush1.msra.mxu0 %v2374
    %2857 = vmatprep.subr.mxu0 %v2377
    %2858 = vmatpush1.msra.mxu0 %v2376
    %2859 = vmatprep.subr.mxu0 %v2379
    %2860 = vmatpush1.msra.mxu0 %v2378
    %2861 = vmatprep.subr.mxu0 %v2381
    %2862 = vmatpush1.msra.mxu0 %v2380
    %2863 = vmatprep.subr.mxu0 %v2383
    %2864 = vmatpush1.msra.mxu0 %v2382
    %2865 = vmatprep.subr.mxu0 %v2385
    %2866 = vmatpush1.msra.mxu0 %v2384
    %2867 = vmatprep.subr.mxu0 %v2387
    %2868 = vmatpush1.msra.mxu0 %v2386
    %2869 = vmatprep.subr.mxu0 %v2389
    %2870 = vmatpush1.msra.mxu0 %v2388
    %2871 = vmatprep.subr.mxu0 %v2391
    %2872 = vmatpush1.msra.mxu0 %v2390
    %2873 = vmatprep.subr.mxu0 %v2393
    %2874 = vmatpush1.msra.mxu0 %v2392
    %2875 = vmatprep.subr.mxu0 %v2395
    %2876 = vmatpush1.msra.mxu0 %v2394
    %2877 = vmatprep.subr.mxu0 %v2397
    %2878 = vmatpush1.msra.mxu0 %v2396
    %2879 = vmatprep.subr.mxu0 %v2399
    %2880 = vmatpush1.msra.mxu0 %v2398
    %2881 = vmatprep.subr.mxu0 0.0
    %2882 = vmatpush1.msra.mxu0 0.0
    %2883 = vmatprep.subr.mxu0 0.0
    %2884 = vmatpush1.msra.mxu0 0.0
    %2885 = vmatprep.subr.mxu0 0.0
    %2886 = vmatpush1.msra.mxu0 0.0
    %2887 = vmatprep.subr.mxu0 0.0
    %2888 = vmatpush1.msra.mxu0 0.0
    %2889 = vmatprep.subr.mxu0 0.0
    %2890 = vmatpush1.msra.mxu0 0.0
    %2891 = vmatprep.subr.mxu0 0.0
    %2892 = vmatpush1.msra.mxu0 0.0
    %2893 = vmatprep.subr.mxu0 0.0
    %2894 = vmatpush1.msra.mxu0 0.0
    %2895 = vmatprep.subr.mxu0 0.0
    %2896 = vmatpush1.msra.mxu0 0.0
    %2897 = vmatprep.subr.mxu0 0.0
    %2898 = vmatpush1.msra.mxu0 0.0
    %2899 = vmatprep.subr.mxu0 0.0
    %2900 = vmatpush1.msra.mxu0 0.0
    %2901 = vmatprep.subr.mxu0 0.0
    %2902 = vmatpush1.msra.mxu0 0.0
    %2903 = vmatprep.subr.mxu0 0.0
    %2904 = vmatpush1.msra.mxu0 0.0
    %2905 = vmatprep.subr.mxu0 0.0
    %2906 = vmatpush1.msra.mxu0 0.0
    %2907 = vmatprep.subr.mxu0 0.0
    %2908 = vmatpush1.msra.mxu0 0.0
    %2909 = vmatprep.subr.mxu0 0.0
    %2910 = vmatpush1.msra.mxu0 0.0
    %2911 = vmatprep.subr.mxu0 0.0
    %2912 = vmatpush1.msra.mxu0 0.0
    %2913 = vmatprep.subr.mxu0 0.0
    %2914 = vmatpush1.msra.mxu0 0.0
    %2915 = vmatprep.subr.mxu0 0.0
    %2916 = vmatpush1.msra.mxu0 0.0
    %2917 = vmatprep.mubr.f32.mxu0 0.0
    %2918 = vmatmul.mubr.f32.gmra.mrb[0].mxu0 %v2849
    %v2919 = vpop.f32.mrb[0].mxu0
    %v2920 = vadd.f32 0.0, %v2919
    %v2921 = vpop.f32.mrb[0].mxu0
    %v2922 = vadd.f32 0.0, %v2921
    %2923 = vmatprep.mubr.f32.mxu0 0.0
    %2924 = vmatmul.mubr.f32.gmra.mrb[0].mxu0 %v2851
    %v2925 = vpop.f32.mrb[0].mxu0
    %v2926 = vadd.f32 0.0, %v2925
    %v2927 = vpop.f32.mrb[0].mxu0
    %v2928 = vadd.f32 0.0, %v2927
    %2929 = vdwg.mxu0
    %v2930 = vadd.f32 %v2842, %v2920
    %v2931 = vadd.f32 %v2843, %v2922
    %v2932 = vadd.f32 %v2844, %v2926
    %v2933 = vadd.f32 %v2845, %v2928
    %v2934 = vadd.f32 %v2930, %v2493
    %v2935 = vadd.f32 %v2931, %v2497
    %v2936 = vadd.f32 %v2932, %v2493
    %v2937 = vadd.f32 %v2933, %v2497
    %v2938 = vxor.u32 %v2934, 2147483648
    %v2939 = vxor.u32 %v2935, 2147483648
    %v2940 = vxor.u32 %v2936, 2147483648
    %v2941 = vxor.u32 %v2937, 2147483648
    %v2942 = vmul.f32 %v2938, 1.442695
    %v2943 = vpow.pop %v2942
    %v2944 = vmul.f32 %v2939, 1.442695
    %v2945 = vpow.pop %v2944
    %v2946 = vmul.f32 %v2940, 1.442695
    %v2947 = vpow.pop %v2946
    %v2948 = vmul.f32 %v2941, 1.442695
    %v2949 = vpow.pop %v2948
    %v2950 = vadd.f32 %v2943, 1.0
    %v2951 = vadd.f32 %v2945, 1.0
    %v2952 = vadd.f32 %v2947, 1.0
    %v2953 = vadd.f32 %v2949, 1.0
    %v2954 = vrcp.pop %v2950
    %v2955 = vmul.f32 1.0, %v2954
    %v2956 = vrcp.pop %v2951
    %v2957 = vmul.f32 1.0, %v2956
    %v2958 = vrcp.pop %v2952
    %v2959 = vmul.f32 1.0, %v2958
    %v2960 = vrcp.pop %v2953
    %v2961 = vmul.f32 1.0, %v2960
    %v2962 = vadd.f32 %v2955, %v2957
    %v2963 = vadd.f32 %v2959, %v2961
    %v2964 = vadd.f32 %v2528, %v2962
    %v2965 = vadd.f32 %v2529, %v2963
    %v2966 = vmul.f32 %v2964, 0.25
    %v2967 = vmul.f32 %v2965, 0.25
    %v2968 = vld [vmem:[%s5] sm:$0xff]
    %v2969 = vld [vmem:[%s5 + $0x8] sm:$0xff]
    %v2970 = vld [vmem:[%s5 + $0x10] sm:$0xff]
    %v2971 = vld [vmem:[%s5 + $0x18] sm:$0xff]
    %v2972 = vld [vmem:[%s5 + $0x20] sm:$0xff]
    %v2973 = vld [vmem:[%s5 + $0x28] sm:$0xff]
    %v2974 = vld [vmem:[%s5 + $0x30] sm:$0xff]
    %v2975 = vld [vmem:[%s5 + $0x38] sm:$0xff]
    %v2976 = vld [vmem:[%s5 + $0x40] sm:$0xff]
    %v2977 = vld [vmem:[%s5 + $0x48] sm:$0xff]
    %v2978 = vld [vmem:[%s5 + $0x50] sm:$0xff]
    %v2979 = vld [vmem:[%s5 + $0x58] sm:$0xff]
    %v2980 = vld [vmem:[%s5 + $0x60] sm:$0xff]
    %v2981 = vld [vmem:[%s5 + $0x68] sm:$0xff]
    %v2982 = vld [vmem:[%s5 + $0x70] sm:$0xff]
    %v2983 = vld [vmem:[%s5 + $0x78] sm:$0xff]
    %v2984 = vld [vmem:[%s5 + $0x80] sm:$0xff]
    %v2985 = vld [vmem:[%s5 + $0x88] sm:$0xff]
    %v2986 = vld [vmem:[%s5 + $0x90] sm:$0xff]
    %v2987 = vld [vmem:[%s5 + $0x98] sm:$0xff]
    %v2988 = vld [vmem:[%s5 + $0xa0] sm:$0xff]
    %v2989 = vld [vmem:[%s5 + $0xa8] sm:$0xff]
    %v2990 = vld [vmem:[%s5 + $0xb0] sm:$0xff]
    %v2991 = vld [vmem:[%s5 + $0xb8] sm:$0xff]
    %v2992 = vld [vmem:[%s5 + $0xc0] sm:$0xff]
    %v2993 = vld [vmem:[%s5 + $0xc8] sm:$0xff]
    %v2994 = vld [vmem:[%s5 + $0xd0] sm:$0xff]
    %v2995 = vld [vmem:[%s5 + $0xd8] sm:$0xff]
    %v2996 = vld [vmem:[%s5 + $0xe0] sm:$0xff]
    %v2997 = vld [vmem:[%s5 + $0xe8] sm:$0xff]
    %v2998 = vld [vmem:[%s5 + $0xf0] sm:$0xff]
    %v2999 = vld [vmem:[%s5 + $0xf8] sm:$0xff]
    %v3000 = vld [vmem:[%s5 + $0x100] sm:$0xff]
    %v3001 = vld [vmem:[%s5 + $0x108] sm:$0xff]
    %v3002 = vld [vmem:[%s5 + $0x110] sm:$0xff]
    %v3003 = vld [vmem:[%s5 + $0x118] sm:$0xff]
    %v3004 = vld [vmem:[%s5 + $0x120] sm:$0xff]
    %v3005 = vld [vmem:[%s5 + $0x128] sm:$0xff]
    %v3006 = vld [vmem:[%s5 + $0x130] sm:$0xff]
    %v3007 = vld [vmem:[%s5 + $0x138] sm:$0xff]
    %v3008 = vld [vmem:[%s5 + $0x140] sm:$0xff]
    %v3009 = vld [vmem:[%s5 + $0x148] sm:$0xff]
    %v3010 = vld [vmem:[%s5 + $0x150] sm:$0xff]
    %v3011 = vld [vmem:[%s5 + $0x158] sm:$0xff]
    %v3012 = vld [vmem:[%s5 + $0x160] sm:$0xff]
    %v3013 = vld [vmem:[%s5 + $0x168] sm:$0xff]
    %v3014 = vld [vmem:[%s5 + $0x170] sm:$0xff]
    %v3015 = vld [vmem:[%s5 + $0x178] sm:$0xff]
    %v3016 = vld [vmem:[%s5 + $0x180] sm:$0xff]
    %v3017 = vld [vmem:[%s5 + $0x188] sm:$0xff]
    %v3019 = vrot.slane %v2966, 2
    %vm3020 = vcmask 654336
    %v3021 = vsel %vm3020, %v3019, 0
    %3023 = vmatprep.subr.mxu0 0.0
    %3024 = vmatpush1.msra.mxu0 %v2978
    %3025 = vmatprep.subr.mxu0 0.0
    %3026 = vmatpush1.msra.mxu0 %v2979
    %3027 = vmatprep.subr.mxu0 0.0
    %3028 = vmatpush1.msra.mxu0 %v2980
    %3029 = vmatprep.subr.mxu0 0.0
    %3030 = vmatpush1.msra.mxu0 %v2981
    %3031 = vmatprep.subr.mxu0 0.0
    %3032 = vmatpush1.msra.mxu0 %v2982
    %3033 = vmatprep.subr.mxu0 0.0
    %3034 = vmatpush1.msra.mxu0 %v2983
    %3035 = vmatprep.subr.mxu0 0.0
    %3036 = vmatpush1.msra.mxu0 %v2984
    %3037 = vmatprep.subr.mxu0 0.0
    %3038 = vmatpush1.msra.mxu0 %v2985
    %3039 = vmatprep.subr.mxu0 0.0
    %3040 = vmatpush1.msra.mxu0 %v2986
    %3041 = vmatprep.subr.mxu0 0.0
    %3042 = vmatpush1.msra.mxu0 %v2987
    %3043 = vmatprep.subr.mxu0 0.0
    %3044 = vmatpush1.msra.mxu0 0.0
    %3045 = vmatprep.subr.mxu0 0.0
    %3046 = vmatpush1.msra.mxu0 0.0
    %3047 = vmatprep.subr.mxu0 0.0
    %3048 = vmatpush1.msra.mxu0 0.0
    %3049 = vmatprep.subr.mxu0 0.0
    %3050 = vmatpush1.msra.mxu0 0.0
    %3051 = vmatprep.subr.mxu0 0.0
    %3052 = vmatpush1.msra.mxu0 0.0
    %3053 = vmatprep.subr.mxu0 0.0
    %3054 = vmatpush1.msra.mxu0 0.0
    %3055 = vmatprep.subr.mxu0 0.0
    %3056 = vmatpush1.msra.mxu0 0.0
    %3057 = vmatprep.subr.mxu0 0.0
    %3058 = vmatpush1.msra.mxu0 0.0
    %3059 = vmatprep.subr.mxu0 0.0
    %3060 = vmatpush1.msra.mxu0 0.0
    %3061 = vmatprep.subr.mxu0 0.0
    %3062 = vmatpush1.msra.mxu0 0.0
    %3063 = vmatprep.subr.mxu0 0.0
    %3064 = vmatpush1.msra.mxu0 0.0
    %3065 = vmatprep.subr.mxu0 0.0
    %3066 = vmatpush1.msra.mxu0 0.0
    %3067 = vmatprep.subr.mxu0 0.0
    %3068 = vmatpush1.msra.mxu0 0.0
    %3069 = vmatprep.subr.mxu0 0.0
    %3070 = vmatpush1.msra.mxu0 0.0
    %3071 = vmatprep.subr.mxu0 0.0
    %3072 = vmatpush1.msra.mxu0 0.0
    %3073 = vmatprep.subr.mxu0 0.0
    %3074 = vmatpush1.msra.mxu0 0.0
    %3075 = vmatprep.subr.mxu0 0.0
    %3076 = vmatpush1.msra.mxu0 0.0
    %3077 = vmatprep.subr.mxu0 0.0
    %3078 = vmatpush1.msra.mxu0 0.0
    %3079 = vmatprep.subr.mxu0 0.0
    %3080 = vmatpush1.msra.mxu0 0.0
    %3081 = vmatprep.subr.mxu0 0.0
    %3082 = vmatpush1.msra.mxu0 0.0
    %3083 = vmatprep.subr.mxu0 0.0
    %3084 = vmatpush1.msra.mxu0 0.0
    %3085 = vmatprep.subr.mxu0 0.0
    %3086 = vmatpush1.msra.mxu0 0.0
    %3087 = vmatprep.mubr.f32.mxu0 0.0
    %3088 = vmatmul.mubr.f32.gmra.mrb[0].mxu0 %v3021
    %v3089 = vpop.f32.mrb[0].mxu0
    %v3090 = vadd.f32 0.0, %v3089
    %v3091 = vpop.f32.mrb[0].mxu0
    %3092 = vdwg.mxu0
    %v3093 = vsel %vm3020, %v2966, 0
    %3095 = vmatprep.subr.mxu0 0.0
    %3096 = vmatpush1.msra.mxu0 %v2968
    %3097 = vmatprep.subr.mxu0 0.0
    %3098 = vmatpush1.msra.mxu0 %v2969
    %3099 = vmatprep.subr.mxu0 0.0
    %3100 = vmatpush1.msra.mxu0 %v2970
    %3101 = vmatprep.subr.mxu0 0.0
    %3102 = vmatpush1.msra.mxu0 %v2971
    %3103 = vmatprep.subr.mxu0 0.0
    %3104 = vmatpush1.msra.mxu0 %v2972
    %3105 = vmatprep.subr.mxu0 0.0
    %3106 = vmatpush1.msra.mxu0 %v2973
    %3107 = vmatprep.subr.mxu0 0.0
    %3108 = vmatpush1.msra.mxu0 %v2974
    %3109 = vmatprep.subr.mxu0 0.0
    %3110 = vmatpush1.msra.mxu0 %v2975
    %3111 = vmatprep.subr.mxu0 0.0
    %3112 = vmatpush1.msra.mxu0 %v2976
    %3113 = vmatprep.subr.mxu0 0.0
    %3114 = vmatpush1.msra.mxu0 %v2977
    %3115 = vmatprep.subr.mxu0 0.0
    %3116 = vmatpush1.msra.mxu0 0.0
    %3117 = vmatprep.subr.mxu0 0.0
    %3118 = vmatpush1.msra.mxu0 0.0
    %3119 = vmatprep.subr.mxu0 0.0
    %3120 = vmatpush1.msra.mxu0 0.0
    %3121 = vmatprep.subr.mxu0 0.0
    %3122 = vmatpush1.msra.mxu0 0.0
    %3123 = vmatprep.subr.mxu0 0.0
    %3124 = vmatpush1.msra.mxu0 0.0
    %3125 = vmatprep.subr.mxu0 0.0
    %3126 = vmatpush1.msra.mxu0 0.0
    %3127 = vmatprep.subr.mxu0 0.0
    %3128 = vmatpush1.msra.mxu0 0.0
    %3129 = vmatprep.subr.mxu0 0.0
    %3130 = vmatpush1.msra.mxu0 0.0
    %3131 = vmatprep.subr.mxu0 0.0
    %3132 = vmatpush1.msra.mxu0 0.0
    %3133 = vmatprep.subr.mxu0 0.0
    %3134 = vmatpush1.msra.mxu0 0.0
    %3135 = vmatprep.subr.mxu0 0.0
    %3136 = vmatpush1.msra.mxu0 0.0
    %3137 = vmatprep.subr.mxu0 0.0
    %3138 = vmatpush1.msra.mxu0 0.0
    %3139 = vmatprep.subr.mxu0 0.0
    %3140 = vmatpush1.msra.mxu0 0.0
    %3141 = vmatprep.subr.mxu0 0.0
    %3142 = vmatpush1.msra.mxu0 0.0
    %3143 = vmatprep.subr.mxu0 0.0
    %3144 = vmatpush1.msra.mxu0 0.0
    %3145 = vmatprep.subr.mxu0 0.0
    %3146 = vmatpush1.msra.mxu0 0.0
    %3147 = vmatprep.subr.mxu0 0.0
    %3148 = vmatpush1.msra.mxu0 0.0
    %3149 = vmatprep.subr.mxu0 0.0
    %3150 = vmatpush1.msra.mxu0 0.0
    %3151 = vmatprep.subr.mxu0 0.0
    %3152 = vmatpush1.msra.mxu0 0.0
    %3153 = vmatprep.subr.mxu0 0.0
    %3154 = vmatpush1.msra.mxu0 0.0
    %3155 = vmatprep.subr.mxu0 0.0
    %3156 = vmatpush1.msra.mxu0 0.0
    %3157 = vmatprep.subr.mxu0 0.0
    %3158 = vmatpush1.msra.mxu0 0.0
    %3159 = vmatprep.mubr.f32.mxu0 0.0
    %3160 = vmatmul.mubr.f32.gmra.mrb[0].mxu0 %v3093
    %v3161 = vpop.f32.mrb[0].mxu0
    %v3162 = vadd.f32 %v3090, %v3161
    %v3163 = vpop.f32.mrb[0].mxu0
    %3164 = vdwg.mxu0
    %v3165 = vrot.slane %v2966, 4
    %v3166 = vsel %vm3020, %v3165, 0
    %3168 = vmatprep.subr.mxu0 0.0
    %3169 = vmatpush1.msra.mxu0 %v2988
    %3170 = vmatprep.subr.mxu0 0.0
    %3171 = vmatpush1.msra.mxu0 %v2989
    %3172 = vmatprep.subr.mxu0 0.0
    %3173 = vmatpush1.msra.mxu0 %v2990
    %3174 = vmatprep.subr.mxu0 0.0
    %3175 = vmatpush1.msra.mxu0 %v2991
    %3176 = vmatprep.subr.mxu0 0.0
    %3177 = vmatpush1.msra.mxu0 %v2992
    %3178 = vmatprep.subr.mxu0 0.0
    %3179 = vmatpush1.msra.mxu0 %v2993
    %3180 = vmatprep.subr.mxu0 0.0
    %3181 = vmatpush1.msra.mxu0 %v2994
    %3182 = vmatprep.subr.mxu0 0.0
    %3183 = vmatpush1.msra.mxu0 %v2995
    %3184 = vmatprep.subr.mxu0 0.0
    %3185 = vmatpush1.msra.mxu0 %v2996
    %3186 = vmatprep.subr.mxu0 0.0
    %3187 = vmatpush1.msra.mxu0 %v2997
    %3188 = vmatprep.subr.mxu0 0.0
    %3189 = vmatpush1.msra.mxu0 0.0
    %3190 = vmatprep.subr.mxu0 0.0
    %3191 = vmatpush1.msra.mxu0 0.0
    %3192 = vmatprep.subr.mxu0 0.0
    %3193 = vmatpush1.msra.mxu0 0.0
    %3194 = vmatprep.subr.mxu0 0.0
    %3195 = vmatpush1.msra.mxu0 0.0
    %3196 = vmatprep.subr.mxu0 0.0
    %3197 = vmatpush1.msra.mxu0 0.0
    %3198 = vmatprep.subr.mxu0 0.0
    %3199 = vmatpush1.msra.mxu0 0.0
    %3200 = vmatprep.subr.mxu0 0.0
    %3201 = vmatpush1.msra.mxu0 0.0
    %3202 = vmatprep.subr.mxu0 0.0
    %3203 = vmatpush1.msra.mxu0 0.0
    %3204 = vmatprep.subr.mxu0 0.0
    %3205 = vmatpush1.msra.mxu0 0.0
    %3206 = vmatprep.subr.mxu0 0.0
    %3207 = vmatpush1.msra.mxu0 0.0
    %3208 = vmatprep.subr.mxu0 0.0
    %3209 = vmatpush1.msra.mxu0 0.0
    %3210 = vmatprep.subr.mxu0 0.0
    %3211 = vmatpush1.msra.mxu0 0.0
    %3212 = vmatprep.subr.mxu0 0.0
    %3213 = vmatpush1.msra.mxu0 0.0
    %3214 = vmatprep.subr.mxu0 0.0
    %3215 = vmatpush1.msra.mxu0 0.0
    %3216 = vmatprep.subr.mxu0 0.0
    %3217 = vmatpush1.msra.mxu0 0.0
    %3218 = vmatprep.subr.mxu0 0.0
    %3219 = vmatpush1.msra.mxu0 0.0
    %3220 = vmatprep.subr.mxu0 0.0
    %3221 = vmatpush1.msra.mxu0 0.0
    %3222 = vmatprep.subr.mxu0 0.0
    %3223 = vmatpush1.msra.mxu0 0.0
    %3224 = vmatprep.subr.mxu0 0.0
    %3225 = vmatpush1.msra.mxu0 0.0
    %3226 = vmatprep.subr.mxu0 0.0
    %3227 = vmatpush1.msra.mxu0 0.0
    %3228 = vmatprep.subr.mxu0 0.0
    %3229 = vmatpush1.msra.mxu0 0.0
    %3230 = vmatprep.subr.mxu0 0.0
    %3231 = vmatpush1.msra.mxu0 0.0
    %3232 = vmatprep.mubr.f32.mxu0 0.0
    %3233 = vmatmul.mubr.f32.gmra.mrb[0].mxu0 %v3166
    %v3234 = vpop.f32.mrb[0].mxu0
    %v3235 = vadd.f32 0.0, %v3234
    %v3236 = vpop.f32.mrb[0].mxu0
    %3237 = vdwg.mxu0
    %v3238 = vadd.f32 %v3162, %v3235
    %v3239 = vrot.slane %v2966, 6
    %v3240 = vsel %vm3020, %v3239, 0
    %3242 = vmatprep.subr.mxu0 0.0
    %3243 = vmatpush1.msra.mxu0 %v2998
    %3244 = vmatprep.subr.mxu0 0.0
    %3245 = vmatpush1.msra.mxu0 %v2999
    %3246 = vmatprep.subr.mxu0 0.0
    %3247 = vmatpush1.msra.mxu0 %v3000
    %3248 = vmatprep.subr.mxu0 0.0
    %3249 = vmatpush1.msra.mxu0 %v3001
    %3250 = vmatprep.subr.mxu0 0.0
    %3251 = vmatpush1.msra.mxu0 %v3002
    %3252 = vmatprep.subr.mxu0 0.0
    %3253 = vmatpush1.msra.mxu0 %v3003
    %3254 = vmatprep.subr.mxu0 0.0
    %3255 = vmatpush1.msra.mxu0 %v3004
    %3256 = vmatprep.subr.mxu0 0.0
    %3257 = vmatpush1.msra.mxu0 %v3005
    %3258 = vmatprep.subr.mxu0 0.0
    %3259 = vmatpush1.msra.mxu0 %v3006
    %3260 = vmatprep.subr.mxu0 0.0
    %3261 = vmatpush1.msra.mxu0 %v3007
    %3262 = vmatprep.subr.mxu0 0.0
    %3263 = vmatpush1.msra.mxu0 0.0
    %3264 = vmatprep.subr.mxu0 0.0
    %3265 = vmatpush1.msra.mxu0 0.0
    %3266 = vmatprep.subr.mxu0 0.0
    %3267 = vmatpush1.msra.mxu0 0.0
    %3268 = vmatprep.subr.mxu0 0.0
    %3269 = vmatpush1.msra.mxu0 0.0
    %3270 = vmatprep.subr.mxu0 0.0
    %3271 = vmatpush1.msra.mxu0 0.0
    %3272 = vmatprep.subr.mxu0 0.0
    %3273 = vmatpush1.msra.mxu0 0.0
    %3274 = vmatprep.subr.mxu0 0.0
    %3275 = vmatpush1.msra.mxu0 0.0
    %3276 = vmatprep.subr.mxu0 0.0
    %3277 = vmatpush1.msra.mxu0 0.0
    %3278 = vmatprep.subr.mxu0 0.0
    %3279 = vmatpush1.msra.mxu0 0.0
    %3280 = vmatprep.subr.mxu0 0.0
    %3281 = vmatpush1.msra.mxu0 0.0
    %3282 = vmatprep.subr.mxu0 0.0
    %3283 = vmatpush1.msra.mxu0 0.0
    %3284 = vmatprep.subr.mxu0 0.0
    %3285 = vmatpush1.msra.mxu0 0.0
    %3286 = vmatprep.subr.mxu0 0.0
    %3287 = vmatpush1.msra.mxu0 0.0
    %3288 = vmatprep.subr.mxu0 0.0
    %3289 = vmatpush1.msra.mxu0 0.0
    %3290 = vmatprep.subr.mxu0 0.0
    %3291 = vmatpush1.msra.mxu0 0.0
    %3292 = vmatprep.subr.mxu0 0.0
    %3293 = vmatpush1.msra.mxu0 0.0
    %3294 = vmatprep.subr.mxu0 0.0
    %3295 = vmatpush1.msra.mxu0 0.0
    %3296 = vmatprep.subr.mxu0 0.0
    %3297 = vmatpush1.msra.mxu0 0.0
    %3298 = vmatprep.subr.mxu0 0.0
    %3299 = vmatpush1.msra.mxu0 0.0
    %3300 = vmatprep.subr.mxu0 0.0
    %3301 = vmatpush1.msra.mxu0 0.0
    %3302 = vmatprep.subr.mxu0 0.0
    %3303 = vmatpush1.msra.mxu0 0.0
    %3304 = vmatprep.subr.mxu0 0.0
    %3305 = vmatpush1.msra.mxu0 0.0
    %3306 = vmatprep.mubr.f32.mxu0 0.0
    %3307 = vmatmul.mubr.f32.gmra.mrb[0].mxu0 %v3240
    %v3308 = vpop.f32.mrb[0].mxu0
    %v3309 = vadd.f32 0.0, %v3308
    %v3310 = vpop.f32.mrb[0].mxu0
    %3311 = vdwg.mxu0
    %v3312 = vadd.f32 %v3238, %v3309
    %v3314 = vsel %vm3020, %v2967, 0
    %3316 = vmatprep.subr.mxu0 0.0
    %3317 = vmatpush1.msra.mxu0 %v3008
    %3318 = vmatprep.subr.mxu0 0.0
    %3319 = vmatpush1.msra.mxu0 %v3009
    %3320 = vmatprep.subr.mxu0 0.0
    %3321 = vmatpush1.msra.mxu0 %v3010
    %3322 = vmatprep.subr.mxu0 0.0
    %3323 = vmatpush1.msra.mxu0 %v3011
    %3324 = vmatprep.subr.mxu0 0.0
    %3325 = vmatpush1.msra.mxu0 %v3012
    %3326 = vmatprep.subr.mxu0 0.0
    %3327 = vmatpush1.msra.mxu0 %v3013
    %3328 = vmatprep.subr.mxu0 0.0
    %3329 = vmatpush1.msra.mxu0 %v3014
    %3330 = vmatprep.subr.mxu0 0.0
    %3331 = vmatpush1.msra.mxu0 %v3015
    %3332 = vmatprep.subr.mxu0 0.0
    %3333 = vmatpush1.msra.mxu0 %v3016
    %3334 = vmatprep.subr.mxu0 0.0
    %3335 = vmatpush1.msra.mxu0 %v3017
    %3336 = vmatprep.subr.mxu0 0.0
    %3337 = vmatpush1.msra.mxu0 0.0
    %3338 = vmatprep.subr.mxu0 0.0
    %3339 = vmatpush1.msra.mxu0 0.0
    %3340 = vmatprep.subr.mxu0 0.0
    %3341 = vmatpush1.msra.mxu0 0.0
    %3342 = vmatprep.subr.mxu0 0.0
    %3343 = vmatpush1.msra.mxu0 0.0
    %3344 = vmatprep.subr.mxu0 0.0
    %3345 = vmatpush1.msra.mxu0 0.0
    %3346 = vmatprep.subr.mxu0 0.0
    %3347 = vmatpush1.msra.mxu0 0.0
    %3348 = vmatprep.subr.mxu0 0.0
    %3349 = vmatpush1.msra.mxu0 0.0
    %3350 = vmatprep.subr.mxu0 0.0
    %3351 = vmatpush1.msra.mxu0 0.0
    %3352 = vmatprep.subr.mxu0 0.0
    %3353 = vmatpush1.msra.mxu0 0.0
    %3354 = vmatprep.subr.mxu0 0.0
    %3355 = vmatpush1.msra.mxu0 0.0
    %3356 = vmatprep.subr.mxu0 0.0
    %3357 = vmatpush1.msra.mxu0 0.0
    %3358 = vmatprep.subr.mxu0 0.0
    %3359 = vmatpush1.msra.mxu0 0.0
    %3360 = vmatprep.subr.mxu0 0.0
    %3361 = vmatpush1.msra.mxu0 0.0
    %3362 = vmatprep.subr.mxu0 0.0
    %3363 = vmatpush1.msra.mxu0 0.0
    %3364 = vmatprep.subr.mxu0 0.0
    %3365 = vmatpush1.msra.mxu0 0.0
    %3366 = vmatprep.subr.mxu0 0.0
    %3367 = vmatpush1.msra.mxu0 0.0
    %3368 = vmatprep.subr.mxu0 0.0
    %3369 = vmatpush1.msra.mxu0 0.0
    %3370 = vmatprep.subr.mxu0 0.0
    %3371 = vmatpush1.msra.mxu0 0.0
    %3372 = vmatprep.subr.mxu0 0.0
    %3373 = vmatpush1.msra.mxu0 0.0
    %3374 = vmatprep.subr.mxu0 0.0
    %3375 = vmatpush1.msra.mxu0 0.0
    %3376 = vmatprep.subr.mxu0 0.0
    %3377 = vmatpush1.msra.mxu0 0.0
    %3378 = vmatprep.subr.mxu0 0.0
    %3379 = vmatpush1.msra.mxu0 0.0
    %3380 = vmatprep.mubr.f32.mxu0 0.0
    %3381 = vmatmul.mubr.f32.gmra.mrb[0].mxu0 %v3314
    %v3382 = vpop.f32.mrb[0].mxu0
    %v3383 = vadd.f32 0.0, %v3382
    %v3384 = vpop.f32.mrb[0].mxu0
    %3385 = vdwg.mxu0
    %v3386 = vadd.f32 %v3312, %v3383
    %v3387 = vld [vmem:[%s6] sm:$0x1]
    %v3389 = vlaneseq
    %v3390 = vshrl.u32 %v3389, 7
    %v3391 = vsub.s32 0, %v3390
    %v3392 = vrot.slane %v3387, %v3391
    %v3394 = vadd.f32 %v3386, %v3392
    %v3395 = vxor.u32 %v3394, 2147483648
    %v3396 = vmul.f32 %v3395, 1.442695
    %v3397 = vpow.pop %v3396
    %v3398 = vadd.f32 %v3397, 1.0
    %v3399 = vrcp.pop %v3398
    %v3400 = vmul.f32 1.0, %v3399
    %v3401 = vld [vmem:[%s7] sm:$0xff]
    %v3402 = vld [vmem:[%s7 + $0x8] sm:$0xff]
    %v3403 = vld [vmem:[%s7 + $0x10] sm:$0xff]
    %v3404 = vld [vmem:[%s7 + $0x18] sm:$0xff]
    %v3405 = vld [vmem:[%s7 + $0x20] sm:$0xff]
    %v3406 = vld [vmem:[%s7 + $0x28] sm:$0xff]
    %v3407 = vld [vmem:[%s7 + $0x30] sm:$0xff]
    %v3408 = vld [vmem:[%s7 + $0x38] sm:$0xff]
    %v3409 = vld [vmem:[%s7 + $0x40] sm:$0xff]
    %v3410 = vld [vmem:[%s7 + $0x48] sm:$0xff]
    %v3411 = vld [vmem:[%s7 + $0x50] sm:$0xff]
    %v3412 = vld [vmem:[%s7 + $0x58] sm:$0xff]
    %v3413 = vld [vmem:[%s7 + $0x60] sm:$0xff]
    %v3414 = vld [vmem:[%s7 + $0x68] sm:$0xff]
    %v3415 = vld [vmem:[%s7 + $0x70] sm:$0xff]
    %v3416 = vld [vmem:[%s7 + $0x78] sm:$0xff]
    %v3417 = vld [vmem:[%s8] sm:$0x1]
    %v3419 = vlaneseq
    %v3420 = vshrl.u32 %v3419, 7
    %v3421 = vsub.s32 0, %v3420
    %v3422 = vrot.slane %v3417, %v3421
    %3424 = vmatprep.subr.mxu0 0.0
    %3425 = vmatpush1.msra.mxu0 %v3401
    %3426 = vmatprep.subr.mxu0 0.0
    %3427 = vmatpush1.msra.mxu0 %v3402
    %3428 = vmatprep.subr.mxu0 0.0
    %3429 = vmatpush1.msra.mxu0 %v3403
    %3430 = vmatprep.subr.mxu0 0.0
    %3431 = vmatpush1.msra.mxu0 %v3404
    %3432 = vmatprep.subr.mxu0 0.0
    %3433 = vmatpush1.msra.mxu0 %v3405
    %3434 = vmatprep.subr.mxu0 0.0
    %3435 = vmatpush1.msra.mxu0 %v3406
    %3436 = vmatprep.subr.mxu0 0.0
    %3437 = vmatpush1.msra.mxu0 %v3407
    %3438 = vmatprep.subr.mxu0 0.0
    %3439 = vmatpush1.msra.mxu0 %v3408
    %3440 = vmatprep.subr.mxu0 0.0
    %3441 = vmatpush1.msra.mxu0 %v3409
    %3442 = vmatprep.subr.mxu0 0.0
    %3443 = vmatpush1.msra.mxu0 %v3410
    %3444 = vmatprep.subr.mxu0 0.0
    %3445 = vmatpush1.msra.mxu0 %v3411
    %3446 = vmatprep.subr.mxu0 0.0
    %3447 = vmatpush1.msra.mxu0 %v3412
    %3448 = vmatprep.subr.mxu0 0.0
    %3449 = vmatpush1.msra.mxu0 %v3413
    %3450 = vmatprep.subr.mxu0 0.0
    %3451 = vmatpush1.msra.mxu0 %v3414
    %3452 = vmatprep.subr.mxu0 0.0
    %3453 = vmatpush1.msra.mxu0 %v3415
    %3454 = vmatprep.subr.mxu0 0.0
    %3455 = vmatpush1.msra.mxu0 %v3416
    %3456 = vmatprep.subr.mxu0 0.0
    %3457 = vmatpush1.msra.mxu0 0.0
    %3458 = vmatprep.subr.mxu0 0.0
    %3459 = vmatpush1.msra.mxu0 0.0
    %3460 = vmatprep.subr.mxu0 0.0
    %3461 = vmatpush1.msra.mxu0 0.0
    %3462 = vmatprep.subr.mxu0 0.0
    %3463 = vmatpush1.msra.mxu0 0.0
    %3464 = vmatprep.subr.mxu0 0.0
    %3465 = vmatpush1.msra.mxu0 0.0
    %3466 = vmatprep.subr.mxu0 0.0
    %3467 = vmatpush1.msra.mxu0 0.0
    %3468 = vmatprep.subr.mxu0 0.0
    %3469 = vmatpush1.msra.mxu0 0.0
    %3470 = vmatprep.subr.mxu0 0.0
    %3471 = vmatpush1.msra.mxu0 0.0
    %3472 = vmatprep.subr.mxu0 0.0
    %3473 = vmatpush1.msra.mxu0 0.0
    %3474 = vmatprep.subr.mxu0 0.0
    %3475 = vmatpush1.msra.mxu0 0.0
    %3476 = vmatprep.subr.mxu0 0.0
    %3477 = vmatpush1.msra.mxu0 0.0
    %3478 = vmatprep.subr.mxu0 0.0
    %3479 = vmatpush1.msra.mxu0 0.0
    %3480 = vmatprep.subr.mxu0 0.0
    %3481 = vmatpush1.msra.mxu0 0.0
    %3482 = vmatprep.subr.mxu0 0.0
    %3483 = vmatpush1.msra.mxu0 0.0
    %3484 = vmatprep.subr.mxu0 0.0
    %3485 = vmatpush1.msra.mxu0 0.0
    %3486 = vmatprep.subr.mxu0 0.0
    %3487 = vmatpush1.msra.mxu0 0.0
    %3488 = vmatprep.mubr.f32.mxu0 0.0
    %3489 = vmatmul.mubr.f32.gmra.mrb[0].mxu0 %v3400
    %v3490 = vpop.f32.mrb[0].mxu0
    %v3491 = vadd.f32 %v3422, %v3490
    %v3492 = vpop.f32.mrb[0].mxu0
    %3493 = vdwg.mxu0
    %v3494 = vxor.u32 %v3491, 2147483648
    %v3495 = vmul.f32 %v3494, 1.442695
    %v3496 = vpow.pop %v3495
    %v3497 = vadd.f32 %v3496, 1.0
    %v3498 = vrcp.pop %v3497
    %v3499 = vmul.f32 1.0, %v3498
    %v3500 = vld [vmem:[%s9] sm:$0xff]
    %v3501 = vld [vmem:[%s9 + $0x8] sm:$0xff]
    %v3502 = vld [vmem:[%s9 + $0x10] sm:$0xff]
    %v3503 = vld [vmem:[%s9 + $0x18] sm:$0xff]
    %v3504 = vld [vmem:[%s9 + $0x20] sm:$0xff]
    %v3505 = vld [vmem:[%s9 + $0x28] sm:$0xff]
    %v3506 = vld [vmem:[%s9 + $0x30] sm:$0xff]
    %v3507 = vld [vmem:[%s9 + $0x38] sm:$0xff]
    %v3508 = vld [vmem:[%s9 + $0x40] sm:$0xff]
    %v3509 = vld [vmem:[%s9 + $0x48] sm:$0xff]
    %v3510 = vld [vmem:[%s9 + $0x50] sm:$0xff]
    %v3511 = vld [vmem:[%s9 + $0x58] sm:$0xff]
    %v3512 = vld [vmem:[%s9 + $0x60] sm:$0xff]
    %v3513 = vld [vmem:[%s9 + $0x68] sm:$0xff]
    %v3514 = vld [vmem:[%s9 + $0x70] sm:$0xff]
    %v3515 = vld [vmem:[%s9 + $0x78] sm:$0xff]
    %v3516 = vld [vmem:[#allocation7] sm:$0x1]
    %v3518 = vlaneseq
    %v3519 = vshrl.u32 %v3518, 7
    %v3520 = vsub.s32 0, %v3519
    %v3521 = vrot.slane %v3516, %v3520
    %3523 = vmatprep.subr.mxu0 0.0
    %3524 = vmatpush1.msra.mxu0 %v3500
    %3525 = vmatprep.subr.mxu0 0.0
    %3526 = vmatpush1.msra.mxu0 %v3501
    %3527 = vmatprep.subr.mxu0 0.0
    %3528 = vmatpush1.msra.mxu0 %v3502
    %3529 = vmatprep.subr.mxu0 0.0
    %3530 = vmatpush1.msra.mxu0 %v3503
    %3531 = vmatprep.subr.mxu0 0.0
    %3532 = vmatpush1.msra.mxu0 %v3504
    %3533 = vmatprep.subr.mxu0 0.0
    %3534 = vmatpush1.msra.mxu0 %v3505
    %3535 = vmatprep.subr.mxu0 0.0
    %3536 = vmatpush1.msra.mxu0 %v3506
    %3537 = vmatprep.subr.mxu0 0.0
    %3538 = vmatpush1.msra.mxu0 %v3507
    %3539 = vmatprep.subr.mxu0 0.0
    %3540 = vmatpush1.msra.mxu0 %v3508
    %3541 = vmatprep.subr.mxu0 0.0
    %3542 = vmatpush1.msra.mxu0 %v3509
    %3543 = vmatprep.subr.mxu0 0.0
    %3544 = vmatpush1.msra.mxu0 %v3510
    %3545 = vmatprep.subr.mxu0 0.0
    %3546 = vmatpush1.msra.mxu0 %v3511
    %3547 = vmatprep.subr.mxu0 0.0
    %3548 = vmatpush1.msra.mxu0 %v3512
    %3549 = vmatprep.subr.mxu0 0.0
    %3550 = vmatpush1.msra.mxu0 %v3513
    %3551 = vmatprep.subr.mxu0 0.0
    %3552 = vmatpush1.msra.mxu0 %v3514
    %3553 = vmatprep.subr.mxu0 0.0
    %3554 = vmatpush1.msra.mxu0 %v3515
    %3555 = vmatprep.subr.mxu0 0.0
    %3556 = vmatpush1.msra.mxu0 0.0
    %3557 = vmatprep.subr.mxu0 0.0
    %3558 = vmatpush1.msra.mxu0 0.0
    %3559 = vmatprep.subr.mxu0 0.0
    %3560 = vmatpush1.msra.mxu0 0.0
    %3561 = vmatprep.subr.mxu0 0.0
    %3562 = vmatpush1.msra.mxu0 0.0
    %3563 = vmatprep.subr.mxu0 0.0
    %3564 = vmatpush1.msra.mxu0 0.0
    %3565 = vmatprep.subr.mxu0 0.0
    %3566 = vmatpush1.msra.mxu0 0.0
    %3567 = vmatprep.subr.mxu0 0.0
    %3568 = vmatpush1.msra.mxu0 0.0
    %3569 = vmatprep.subr.mxu0 0.0
    %3570 = vmatpush1.msra.mxu0 0.0
    %3571 = vmatprep.subr.mxu0 0.0
    %3572 = vmatpush1.msra.mxu0 0.0
    %3573 = vmatprep.subr.mxu0 0.0
    %3574 = vmatpush1.msra.mxu0 0.0
    %3575 = vmatprep.subr.mxu0 0.0
    %3576 = vmatpush1.msra.mxu0 0.0
    %3577 = vmatprep.subr.mxu0 0.0
    %3578 = vmatpush1.msra.mxu0 0.0
    %3579 = vmatprep.subr.mxu0 0.0
    %3580 = vmatpush1.msra.mxu0 0.0
    %3581 = vmatprep.subr.mxu0 0.0
    %3582 = vmatpush1.msra.mxu0 0.0
    %3583 = vmatprep.subr.mxu0 0.0
    %3584 = vmatpush1.msra.mxu0 0.0
    %3585 = vmatprep.subr.mxu0 0.0
    %3586 = vmatpush1.msra.mxu0 0.0
    %3587 = vmatprep.mubr.f32.mxu0 0.0
    %3588 = vmatmul.mubr.f32.gmra.mrb[0].mxu0 %v3499
    %v3589 = vpop.f32.mrb[0].mxu0
    %v3590 = vadd.f32 %v3521, %v3589
    %v3591 = vpop.f32.mrb[0].mxu0
    %3592 = vdwg.mxu0
    %vm3593 = vcmask 74752
    %3594 = vst.msk [vmem:[#allocation8] sm:$0x3] %vm3593, %v3590
    // Predicated region
    $region58: #{lenet_forward.1} parent=1 // pred_check
      _
    $region59: #{lenet_forward.1} parent=1 // pred_check_branch
      %3596 = sbr.rel (0) target = $region61
    $region60: #{lenet_forward.1} parent=1 // pred_region
      %s3598 = ssub.s32 32, 32
      %3599 = vsyncadd [#allocation4], %s3598
      %s3601 = sshll.u32 [#allocation8], 4
      %s3602 = int_to_ptr.vmem [resolvable:$true] %s3601
      %3604 = dma.vmem_to_hbm [thread:$0]  %s3602, 32, %s11, [#allocation4]
    $region61: #{lenet_forward.1} parent=1 // pred_fallthru
      _
    // Predicated region
    $region62: #{lenet_forward.1} parent=1 // pred_check
      _
    $region63: #{lenet_forward.1} parent=1 // pred_check_branch
      %3606 = sbr.rel (0) target = $region65
    $region64: #{lenet_forward.1} parent=1 // pred_region
      %3607 = dma.done [#allocation4], 32
    $region65: #{lenet_forward.1} parent=1 // pred_fallthru
      _
    %3608 = vsyncpa [#allocation3], 1
    %3609 = vsyncpa [#allocation6], 1
    %3610 = vsyncpa [#allocation4], 1

</llo_original>
